<compile_context>
chip_gen: v5e
topology: v5e:2x2
jax: 0.10.0
libtpu: 0.0.40
codegen_flags: <defaults>
</compile_context>

<pallas_src>
import functools
import math

import jax
import jax.numpy as jnp
from jax import lax
from jax.experimental import pallas as pl
from jax.experimental.pallas import tpu as pltpu


# --------------------------------------------------------------------------
# Interpolation weights (PyTorch bilinear, align_corners=False conventions)
# --------------------------------------------------------------------------
def _interp_matrix(out_size: int, in_size: int, scale_factor) -> jnp.ndarray:
    """Dense (out_size, in_size) matrix matching PyTorch's source-index /
    weight computation (scale = 1/scale_factor, negative src clamped)."""
    scale = 1.0 / float(scale_factor)
    dst = jnp.arange(out_size, dtype=jnp.float32)
    src = jnp.maximum((dst + 0.5) * scale - 0.5, 0.0)
    i0f = jnp.floor(src)
    lam = src - i0f                                   # weight for i1
    i0 = jnp.clip(i0f.astype(jnp.int32), 0, in_size - 1)
    i1 = jnp.minimum(i0 + 1, in_size - 1)
    oh0 = jax.nn.one_hot(i0, in_size, dtype=jnp.float32)
    oh1 = jax.nn.one_hot(i1, in_size, dtype=jnp.float32)
    return oh0 * (1.0 - lam)[:, None] + oh1 * lam[:, None]


# --------------------------------------------------------------------------
# Generation-aware VMEM budgeting
# --------------------------------------------------------------------------
def _vmem_budget():
    cap = None
    try:
        cap = getattr(pltpu.get_tpu_info(), "vmem_capacity_bytes", None)
    except Exception:
        cap = None
    if not cap:
        cap = 64 * 1024 * 1024            # conservative: v7x per-TensorCore VMEM
    limit = min(int(cap) * 3 // 4, 96 * 1024 * 1024)  # ~48 MiB v7x, ~96 MiB v5e/v6e
    budget = int(limit * 0.45)            # double-buffered working-set target
    return limit, budget


def _rup(n: int, m: int) -> int:
    return ((n + m - 1) // m) * m


# --------------------------------------------------------------------------
# Kernels
# --------------------------------------------------------------------------
def _kron_kernel(x_ref, w_ref, o_ref, *, precision):
    # x_ref: (rows, hw_in)   w_ref: (hw_in, cols)   o_ref: (rows, cols)
    o_ref[...] = jnp.dot(
        x_ref[...], w_ref[...],
        preferred_element_type=jnp.float32,
        precision=precision).astype(o_ref.dtype)


def _separable_kernel(x_ref, wh_ref, wwt_ref, o_ref, *, precision):
    # x_ref  : (BC, H_in, W_in)
    # wh_ref : (H_out, H_in)       wwt_ref: (W_in, W_out)
    # o_ref  : (BC, H_out, W_out)  -> NCHW emitted directly, no relayout/concat
    bc, h_in, _ = x_ref.shape
    # width pass: batch folded into M (reshape is free when h_in % 8 == 0,
    # which holds for the large images this path targets)
    t = jnp.dot(x_ref[...].reshape(bc * h_in, x_ref.shape[2]), wwt_ref[...],
                preferred_element_type=jnp.float32, precision=precision)
    # height pass: one matmul per slab, stored straight into the output block
    for b in range(bc):
        tb = t[b * h_in:(b + 1) * h_in, :]
        o_ref[b] = jnp.dot(wh_ref[...], tb,
                           preferred_element_type=jnp.float32,
                           precision=precision).astype(o_ref.dtype)


# --------------------------------------------------------------------------
# Block-size selection
# --------------------------------------------------------------------------
def _pick_kron_rows(nc, hw_in, itemsize, budget):
    # rows per block must be a multiple of 8 dividing nc, or nc itself
    cands = sorted({d for d in range(8, nc + 1, 8) if nc % d == 0} | {nc})
    fit = [d for d in cands if 2 * d * hw_in * itemsize <= budget // 3]
    if not fit:
        return None
    multi = [d for d in fit if nc // d >= 2]     # prefer >= 2 row blocks
    return max(multi) if multi else max(fit)


def _pick_kron_cols(hw_in, hw_out, rows, itemsize, budget, want_multi):
    # column tile must be a multiple of 128 dividing hw_out, or hw_out itself
    cands = [c for c in range(128, hw_out + 1, 128) if hw_out % c == 0] or [hw_out]

    def fits(c):
        return (2 * rows * hw_in * itemsize        # x block (double-buffered)
                + 2 * hw_in * c * 4                # streamed f32 weight columns
                + 2 * rows * c * itemsize) <= budget

    fit = [c for c in cands if fits(c)] or [min(cands)]
    if want_multi:
        split = [c for c in fit if c < hw_out]     # keep grid >= 2 for v7x
        if split:
            return max(split)
    return max(fit)


def _pick_bc_separable(nc, h_in, w_in, h_out, w_out, itemsize, budget):
    wts = (_rup(h_out, 8) * _rup(h_in, 128) + _rup(w_in, 8) * _rup(w_out, 128)) * 4

    def step_bytes(b):
        in_b = b * _rup(h_in, 8) * _rup(w_in, 128) * itemsize
        out_b = b * _rup(h_out, 8) * _rup(w_out, 128) * itemsize
        tmp = _rup(b * h_in, 8) * _rup(w_out, 128) * 4   # width-pass f32 temp
        return 2 * (in_b + out_b) + wts + tmp

    cap = min(nc, 32)                     # bound the per-slab unroll
    if nc >= 2:
        cap = min(cap, nc // 2)           # guarantee >= 2 grid steps (v7x)
    cap = max(cap, 1)
    best = 1
    for d in range(1, cap + 1):           # divisors of nc only -> no jnp.pad
        if nc % d == 0 and step_bytes(d) <= budget:
            best = d
    return best


# --------------------------------------------------------------------------
# pallas_call wrappers
# --------------------------------------------------------------------------
def _upsample_kron(x, wh, ww, rows, cols, vmem_limit, tuned):
    n, c, h_in, w_in = x.shape
    h_out, w_out = wh.shape[0], ww.shape[0]
    nc, hw_in, hw_out = n * c, h_in * w_in, h_out * w_out

    kmat = jnp.kron(wh, ww).T                         # (hw_in, hw_out), f32
    x2 = x.reshape(nc, hw_in)

    kernel = functools.partial(
        _kron_kernel,
        precision=lax.Precision.HIGHEST if tuned else None)

    cost = pl.CostEstimate(
        flops=2 * nc * hw_in * hw_out, transcendentals=0,
        bytes_accessed=nc * (hw_in + hw_out) * x.dtype.itemsize
        + hw_in * hw_out * 4)

    out = pl.pallas_call(
        kernel,
        out_shape=jax.ShapeDtypeStruct((nc, hw_out), x.dtype),
        grid_spec=pltpu.PrefetchScalarGridSpec(
            num_scalar_prefetch=0,
            grid=(nc // rows, hw_out // cols),
            in_specs=[
                pl.BlockSpec((rows, hw_in), lambda i, j: (i, 0)),
                pl.BlockSpec((hw_in, cols), lambda i, j: (0, j)),
            ],
            out_specs=pl.BlockSpec((rows, cols), lambda i, j: (i, j)),
        ),
        compiler_params=pltpu.CompilerParams(
            dimension_semantics=("parallel", "parallel"),
            vmem_limit_bytes=vmem_limit),
        cost_estimate=cost,
    )(x2, kmat)
    # contiguous reshape only -- no transpose / extra HBM pass
    return out.reshape(n, c, h_out, w_out)


def _upsample_separable(x, wh, ww, bc, vmem_limit, tuned):
    n, c, h_in, w_in = x.shape
    h_out, w_out = wh.shape[0], ww.shape[0]
    nc = n * c
    wwt = ww.T                                        # pre-transposed host-side
    x_flat = x.reshape(nc, h_in, w_in)

    kernel = functools.partial(
        _separable_kernel,
        precision=lax.Precision.HIGHEST if tuned else None)

    def weight_spec(shape):
        if tuned:
            # resident weights: single buffer (constant index_map)
            return pl.BlockSpec(shape, lambda i: (0, 0),
                                pipeline_mode=pl.Buffered(1))
        return pl.BlockSpec(shape, lambda i: (0, 0))

    cost = pl.CostEstimate(
        flops=2 * nc * w_out * h_in * (w_in + h_out), transcendentals=0,
        bytes_accessed=nc * (h_in * w_in + h_out * w_out) * x.dtype.itemsize
        + (h_out * h_in + w_in * w_out) * 4)

    out = pl.pallas_call(
        kernel,
        out_shape=jax.ShapeDtypeStruct((nc, h_out, w_out), x.dtype),
        grid_spec=pltpu.PrefetchScalarGridSpec(
            num_scalar_prefetch=0,
            grid=(nc // bc,),
            in_specs=[
                pl.BlockSpec((bc, h_in, w_in), lambda i: (i, 0, 0)),
                weight_spec((h_out, h_in)),
                weight_spec((w_in, w_out)),
            ],
            out_specs=pl.BlockSpec((bc, h_out, w_out), lambda i: (i, 0, 0)),
        ),
        compiler_params=pltpu.CompilerParams(
            dimension_semantics=("parallel",),
            vmem_limit_bytes=vmem_limit),
        cost_estimate=cost,
    )(x_flat, wh, wwt)
    return out.reshape(n, c, h_out, w_out)


def upsample_bilinear(x: jnp.ndarray, scale_factor, *, force_separable=False):
    """Equivalent of Upsample(scale_factor)(x) for NCHW float input."""
    n, c, h_in, w_in = x.shape
    h_out = int(math.floor(h_in * float(scale_factor)))
    w_out = int(math.floor(w_in * float(scale_factor)))
    nc = n * c
    itemsize = x.dtype.itemsize
    vmem_limit, budget = _vmem_budget()

    wh = _interp_matrix(h_out, h_in, scale_factor)    # (h_out, h_in)
    ww = _interp_matrix(w_out, w_in, scale_factor)    # (w_out, w_in)

    use_kron = (not force_separable
                and h_in * w_in <= 1024 and h_out * w_out <= 8192)
    rows = cols = None
    if use_kron:
        rows = _pick_kron_rows(nc, h_in * w_in, itemsize, budget)
        if rows is None:
            use_kron = False
        else:
            cols = _pick_kron_cols(h_in * w_in, h_out * w_out, rows, itemsize,
                                   budget, want_multi=(nc // rows) < 2)

    if use_kron:
        def build(tuned):
            return _upsample_kron(x, wh, ww, rows, cols, vmem_limit, tuned)
    else:
        bc = _pick_bc_separable(nc, h_in, w_in, h_out, w_out, itemsize, budget)

        def build(tuned):
            return _upsample_separable(x, wh, ww, bc, vmem_limit, tuned)

    try:
        return jax.block_until_ready(build(True))
    except Exception:
        # conservative fallback: default matmul precision, double-buffered weights
        return jax.block_until_ready(build(False))


# --------------------------------------------------------------------------
# Gather-based reference (different formulation than the kernels)
# --------------------------------------------------------------------------
def _reference_bilinear(x, scale_factor):
    n, c, h_in, w_in = x.shape
    h_out = int(math.floor(h_in * float(scale_factor)))
    w_out = int(math.floor(w_in * float(scale_factor)))
    scale = 1.0 / float(scale_factor)

    def src_idx(out_size, in_size):
        s = jnp.maximum(
            (jnp.arange(out_size, dtype=jnp.float32) + 0.5) * scale - 0.5, 0.0)
        i0 = jnp.clip(jnp.floor(s).astype(jnp.int32), 0, in_size - 1)
        lam = s - jnp.floor(s)
        i1 = jnp.minimum(i0 + 1, in_size - 1)
        return i0, i1, lam

    h0, h1, lh = src_idx(h_out, h_in)
    w0, w1, lw = src_idx(w_out, w_in)
    lh = lh[:, None]
    lw = lw[None, :]
    top = x[:, :, h0, :]
    bot = x[:, :, h1, :]
    row0 = top[..., w0] * (1.0 - lw) + top[..., w1] * lw
    row1 = bot[..., w0] * (1.0 - lw) + bot[..., w1] * lw
    return row0 * (1.0 - lh) + row1 * lh


if __name__ == "__main__":
    key = jax.random.PRNGKey(0)
    n, c, h, w = 2, 4, 16, 16
    x = jax.random.normal(key, (n, c, h, w), dtype=jnp.float32)

    # 1) integer scale factor (Kronecker single-matmul path)
    out = jax.block_until_ready(upsample_bilinear(x, 2))
    ref = _reference_bilinear(x, 2)
    assert out.shape == (n, c, 2 * h, 2 * w), out.shape
    err = float(jnp.max(jnp.abs(out - ref)))
    assert err < 1e-4, f"kron path error {err}"

    # 2) non-integer scale factor (floor() output sizing / 1/scale mapping)
    out15 = jax.block_until_ready(upsample_bilinear(x, 1.5))
    ref15 = _reference_bilinear(x, 1.5)
    assert out15.shape == (n, c, 24, 24), out15.shape
    err15 = float(jnp.max(jnp.abs(out15 - ref15)))
    assert err15 < 1e-4, f"kron path (scale=1.5) error {err15}"

    # 3) separable two-matmul path (the large-image path), forced at small size
    out_sep = jax.block_until_ready(upsample_bilinear(x, 2, force_separable=True))
    err_sep = float(jnp.max(jnp.abs(out_sep - ref)))
    assert err_sep < 1e-4, f"separable path error {err_sep}"

    print("KERNEL_OK")
</pallas_src>

<mosaic_0001>
module attributes {stable_mosaic.version = 11 : i64} {
  func.func @_kron_kernel(%arg0: i32, %arg1: i32, %arg2: memref<8x256xf32, #tpu.memory_space<vmem>>, %arg3: memref<256x512xf32, #tpu.memory_space<vmem>>, %arg4: memref<8x512xf32, #tpu.memory_space<vmem>>) attributes {dimension_semantics = [#tpu.dimension_semantics<parallel>, #tpu.dimension_semantics<parallel>], iteration_bounds = array<i64: 1, 2>, scalar_prefetch = 0 : i64, scratch_operands = 0 : i64, tpu.core_type = #tpu.core_type<tc>, window_params = [{transform_indices = @transform_0, window_bounds = array<i64: 8, 256>}, {transform_indices = @transform_1, window_bounds = array<i64: 256, 512>}, {transform_indices = @transform_2, window_bounds = array<i64: 8, 512>}]} {
    %c0 = arith.constant 0 : index
    %c0_0 = arith.constant 0 : index
    %0 = vector.load %arg2[%c0, %c0_0] : memref<8x256xf32, #tpu.memory_space<vmem>>, vector<8x256xf32>
    %c0_1 = arith.constant 0 : index
    %c0_2 = arith.constant 0 : index
    %1 = vector.load %arg3[%c0_1, %c0_2] : memref<256x512xf32, #tpu.memory_space<vmem>>, vector<256x512xf32>
    %cst = arith.constant dense<0.000000e+00> : vector<8x512xf32>
    %2 = tpu.matmul %0, %1, %cst {dimension_numbers = #tpu.dot_dimension_numbers<[1], [0], [0], [1], [0, 0, 1, 1], [], []>, precision = #tpu.contract_precision<fp32>} : vector<8x256xf32>, vector<256x512xf32>, vector<8x512xf32> -> vector<8x512xf32>
    %c0_3 = arith.constant 0 : index
    %c0_4 = arith.constant 0 : index
    %3 = vector.load %arg4[%c0_3, %c0_4] : memref<8x512xf32, #tpu.memory_space<vmem>>, vector<8x512xf32>
    tpu.vector_store %arg4[%c0_3, %c0_4], %2 {strides = array<i32>} : memref<8x512xf32, #tpu.memory_space<vmem>>, vector<8x512xf32>,
    return
  }
  func.func @transform_0(%arg0: i32, %arg1: i32) -> (i32, i32) {
    %c0_i32 = arith.constant 0 : i32
    %c0_i32_0 = arith.constant 0 : i32
    return %arg0, %c0_i32 : i32, i32
  }
  func.func @transform_1(%arg0: i32, %arg1: i32) -> (i32, i32) {
    %c0_i32 = arith.constant 0 : i32
    %c0_i32_0 = arith.constant 0 : i32
    return %c0_i32, %arg1 : i32, i32
  }
  func.func @transform_2(%arg0: i32, %arg1: i32) -> (i32, i32) {
    %c0_i32 = arith.constant 0 : i32
    return %arg0, %arg1 : i32, i32
  }
}

module attributes {stable_mosaic.version = 11 : i64} {
  func.func @_kron_kernel(%arg0: i32, %arg1: i32, %arg2: memref<8x256xf32, #tpu.memory_space<vmem>>, %arg3: memref<256x512xf32, #tpu.memory_space<vmem>>, %arg4: memref<8x512xf32, #tpu.memory_space<vmem>>) attributes {dimension_semantics = [#tpu.dimension_semantics<parallel>, #tpu.dimension_semantics<parallel>], iteration_bounds = array<i64: 1, 2>, scalar_prefetch = 0 : i64, scratch_operands = 0 : i64, tpu.core_type = #tpu.core_type<tc>, window_params = [{transform_indices = @transform_0, window_bounds = array<i64: 8, 256>}, {transform_indices = @transform_1, window_bounds = array<i64: 256, 512>}, {transform_indices = @transform_2, window_bounds = array<i64: 8, 512>}]} {
    %c0 = arith.constant 0 : index
    %c0_0 = arith.constant 0 : index
    %0 = vector.load %arg2[%c0, %c0_0] : memref<8x256xf32, #tpu.memory_space<vmem>>, vector<8x256xf32>
    %c0_1 = arith.constant 0 : index
    %c0_2 = arith.constant 0 : index
    %1 = vector.load %arg3[%c0_1, %c0_2] : memref<256x512xf32, #tpu.memory_space<vmem>>, vector<256x512xf32>
    %cst = arith.constant dense<0.000000e+00> : vector<8x512xf32>
    %2 = tpu.matmul %0, %1, %cst {dimension_numbers = #tpu.dot_dimension_numbers<[1], [0], [0], [1], [0, 0, 1, 1], [], []>} : vector<8x256xf32>, vector<256x512xf32>, vector<8x512xf32> -> vector<8x512xf32>
    %c0_3 = arith.constant 0 : index
    %c0_4 = arith.constant 0 : index
    %3 = vector.load %arg4[%c0_3, %c0_4] : memref<8x512xf32, #tpu.memory_space<vmem>>, vector<8x512xf32>
    tpu.vector_store %arg4[%c0_3, %c0_4], %2 {strides = array<i32>} : memref<8x512xf32, #tpu.memory_space<vmem>>, vector<8x512xf32>,
    return
  }
  func.func @transform_0(%arg0: i32, %arg1: i32) -> (i32, i32) {
    %c0_i32 = arith.constant 0 : i32
    %c0_i32_0 = arith.constant 0 : i32
    return %arg0, %c0_i32 : i32, i32
  }
  func.func @transform_1(%arg0: i32, %arg1: i32) -> (i32, i32) {
    %c0_i32 = arith.constant 0 : i32
    %c0_i32_0 = arith.constant 0 : i32
    return %c0_i32, %arg1 : i32, i32
  }
  func.func @transform_2(%arg0: i32, %arg1: i32) -> (i32, i32) {
    %c0_i32 = arith.constant 0 : i32
    return %arg0, %arg1 : i32, i32
  }
}

</mosaic_0001>

<llo_original>
// kernel: tpu_custom_call.1
$region0: #{tpu_custom_call.1}
  #allocation0 [shape = 'u32[]', space=smem, size = 0x4, offset = 0x4, fixed_abs, tag = 'smem constant byte address 0x4 - core index']
  #allocation1 [shape = 'u32[72,128]{1,0:T(1,128)}', space=vmem, size = 0x9000, scoped, tag = 'internal scratch']
  %s0 = inlined_call_operand.hbm [shape: f32[8,256], index: 0, kind: input, shape index: {}]
  %s1 = inlined_call_operand.hbm [shape: f32[256,1024], index: 1, kind: input, shape index: {}]
  %s2 = inlined_call_operand.hbm [shape: f32[8,1024], index: 2, kind: output, shape index: {}]
  %s3 = sld [smem:[#allocation0]]
  $region49: #{tpu_custom_call.1} parent=0
    _
  %s5 = ssub.s32 1, %s3
  %s6 = scalar_select 0, %s5, %s3
  $region1: #{tpu_custom_call.1} parent=0
    #allocation2 [shape = 'u8[8192]{0}', space=vmem, size = 0x2000, scoped, tag = 'input window, operand 0, single buffered']
    #allocation3 [shape = 's32[2]{0}', space=sflag, size = 0x8, scoped, tag = 'scoped memory for tpu_custom_call.1']
    #allocation4 [shape = 's32[2]{0}', space=sflag, size = 0x8, scoped, tag = 'scoped memory for tpu_custom_call.1']
    #allocation5 [shape = 'u8[1048576]{0}', space=vmem, size = 0x100000, scoped, tag = 'input window, operand 1']
    #allocation6 [shape = 's32[2]{0}', space=sflag, size = 0x8, scoped, tag = 'scoped memory for tpu_custom_call.1']
    #allocation7 [shape = 'u8[32768]{0}', space=vmem, size = 0x8000, scoped, tag = 'output window, operand 0']
    %7 = vsyncpa [#allocation3], 0
    %8 = vsyncpa [#allocation6], 0
    %s9 = scalar_lea.sflag [#allocation6], 1
    %10 = vsyncpa %s9, 0
    %11 = vsyncpa [#allocation4], 0
    %s12 = scalar_lea.sflag [#allocation4], 1
    %13 = vsyncpa %s12, 0
    loop: start=0, step=1, limit=4
    $region2: #{tpu_custom_call.1} parent=1 // loop_pre_header
      _
    $region3: #{tpu_custom_call.1} parent=1 // loop_header
      %s15 = sphi 0, %s19
      %p16 = scmp.ge.s32.totalorder %s15, 4
      %s22 = sphi 0, %s34
      %s23 = sphi 0, %s30
      %s24 = sphi 0, %s22
      %s25 = sphi 0, %s23
      %s26 = sphi 0, %s24
      %s27 = sphi 0, %s25
      %s37 = sphi 0, %s39
      %s40 = sphi 0, %s37
      %s41 = sphi 0, %s40
      %s57 = sphi 0, %s41
      %s63 = sphi 0, %s65
      %s66 = sphi 0, %s63
      %s67 = sphi 0, %s66
      %s83 = sphi 0, %s67
      %s91 = sphi 0, %s93
      %s94 = sphi 0, %s91
      %s95 = sphi 0, %s94
      %s111 = sphi 0, %s95
    $region4: #{tpu_custom_call.1} parent=1 // loop_header_branch
      %18 = sbr.rel (%p16) target = $region8
    $region5: #{tpu_custom_call.1} parent=1 // loop_body
      %s20 = ssub.s32 %s15, 1
      %s21 = ssub.s32 %s15, 2
      %s28 = sadd.s32 1, %s23
      %p29 = scmp.ge.s32.totalorder %s28, 2
      %s30 = scalar_select %p29, 0, %s28
      %s31 = sadd.s32 1, %s22
      %s32 = scalar_select %p29, %s31, %s22
      %p33 = scmp.ge.s32.totalorder %s32, 1
      %s34 = scalar_select %p33, 0, %s32
      %s35 = ssub.s32 %s22, %s34
      %p36 = scmp.eq.s32.totalorder %s35, 0
      %s38 = sadd.s32 %s37, 1
      %s39 = scalar_select %p36, %s37, %s38
      %p42 = pneg %p36
      %p43 = scmp.eq.s32.totalorder %s15, 1
      %p44 = por %p42, %p43
      %p45 = scmp.ne.s32.totalorder %s37, %s40
      %p46 = scmp.eq.s32.totalorder %s15, 0
      %p47 = por %p45, %p46
      %p48 = scmp.ne.s32.totalorder %s37, %s40
      %p49 = scmp.eq.s32.totalorder %s20, 1
      %p50 = por %p48, %p49
      %p51 = scmp.ne.s32.totalorder %s40, %s41
      %p52 = scmp.eq.s32.totalorder %s20, 0
      %p53 = por %p51, %p52
      %p54 = scmp.ne.s32.totalorder %s40, %s41
      %p55 = scmp.eq.s32.totalorder %s21, 1
      %p56 = por %p54, %p55
      %p58 = scmp.ne.s32.totalorder %s41, %s57
      %p59 = scmp.eq.s32.totalorder %s21, 0
      %p60 = por %p58, %p59
      %s61 = ssub.s32 %s23, %s30
      %p62 = scmp.eq.s32.totalorder %s61, 0
      %s64 = sadd.s32 %s63, 1
      %s65 = scalar_select %p62, %s63, %s64
      %p68 = pneg %p62
      %p69 = scmp.eq.s32.totalorder %s15, 1
      %p70 = por %p68, %p69
      %p71 = scmp.ne.s32.totalorder %s63, %s66
      %p72 = scmp.eq.s32.totalorder %s15, 0
      %p73 = por %p71, %p72
      %p74 = scmp.ne.s32.totalorder %s63, %s66
      %p75 = scmp.eq.s32.totalorder %s20, 1
      %p76 = por %p74, %p75
      %p77 = scmp.ne.s32.totalorder %s66, %s67
      %p78 = scmp.eq.s32.totalorder %s20, 0
      %p79 = por %p77, %p78
      %p80 = scmp.ne.s32.totalorder %s66, %s67
      %p81 = scmp.eq.s32.totalorder %s21, 1
      %p82 = por %p80, %p81
      %p84 = scmp.ne.s32.totalorder %s67, %s83
      %p85 = scmp.eq.s32.totalorder %s21, 0
      %p86 = por %p84, %p85
      %s87 = ssub.s32 %s22, %s34
      %s88 = ssub.s32 %s23, %s30
      %s89 = sor.u32 %s87, %s88
      %p90 = scmp.eq.s32.totalorder %s89, 0
      %s92 = sadd.s32 %s91, 1
      %s93 = scalar_select %p90, %s91, %s92
      %p96 = pneg %p90
      %p97 = scmp.eq.s32.totalorder %s15, 1
      %p98 = por %p96, %p97
      %p99 = scmp.ne.s32.totalorder %s91, %s94
      %p100 = scmp.eq.s32.totalorder %s15, 0
      %p101 = por %p99, %p100
      %p102 = scmp.ne.s32.totalorder %s91, %s94
      %p103 = scmp.eq.s32.totalorder %s20, 1
      %p104 = por %p102, %p103
      %p105 = scmp.ne.s32.totalorder %s94, %s95
      %p106 = scmp.eq.s32.totalorder %s20, 0
      %p107 = por %p105, %p106
      %p108 = scmp.ne.s32.totalorder %s94, %s95
      %p109 = scmp.eq.s32.totalorder %s21, 1
      %p110 = por %p108, %p109
      %p112 = scmp.ne.s32.totalorder %s95, %s111
      %p113 = scmp.eq.s32.totalorder %s21, 0
      %p114 = por %p112, %p113
      %p115 = scmp.le.s32.totalorder 1, %s15
      %p116 = scmp.lt.s32.totalorder %s15, 3
      %p117 = pnand %p115, %p116
      %p118 = pneg %p117
      // Predicated region
      $region9: #{tpu_custom_call.1} parent=5 // pred_check
        _
      $region10: #{tpu_custom_call.1} parent=5 // pred_check_branch
        %120 = sbr.rel (%p117) target = $region12
      $region11: #{tpu_custom_call.1} parent=5 // pred_region
        %s121 = ssub.s32 %s15, 1
        // Predicated region
        $region13: #{tpu_custom_call.1} parent=11 // pred_check
          %p122 = pneg %p53
        $region14: #{tpu_custom_call.1} parent=11 // pred_check_branch
          %124 = sbr.rel (%p122) target = $region16
        $region15: #{tpu_custom_call.1} parent=11 // pred_region
          %126 = vsyncadd [#allocation3], 0
          %s127 = smul.addr %s24, 2
          %s128 = smul.addr %s127, 8
          %s129 = scalar_lea.hbm %s0, %s128
          %s131 = sshll.u32 %s129, 4
          %s132 = int_to_ptr.hbm [resolvable:$true] %s131
          %s133 = sshll.u32 [#allocation2], 4
          %s134 = int_to_ptr.vmem [resolvable:$true] %s133
          %136 = dma.hbm_to_vmem [thread:$0]  %s132, 256, %s134, [#allocation3]
        $region16: #{tpu_custom_call.1} parent=11 // pred_fallthru
          _
      $region12: #{tpu_custom_call.1} parent=5 // pred_fallthru
        _
      %p137 = scmp.lt.s32.totalorder %s15, 2
      // Predicated region
      $region17: #{tpu_custom_call.1} parent=5 // pred_check
        %p138 = pneg %p137
      $region18: #{tpu_custom_call.1} parent=5 // pred_check_branch
        %140 = sbr.rel (%p138) target = $region20
      $region19: #{tpu_custom_call.1} parent=5 // pred_region
        // Predicated region
        $region21: #{tpu_custom_call.1} parent=19 // pred_check
          %p141 = pneg %p73
        $region22: #{tpu_custom_call.1} parent=19 // pred_check_branch
          %143 = sbr.rel (%p141) target = $region24
        $region23: #{tpu_custom_call.1} parent=19 // pred_region
          %s144 = sand.u32 %s63, 1
          %s145 = scalar_lea.sflag [#allocation6], %s144
          %s146 = sand.u32 %s63, 1
          %s147 = smul.addr %s146, 1024
          %s148 = scalar_lea.vmem [#allocation5], %s147
          %s149 = smul.u32 4, %s23
          %151 = vsyncadd %s145, 0
          %s152 = smul.addr %s149, 8
          %s153 = scalar_lea.hbm %s1, %s152
          %s154 = sshll.u32 %s153, 4
          %s155 = int_to_ptr.hbm [resolvable:$true] %s154
          %s156 = sshll.u32 %s148, 4
          %s157 = int_to_ptr.vmem [resolvable:$true] %s156
          %162 = dma.hbm_to_vmem [thread:$0]  %s155, 16384, %s157, %s145, 1024, 512, 32
        $region24: #{tpu_custom_call.1} parent=19 // pred_fallthru
          _
      $region20: #{tpu_custom_call.1} parent=5 // pred_fallthru
        _
      %p163 = scmp.le.s32.totalorder 1, %s15
      %p164 = scmp.lt.s32.totalorder %s15, 3
      %p165 = pnand %p163, %p164
      %p166 = pneg %p165
      // Predicated region
      $region25: #{tpu_custom_call.1} parent=5 // pred_check
        _
      $region26: #{tpu_custom_call.1} parent=5 // pred_check_branch
        %168 = sbr.rel (%p165) target = $region28
      $region27: #{tpu_custom_call.1} parent=5 // pred_region
        %s169 = ssub.s32 %s15, 1
        // Predicated region
        $region29: #{tpu_custom_call.1} parent=27 // pred_check
          %p170 = pneg %p53
        $region30: #{tpu_custom_call.1} parent=27 // pred_check_branch
          %172 = sbr.rel (%p170) target = $region32
        $region31: #{tpu_custom_call.1} parent=27 // pred_region
          %174 = dma.done [#allocation3], 256
        $region32: #{tpu_custom_call.1} parent=27 // pred_fallthru
          _
        %s175 = sand.u32 %s66, 1
        %s176 = scalar_lea.sflag [#allocation6], %s175
        %s177 = sand.u32 %s66, 1
        %s178 = smul.addr %s177, 1024
        %s179 = scalar_lea.vmem [#allocation5], %s178
        // Predicated region
        $region33: #{tpu_custom_call.1} parent=27 // pred_check
          %p180 = pneg %p79
        $region34: #{tpu_custom_call.1} parent=27 // pred_check_branch
          %182 = sbr.rel (%p180) target = $region36
        $region35: #{tpu_custom_call.1} parent=27 // pred_region
          %184 = dma.done %s176, 16384
        $region36: #{tpu_custom_call.1} parent=27 // pred_fallthru
          _
        %p185 = pneg %p53
        %p186 = pneg %p50
        %s187 = sand.u32 %s66, 1
        %s188 = scalar_lea.sflag [#allocation6], %s187
        %s189 = sand.u32 %s66, 1
        %s190 = smul.addr %s189, 1024
        %s191 = scalar_lea.vmem [#allocation5], %s190
        %p192 = pneg %p79
        %p193 = pneg %p76
        %p194 = pneg %p107
        %p195 = pneg %p104
        %s196 = sand.u32 %s94, 1
        %s197 = scalar_lea.sflag [#allocation4], %s196
        %s198 = sand.u32 %s94, 1
        %s199 = smul.addr %s198, 32
        %s200 = scalar_lea.vmem [#allocation7], %s199
        %s201 = smul.u32 4, %s25
        %s202 = smul.u32 4, %s25
        %v203 = vld [vmem:[#allocation2] sm:$0xff]
        %v204 = vld [vmem:[#allocation2 + $0x8] sm:$0xff]
        %v205 = vld [vmem:[%s179] sm:$0xff]
        %v206 = vld [vmem:[%s179 + $0x8] sm:$0xff]
        %v207 = vld [vmem:[%s179 + $0x10] sm:$0xff]
        %v208 = vld [vmem:[%s179 + $0x18] sm:$0xff]
        %v209 = vld [vmem:[%s179 + $0x20] sm:$0xff]
        %v210 = vld [vmem:[%s179 + $0x28] sm:$0xff]
        %v211 = vld [vmem:[%s179 + $0x30] sm:$0xff]
        %v212 = vld [vmem:[%s179 + $0x38] sm:$0xff]
        %v213 = vld [vmem:[%s179 + $0x40] sm:$0xff]
        %v214 = vld [vmem:[%s179 + $0x48] sm:$0xff]
        %v215 = vld [vmem:[%s179 + $0x50] sm:$0xff]
        %v216 = vld [vmem:[%s179 + $0x58] sm:$0xff]
        %v217 = vld [vmem:[%s179 + $0x60] sm:$0xff]
        %v218 = vld [vmem:[%s179 + $0x68] sm:$0xff]
        %v219 = vld [vmem:[%s179 + $0x70] sm:$0xff]
        %v220 = vld [vmem:[%s179 + $0x78] sm:$0xff]
        %v221 = vld [vmem:[%s179 + $0x80] sm:$0xff]
        %v222 = vld [vmem:[%s179 + $0x88] sm:$0xff]
        %v223 = vld [vmem:[%s179 + $0x90] sm:$0xff]
        %v224 = vld [vmem:[%s179 + $0x98] sm:$0xff]
        %v225 = vld [vmem:[%s179 + $0xa0] sm:$0xff]
        %v226 = vld [vmem:[%s179 + $0xa8] sm:$0xff]
        %v227 = vld [vmem:[%s179 + $0xb0] sm:$0xff]
        %v228 = vld [vmem:[%s179 + $0xb8] sm:$0xff]
        %v229 = vld [vmem:[%s179 + $0xc0] sm:$0xff]
        %v230 = vld [vmem:[%s179 + $0xc8] sm:$0xff]
        %v231 = vld [vmem:[%s179 + $0xd0] sm:$0xff]
        %v232 = vld [vmem:[%s179 + $0xd8] sm:$0xff]
        %v233 = vld [vmem:[%s179 + $0xe0] sm:$0xff]
        %v234 = vld [vmem:[%s179 + $0xe8] sm:$0xff]
        %v235 = vld [vmem:[%s179 + $0xf0] sm:$0xff]
        %v236 = vld [vmem:[%s179 + $0xf8] sm:$0xff]
        %v237 = vld [vmem:[%s179 + $0x100] sm:$0xff]
        %v238 = vld [vmem:[%s179 + $0x108] sm:$0xff]
        %v239 = vld [vmem:[%s179 + $0x110] sm:$0xff]
        %v240 = vld [vmem:[%s179 + $0x118] sm:$0xff]
        %v241 = vld [vmem:[%s179 + $0x120] sm:$0xff]
        %v242 = vld [vmem:[%s179 + $0x128] sm:$0xff]
        %v243 = vld [vmem:[%s179 + $0x130] sm:$0xff]
        %v244 = vld [vmem:[%s179 + $0x138] sm:$0xff]
        %v245 = vld [vmem:[%s179 + $0x140] sm:$0xff]
        %v246 = vld [vmem:[%s179 + $0x148] sm:$0xff]
        %v247 = vld [vmem:[%s179 + $0x150] sm:$0xff]
        %v248 = vld [vmem:[%s179 + $0x158] sm:$0xff]
        %v249 = vld [vmem:[%s179 + $0x160] sm:$0xff]
        %v250 = vld [vmem:[%s179 + $0x168] sm:$0xff]
        %v251 = vld [vmem:[%s179 + $0x170] sm:$0xff]
        %v252 = vld [vmem:[%s179 + $0x178] sm:$0xff]
        %v253 = vld [vmem:[%s179 + $0x180] sm:$0xff]
        %v254 = vld [vmem:[%s179 + $0x188] sm:$0xff]
        %v255 = vld [vmem:[%s179 + $0x190] sm:$0xff]
        %v256 = vld [vmem:[%s179 + $0x198] sm:$0xff]
        %v257 = vld [vmem:[%s179 + $0x1a0] sm:$0xff]
        %v258 = vld [vmem:[%s179 + $0x1a8] sm:$0xff]
        %v259 = vld [vmem:[%s179 + $0x1b0] sm:$0xff]
        %v260 = vld [vmem:[%s179 + $0x1b8] sm:$0xff]
        %v261 = vld [vmem:[%s179 + $0x1c0] sm:$0xff]
        %v262 = vld [vmem:[%s179 + $0x1c8] sm:$0xff]
        %v263 = vld [vmem:[%s179 + $0x1d0] sm:$0xff]
        %v264 = vld [vmem:[%s179 + $0x1d8] sm:$0xff]
        %v265 = vld [vmem:[%s179 + $0x1e0] sm:$0xff]
        %v266 = vld [vmem:[%s179 + $0x1e8] sm:$0xff]
        %v267 = vld [vmem:[%s179 + $0x1f0] sm:$0xff]
        %v268 = vld [vmem:[%s179 + $0x1f8] sm:$0xff]
        %v269 = vld [vmem:[%s179 + $0x200] sm:$0xff]
        %v270 = vld [vmem:[%s179 + $0x208] sm:$0xff]
        %v271 = vld [vmem:[%s179 + $0x210] sm:$0xff]
        %v272 = vld [vmem:[%s179 + $0x218] sm:$0xff]
        %v273 = vld [vmem:[%s179 + $0x220] sm:$0xff]
        %v274 = vld [vmem:[%s179 + $0x228] sm:$0xff]
        %v275 = vld [vmem:[%s179 + $0x230] sm:$0xff]
        %v276 = vld [vmem:[%s179 + $0x238] sm:$0xff]
        %v277 = vld [vmem:[%s179 + $0x240] sm:$0xff]
        %v278 = vld [vmem:[%s179 + $0x248] sm:$0xff]
        %v279 = vld [vmem:[%s179 + $0x250] sm:$0xff]
        %v280 = vld [vmem:[%s179 + $0x258] sm:$0xff]
        %v281 = vld [vmem:[%s179 + $0x260] sm:$0xff]
        %v282 = vld [vmem:[%s179 + $0x268] sm:$0xff]
        %v283 = vld [vmem:[%s179 + $0x270] sm:$0xff]
        %v284 = vld [vmem:[%s179 + $0x278] sm:$0xff]
        %v285 = vld [vmem:[%s179 + $0x280] sm:$0xff]
        %v286 = vld [vmem:[%s179 + $0x288] sm:$0xff]
        %v287 = vld [vmem:[%s179 + $0x290] sm:$0xff]
        %v288 = vld [vmem:[%s179 + $0x298] sm:$0xff]
        %v289 = vld [vmem:[%s179 + $0x2a0] sm:$0xff]
        %v290 = vld [vmem:[%s179 + $0x2a8] sm:$0xff]
        %v291 = vld [vmem:[%s179 + $0x2b0] sm:$0xff]
        %v292 = vld [vmem:[%s179 + $0x2b8] sm:$0xff]
        %v293 = vld [vmem:[%s179 + $0x2c0] sm:$0xff]
        %v294 = vld [vmem:[%s179 + $0x2c8] sm:$0xff]
        %v295 = vld [vmem:[%s179 + $0x2d0] sm:$0xff]
        %v296 = vld [vmem:[%s179 + $0x2d8] sm:$0xff]
        %v297 = vld [vmem:[%s179 + $0x2e0] sm:$0xff]
        %v298 = vld [vmem:[%s179 + $0x2e8] sm:$0xff]
        %v299 = vld [vmem:[%s179 + $0x2f0] sm:$0xff]
        %v300 = vld [vmem:[%s179 + $0x2f8] sm:$0xff]
        %v301 = vld [vmem:[%s179 + $0x300] sm:$0xff]
        %v302 = vld [vmem:[%s179 + $0x308] sm:$0xff]
        %v303 = vld [vmem:[%s179 + $0x310] sm:$0xff]
        %v304 = vld [vmem:[%s179 + $0x318] sm:$0xff]
        %v305 = vld [vmem:[%s179 + $0x320] sm:$0xff]
        %v306 = vld [vmem:[%s179 + $0x328] sm:$0xff]
        %v307 = vld [vmem:[%s179 + $0x330] sm:$0xff]
        %v308 = vld [vmem:[%s179 + $0x338] sm:$0xff]
        %v309 = vld [vmem:[%s179 + $0x340] sm:$0xff]
        %v310 = vld [vmem:[%s179 + $0x348] sm:$0xff]
        %v311 = vld [vmem:[%s179 + $0x350] sm:$0xff]
        %v312 = vld [vmem:[%s179 + $0x358] sm:$0xff]
        %v313 = vld [vmem:[%s179 + $0x360] sm:$0xff]
        %v314 = vld [vmem:[%s179 + $0x368] sm:$0xff]
        %v315 = vld [vmem:[%s179 + $0x370] sm:$0xff]
        %v316 = vld [vmem:[%s179 + $0x378] sm:$0xff]
        %v317 = vld [vmem:[%s179 + $0x380] sm:$0xff]
        %v318 = vld [vmem:[%s179 + $0x388] sm:$0xff]
        %v319 = vld [vmem:[%s179 + $0x390] sm:$0xff]
        %v320 = vld [vmem:[%s179 + $0x398] sm:$0xff]
        %v321 = vld [vmem:[%s179 + $0x3a0] sm:$0xff]
        %v322 = vld [vmem:[%s179 + $0x3a8] sm:$0xff]
        %v323 = vld [vmem:[%s179 + $0x3b0] sm:$0xff]
        %v324 = vld [vmem:[%s179 + $0x3b8] sm:$0xff]
        %v325 = vld [vmem:[%s179 + $0x3c0] sm:$0xff]
        %v326 = vld [vmem:[%s179 + $0x3c8] sm:$0xff]
        %v327 = vld [vmem:[%s179 + $0x3d0] sm:$0xff]
        %v328 = vld [vmem:[%s179 + $0x3d8] sm:$0xff]
        %v329 = vld [vmem:[%s179 + $0x3e0] sm:$0xff]
        %v330 = vld [vmem:[%s179 + $0x3e8] sm:$0xff]
        %v331 = vld [vmem:[%s179 + $0x3f0] sm:$0xff]
        %v332 = vld [vmem:[%s179 + $0x3f8] sm:$0xff]
        %v333 = vand.u32 %v265, 4294901760
        %334 = vmatpush.msra.mxu0 %v333
        %v335 = vand.u32 %v261, 4294901760
        %336 = vmatpush.msra.mxu0 %v335
        %v337 = vand.u32 %v257, 4294901760
        %338 = vmatpush.msra.mxu0 %v337
        %v339 = vand.u32 %v253, 4294901760
        %340 = vmatpush.msra.mxu0 %v339
        %v341 = vand.u32 %v249, 4294901760
        %342 = vmatpush.msra.mxu0 %v341
        %v343 = vand.u32 %v245, 4294901760
        %344 = vmatpush.msra.mxu0 %v343
        %v345 = vand.u32 %v241, 4294901760
        %346 = vmatpush.msra.mxu0 %v345
        %v347 = vand.u32 %v237, 4294901760
        %348 = vmatpush.msra.mxu0 %v347
        %v349 = vand.u32 %v233, 4294901760
        %350 = vmatpush.msra.mxu0 %v349
        %v351 = vand.u32 %v229, 4294901760
        %352 = vmatpush.msra.mxu0 %v351
        %v353 = vand.u32 %v225, 4294901760
        %354 = vmatpush.msra.mxu0 %v353
        %v355 = vand.u32 %v221, 4294901760
        %356 = vmatpush.msra.mxu0 %v355
        %v357 = vand.u32 %v217, 4294901760
        %358 = vmatpush.msra.mxu0 %v357
        %v359 = vand.u32 %v213, 4294901760
        %360 = vmatpush.msra.mxu0 %v359
        %v361 = vand.u32 %v209, 4294901760
        %362 = vmatpush.msra.mxu0 %v361
        %v363 = vand.u32 %v205, 4294901760
        %364 = vmatpush.msra.mxu0 %v363
        %v365 = vand.u32 %v203, 4294901760
        %v366 = vsub.f32 %v203, %v365
        %v367 = vand.u32 %v366, 4294901760
        %v368 = vsub.f32 %v366, %v367
        %v369 = vand.u32 %v368, 4294901760
        %370 = vmatmul.f32.gmra.mxu0 %v369
        %v371 = vpop.f32.mrf.mxu0
        %v372 = vadd.f32 0.0, %v371
        %373 = vdwg.mxu0
        %v374 = vand.u32 %v265, 4294901760
        %v375 = vsub.f32 %v265, %v374
        %v376 = vand.u32 %v375, 4294901760
        %v377 = vsub.f32 %v375, %v376
        %v378 = vand.u32 %v377, 4294901760
        %379 = vmatpush.msra.mxu0 %v378
        %v380 = vand.u32 %v261, 4294901760
        %v381 = vsub.f32 %v261, %v380
        %v382 = vand.u32 %v381, 4294901760
        %v383 = vsub.f32 %v381, %v382
        %v384 = vand.u32 %v383, 4294901760
        %385 = vmatpush.msra.mxu0 %v384
        %v386 = vand.u32 %v257, 4294901760
        %v387 = vsub.f32 %v257, %v386
        %v388 = vand.u32 %v387, 4294901760
        %v389 = vsub.f32 %v387, %v388
        %v390 = vand.u32 %v389, 4294901760
        %391 = vmatpush.msra.mxu0 %v390
        %v392 = vand.u32 %v253, 4294901760
        %v393 = vsub.f32 %v253, %v392
        %v394 = vand.u32 %v393, 4294901760
        %v395 = vsub.f32 %v393, %v394
        %v396 = vand.u32 %v395, 4294901760
        %397 = vmatpush.msra.mxu0 %v396
        %v398 = vand.u32 %v249, 4294901760
        %v399 = vsub.f32 %v249, %v398
        %v400 = vand.u32 %v399, 4294901760
        %v401 = vsub.f32 %v399, %v400
        %v402 = vand.u32 %v401, 4294901760
        %403 = vmatpush.msra.mxu0 %v402
        %v404 = vand.u32 %v245, 4294901760
        %v405 = vsub.f32 %v245, %v404
        %v406 = vand.u32 %v405, 4294901760
        %v407 = vsub.f32 %v405, %v406
        %v408 = vand.u32 %v407, 4294901760
        %409 = vmatpush.msra.mxu0 %v408
        %v410 = vand.u32 %v241, 4294901760
        %v411 = vsub.f32 %v241, %v410
        %v412 = vand.u32 %v411, 4294901760
        %v413 = vsub.f32 %v411, %v412
        %v414 = vand.u32 %v413, 4294901760
        %415 = vmatpush.msra.mxu0 %v414
        %v416 = vand.u32 %v237, 4294901760
        %v417 = vsub.f32 %v237, %v416
        %v418 = vand.u32 %v417, 4294901760
        %v419 = vsub.f32 %v417, %v418
        %v420 = vand.u32 %v419, 4294901760
        %421 = vmatpush.msra.mxu0 %v420
        %v422 = vand.u32 %v233, 4294901760
        %v423 = vsub.f32 %v233, %v422
        %v424 = vand.u32 %v423, 4294901760
        %v425 = vsub.f32 %v423, %v424
        %v426 = vand.u32 %v425, 4294901760
        %427 = vmatpush.msra.mxu0 %v426
        %v428 = vand.u32 %v229, 4294901760
        %v429 = vsub.f32 %v229, %v428
        %v430 = vand.u32 %v429, 4294901760
        %v431 = vsub.f32 %v429, %v430
        %v432 = vand.u32 %v431, 4294901760
        %433 = vmatpush.msra.mxu0 %v432
        %v434 = vand.u32 %v225, 4294901760
        %v435 = vsub.f32 %v225, %v434
        %v436 = vand.u32 %v435, 4294901760
        %v437 = vsub.f32 %v435, %v436
        %v438 = vand.u32 %v437, 4294901760
        %439 = vmatpush.msra.mxu0 %v438
        %v440 = vand.u32 %v221, 4294901760
        %v441 = vsub.f32 %v221, %v440
        %v442 = vand.u32 %v441, 4294901760
        %v443 = vsub.f32 %v441, %v442
        %v444 = vand.u32 %v443, 4294901760
        %445 = vmatpush.msra.mxu0 %v444
        %v446 = vand.u32 %v217, 4294901760
        %v447 = vsub.f32 %v217, %v446
        %v448 = vand.u32 %v447, 4294901760
        %v449 = vsub.f32 %v447, %v448
        %v450 = vand.u32 %v449, 4294901760
        %451 = vmatpush.msra.mxu0 %v450
        %v452 = vand.u32 %v213, 4294901760
        %v453 = vsub.f32 %v213, %v452
        %v454 = vand.u32 %v453, 4294901760
        %v455 = vsub.f32 %v453, %v454
        %v456 = vand.u32 %v455, 4294901760
        %457 = vmatpush.msra.mxu0 %v456
        %v458 = vand.u32 %v209, 4294901760
        %v459 = vsub.f32 %v209, %v458
        %v460 = vand.u32 %v459, 4294901760
        %v461 = vsub.f32 %v459, %v460
        %v462 = vand.u32 %v461, 4294901760
        %463 = vmatpush.msra.mxu0 %v462
        %v464 = vand.u32 %v205, 4294901760
        %v465 = vsub.f32 %v205, %v464
        %v466 = vand.u32 %v465, 4294901760
        %v467 = vsub.f32 %v465, %v466
        %v468 = vand.u32 %v467, 4294901760
        %469 = vmatpush.msra.mxu0 %v468
        %v470 = vand.u32 %v203, 4294901760
        %471 = vmatmul.f32.gmra.mxu0 %v470
        %v472 = vpop.f32.mrf.mxu0
        %v473 = vadd.f32 %v372, %v472
        %474 = vdwg.mxu0
        %v475 = vand.u32 %v265, 4294901760
        %v476 = vsub.f32 %v265, %v475
        %477 = vmatpush.msra.mxu0 %v476
        %v478 = vand.u32 %v261, 4294901760
        %v479 = vsub.f32 %v261, %v478
        %480 = vmatpush.msra.mxu0 %v479
        %v481 = vand.u32 %v257, 4294901760
        %v482 = vsub.f32 %v257, %v481
        %483 = vmatpush.msra.mxu0 %v482
        %v484 = vand.u32 %v253, 4294901760
        %v485 = vsub.f32 %v253, %v484
        %486 = vmatpush.msra.mxu0 %v485
        %v487 = vand.u32 %v249, 4294901760
        %v488 = vsub.f32 %v249, %v487
        %489 = vmatpush.msra.mxu0 %v488
        %v490 = vand.u32 %v245, 4294901760
        %v491 = vsub.f32 %v245, %v490
        %492 = vmatpush.msra.mxu0 %v491
        %v493 = vand.u32 %v241, 4294901760
        %v494 = vsub.f32 %v241, %v493
        %495 = vmatpush.msra.mxu0 %v494
        %v496 = vand.u32 %v237, 4294901760
        %v497 = vsub.f32 %v237, %v496
        %498 = vmatpush.msra.mxu0 %v497
        %v499 = vand.u32 %v233, 4294901760
        %v500 = vsub.f32 %v233, %v499
        %501 = vmatpush.msra.mxu0 %v500
        %v502 = vand.u32 %v229, 4294901760
        %v503 = vsub.f32 %v229, %v502
        %504 = vmatpush.msra.mxu0 %v503
        %v505 = vand.u32 %v225, 4294901760
        %v506 = vsub.f32 %v225, %v505
        %507 = vmatpush.msra.mxu0 %v506
        %v508 = vand.u32 %v221, 4294901760
        %v509 = vsub.f32 %v221, %v508
        %510 = vmatpush.msra.mxu0 %v509
        %v511 = vand.u32 %v217, 4294901760
        %v512 = vsub.f32 %v217, %v511
        %513 = vmatpush.msra.mxu0 %v512
        %v514 = vand.u32 %v213, 4294901760
        %v515 = vsub.f32 %v213, %v514
        %516 = vmatpush.msra.mxu0 %v515
        %v517 = vand.u32 %v209, 4294901760
        %v518 = vsub.f32 %v209, %v517
        %519 = vmatpush.msra.mxu0 %v518
        %v520 = vand.u32 %v205, 4294901760
        %v521 = vsub.f32 %v205, %v520
        %522 = vmatpush.msra.mxu0 %v521
        %v523 = vand.u32 %v203, 4294901760
        %v524 = vsub.f32 %v203, %v523
        %525 = vmatmul.f32.gmra.mxu0 %v524
        %v526 = vpop.f32.mrf.mxu0
        %v527 = vadd.f32 %v473, %v526
        %528 = vdwg.mxu0
        %v529 = vand.u32 %v265, 4294901760
        %530 = vmatpush.msra.mxu0 %v529
        %v531 = vand.u32 %v261, 4294901760
        %532 = vmatpush.msra.mxu0 %v531
        %v533 = vand.u32 %v257, 4294901760
        %534 = vmatpush.msra.mxu0 %v533
        %v535 = vand.u32 %v253, 4294901760
        %536 = vmatpush.msra.mxu0 %v535
        %v537 = vand.u32 %v249, 4294901760
        %538 = vmatpush.msra.mxu0 %v537
        %v539 = vand.u32 %v245, 4294901760
        %540 = vmatpush.msra.mxu0 %v539
        %v541 = vand.u32 %v241, 4294901760
        %542 = vmatpush.msra.mxu0 %v541
        %v543 = vand.u32 %v237, 4294901760
        %544 = vmatpush.msra.mxu0 %v543
        %v545 = vand.u32 %v233, 4294901760
        %546 = vmatpush.msra.mxu0 %v545
        %v547 = vand.u32 %v229, 4294901760
        %548 = vmatpush.msra.mxu0 %v547
        %v549 = vand.u32 %v225, 4294901760
        %550 = vmatpush.msra.mxu0 %v549
        %v551 = vand.u32 %v221, 4294901760
        %552 = vmatpush.msra.mxu0 %v551
        %v553 = vand.u32 %v217, 4294901760
        %554 = vmatpush.msra.mxu0 %v553
        %v555 = vand.u32 %v213, 4294901760
        %556 = vmatpush.msra.mxu0 %v555
        %v557 = vand.u32 %v209, 4294901760
        %558 = vmatpush.msra.mxu0 %v557
        %v559 = vand.u32 %v205, 4294901760
        %560 = vmatpush.msra.mxu0 %v559
        %v561 = vand.u32 %v203, 4294901760
        %v562 = vsub.f32 %v203, %v561
        %v563 = vand.u32 %v562, 4294901760
        %564 = vmatmul.f32.gmra.mxu0 %v563
        %v565 = vpop.f32.mrf.mxu0
        %v566 = vadd.f32 %v527, %v565
        %567 = vdwg.mxu0
        %v568 = vand.u32 %v265, 4294901760
        %v569 = vsub.f32 %v265, %v568
        %v570 = vand.u32 %v569, 4294901760
        %571 = vmatpush.msra.mxu0 %v570
        %v572 = vand.u32 %v261, 4294901760
        %v573 = vsub.f32 %v261, %v572
        %v574 = vand.u32 %v573, 4294901760
        %575 = vmatpush.msra.mxu0 %v574
        %v576 = vand.u32 %v257, 4294901760
        %v577 = vsub.f32 %v257, %v576
        %v578 = vand.u32 %v577, 4294901760
        %579 = vmatpush.msra.mxu0 %v578
        %v580 = vand.u32 %v253, 4294901760
        %v581 = vsub.f32 %v253, %v580
        %v582 = vand.u32 %v581, 4294901760
        %583 = vmatpush.msra.mxu0 %v582
        %v584 = vand.u32 %v249, 4294901760
        %v585 = vsub.f32 %v249, %v584
        %v586 = vand.u32 %v585, 4294901760
        %587 = vmatpush.msra.mxu0 %v586
        %v588 = vand.u32 %v245, 4294901760
        %v589 = vsub.f32 %v245, %v588
        %v590 = vand.u32 %v589, 4294901760
        %591 = vmatpush.msra.mxu0 %v590
        %v592 = vand.u32 %v241, 4294901760
        %v593 = vsub.f32 %v241, %v592
        %v594 = vand.u32 %v593, 4294901760
        %595 = vmatpush.msra.mxu0 %v594
        %v596 = vand.u32 %v237, 4294901760
        %v597 = vsub.f32 %v237, %v596
        %v598 = vand.u32 %v597, 4294901760
        %599 = vmatpush.msra.mxu0 %v598
        %v600 = vand.u32 %v233, 4294901760
        %v601 = vsub.f32 %v233, %v600
        %v602 = vand.u32 %v601, 4294901760
        %603 = vmatpush.msra.mxu0 %v602
        %v604 = vand.u32 %v229, 4294901760
        %v605 = vsub.f32 %v229, %v604
        %v606 = vand.u32 %v605, 4294901760
        %607 = vmatpush.msra.mxu0 %v606
        %v608 = vand.u32 %v225, 4294901760
        %v609 = vsub.f32 %v225, %v608
        %v610 = vand.u32 %v609, 4294901760
        %611 = vmatpush.msra.mxu0 %v610
        %v612 = vand.u32 %v221, 4294901760
        %v613 = vsub.f32 %v221, %v612
        %v614 = vand.u32 %v613, 4294901760
        %615 = vmatpush.msra.mxu0 %v614
        %v616 = vand.u32 %v217, 4294901760
        %v617 = vsub.f32 %v217, %v616
        %v618 = vand.u32 %v617, 4294901760
        %619 = vmatpush.msra.mxu0 %v618
        %v620 = vand.u32 %v213, 4294901760
        %v621 = vsub.f32 %v213, %v620
        %v622 = vand.u32 %v621, 4294901760
        %623 = vmatpush.msra.mxu0 %v622
        %v624 = vand.u32 %v209, 4294901760
        %v625 = vsub.f32 %v209, %v624
        %v626 = vand.u32 %v625, 4294901760
        %627 = vmatpush.msra.mxu0 %v626
        %v628 = vand.u32 %v205, 4294901760
        %v629 = vsub.f32 %v205, %v628
        %v630 = vand.u32 %v629, 4294901760
        %631 = vmatpush.msra.mxu0 %v630
        %v632 = vand.u32 %v203, 4294901760
        %633 = vmatmul.f32.gmra.mxu0 %v632
        %v634 = vpop.f32.mrf.mxu0
        %v635 = vadd.f32 %v566, %v634
        %636 = vdwg.mxu0
        %v637 = vand.u32 %v265, 4294901760
        %638 = vmatpush.msra.mxu0 %v637
        %v639 = vand.u32 %v261, 4294901760
        %640 = vmatpush.msra.mxu0 %v639
        %v641 = vand.u32 %v257, 4294901760
        %642 = vmatpush.msra.mxu0 %v641
        %v643 = vand.u32 %v253, 4294901760
        %644 = vmatpush.msra.mxu0 %v643
        %v645 = vand.u32 %v249, 4294901760
        %646 = vmatpush.msra.mxu0 %v645
        %v647 = vand.u32 %v245, 4294901760
        %648 = vmatpush.msra.mxu0 %v647
        %v649 = vand.u32 %v241, 4294901760
        %650 = vmatpush.msra.mxu0 %v649
        %v651 = vand.u32 %v237, 4294901760
        %652 = vmatpush.msra.mxu0 %v651
        %v653 = vand.u32 %v233, 4294901760
        %654 = vmatpush.msra.mxu0 %v653
        %v655 = vand.u32 %v229, 4294901760
        %656 = vmatpush.msra.mxu0 %v655
        %v657 = vand.u32 %v225, 4294901760
        %658 = vmatpush.msra.mxu0 %v657
        %v659 = vand.u32 %v221, 4294901760
        %660 = vmatpush.msra.mxu0 %v659
        %v661 = vand.u32 %v217, 4294901760
        %662 = vmatpush.msra.mxu0 %v661
        %v663 = vand.u32 %v213, 4294901760
        %664 = vmatpush.msra.mxu0 %v663
        %v665 = vand.u32 %v209, 4294901760
        %666 = vmatpush.msra.mxu0 %v665
        %v667 = vand.u32 %v205, 4294901760
        %668 = vmatpush.msra.mxu0 %v667
        %v669 = vand.u32 %v203, 4294901760
        %670 = vmatmul.f32.gmra.mxu0 %v669
        %v671 = vpop.f32.mrf.mxu0
        %v672 = vadd.f32 %v635, %v671
        %673 = vdwg.mxu0
        %v674 = vand.u32 %v329, 4294901760
        %675 = vmatpush.msra.mxu0 %v674
        %v676 = vand.u32 %v325, 4294901760
        %677 = vmatpush.msra.mxu0 %v676
        %v678 = vand.u32 %v321, 4294901760
        %679 = vmatpush.msra.mxu0 %v678
        %v680 = vand.u32 %v317, 4294901760
        %681 = vmatpush.msra.mxu0 %v680
        %v682 = vand.u32 %v313, 4294901760
        %683 = vmatpush.msra.mxu0 %v682
        %v684 = vand.u32 %v309, 4294901760
        %685 = vmatpush.msra.mxu0 %v684
        %v686 = vand.u32 %v305, 4294901760
        %687 = vmatpush.msra.mxu0 %v686
        %v688 = vand.u32 %v301, 4294901760
        %689 = vmatpush.msra.mxu0 %v688
        %v690 = vand.u32 %v297, 4294901760
        %691 = vmatpush.msra.mxu0 %v690
        %v692 = vand.u32 %v293, 4294901760
        %693 = vmatpush.msra.mxu0 %v692
        %v694 = vand.u32 %v289, 4294901760
        %695 = vmatpush.msra.mxu0 %v694
        %v696 = vand.u32 %v285, 4294901760
        %697 = vmatpush.msra.mxu0 %v696
        %v698 = vand.u32 %v281, 4294901760
        %699 = vmatpush.msra.mxu0 %v698
        %v700 = vand.u32 %v277, 4294901760
        %701 = vmatpush.msra.mxu0 %v700
        %v702 = vand.u32 %v273, 4294901760
        %703 = vmatpush.msra.mxu0 %v702
        %v704 = vand.u32 %v269, 4294901760
        %705 = vmatpush.msra.mxu0 %v704
        %v706 = vand.u32 %v204, 4294901760
        %v707 = vsub.f32 %v204, %v706
        %v708 = vand.u32 %v707, 4294901760
        %v709 = vsub.f32 %v707, %v708
        %v710 = vand.u32 %v709, 4294901760
        %711 = vmatmul.f32.gmra.mxu0 %v710
        %v712 = vpop.f32.mrf.mxu0
        %v713 = vadd.f32 %v672, %v712
        %714 = vdwg.mxu0
        %v715 = vand.u32 %v329, 4294901760
        %v716 = vsub.f32 %v329, %v715
        %v717 = vand.u32 %v716, 4294901760
        %v718 = vsub.f32 %v716, %v717
        %v719 = vand.u32 %v718, 4294901760
        %720 = vmatpush.msra.mxu0 %v719
        %v721 = vand.u32 %v325, 4294901760
        %v722 = vsub.f32 %v325, %v721
        %v723 = vand.u32 %v722, 4294901760
        %v724 = vsub.f32 %v722, %v723
        %v725 = vand.u32 %v724, 4294901760
        %726 = vmatpush.msra.mxu0 %v725
        %v727 = vand.u32 %v321, 4294901760
        %v728 = vsub.f32 %v321, %v727
        %v729 = vand.u32 %v728, 4294901760
        %v730 = vsub.f32 %v728, %v729
        %v731 = vand.u32 %v730, 4294901760
        %732 = vmatpush.msra.mxu0 %v731
        %v733 = vand.u32 %v317, 4294901760
        %v734 = vsub.f32 %v317, %v733
        %v735 = vand.u32 %v734, 4294901760
        %v736 = vsub.f32 %v734, %v735
        %v737 = vand.u32 %v736, 4294901760
        %738 = vmatpush.msra.mxu0 %v737
        %v739 = vand.u32 %v313, 4294901760
        %v740 = vsub.f32 %v313, %v739
        %v741 = vand.u32 %v740, 4294901760
        %v742 = vsub.f32 %v740, %v741
        %v743 = vand.u32 %v742, 4294901760
        %744 = vmatpush.msra.mxu0 %v743
        %v745 = vand.u32 %v309, 4294901760
        %v746 = vsub.f32 %v309, %v745
        %v747 = vand.u32 %v746, 4294901760
        %v748 = vsub.f32 %v746, %v747
        %v749 = vand.u32 %v748, 4294901760
        %750 = vmatpush.msra.mxu0 %v749
        %v751 = vand.u32 %v305, 4294901760
        %v752 = vsub.f32 %v305, %v751
        %v753 = vand.u32 %v752, 4294901760
        %v754 = vsub.f32 %v752, %v753
        %v755 = vand.u32 %v754, 4294901760
        %756 = vmatpush.msra.mxu0 %v755
        %v757 = vand.u32 %v301, 4294901760
        %v758 = vsub.f32 %v301, %v757
        %v759 = vand.u32 %v758, 4294901760
        %v760 = vsub.f32 %v758, %v759
        %v761 = vand.u32 %v760, 4294901760
        %762 = vmatpush.msra.mxu0 %v761
        %v763 = vand.u32 %v297, 4294901760
        %v764 = vsub.f32 %v297, %v763
        %v765 = vand.u32 %v764, 4294901760
        %v766 = vsub.f32 %v764, %v765
        %v767 = vand.u32 %v766, 4294901760
        %768 = vmatpush.msra.mxu0 %v767
        %v769 = vand.u32 %v293, 4294901760
        %v770 = vsub.f32 %v293, %v769
        %v771 = vand.u32 %v770, 4294901760
        %v772 = vsub.f32 %v770, %v771
        %v773 = vand.u32 %v772, 4294901760
        %774 = vmatpush.msra.mxu0 %v773
        %v775 = vand.u32 %v289, 4294901760
        %v776 = vsub.f32 %v289, %v775
        %v777 = vand.u32 %v776, 4294901760
        %v778 = vsub.f32 %v776, %v777
        %v779 = vand.u32 %v778, 4294901760
        %780 = vmatpush.msra.mxu0 %v779
        %v781 = vand.u32 %v285, 4294901760
        %v782 = vsub.f32 %v285, %v781
        %v783 = vand.u32 %v782, 4294901760
        %v784 = vsub.f32 %v782, %v783
        %v785 = vand.u32 %v784, 4294901760
        %786 = vmatpush.msra.mxu0 %v785
        %v787 = vand.u32 %v281, 4294901760
        %v788 = vsub.f32 %v281, %v787
        %v789 = vand.u32 %v788, 4294901760
        %v790 = vsub.f32 %v788, %v789
        %v791 = vand.u32 %v790, 4294901760
        %792 = vmatpush.msra.mxu0 %v791
        %v793 = vand.u32 %v277, 4294901760
        %v794 = vsub.f32 %v277, %v793
        %v795 = vand.u32 %v794, 4294901760
        %v796 = vsub.f32 %v794, %v795
        %v797 = vand.u32 %v796, 4294901760
        %798 = vmatpush.msra.mxu0 %v797
        %v799 = vand.u32 %v273, 4294901760
        %v800 = vsub.f32 %v273, %v799
        %v801 = vand.u32 %v800, 4294901760
        %v802 = vsub.f32 %v800, %v801
        %v803 = vand.u32 %v802, 4294901760
        %804 = vmatpush.msra.mxu0 %v803
        %v805 = vand.u32 %v269, 4294901760
        %v806 = vsub.f32 %v269, %v805
        %v807 = vand.u32 %v806, 4294901760
        %v808 = vsub.f32 %v806, %v807
        %v809 = vand.u32 %v808, 4294901760
        %810 = vmatpush.msra.mxu0 %v809
        %v811 = vand.u32 %v204, 4294901760
        %812 = vmatmul.f32.gmra.mxu0 %v811
        %v813 = vpop.f32.mrf.mxu0
        %v814 = vadd.f32 %v713, %v813
        %815 = vdwg.mxu0
        %v816 = vand.u32 %v329, 4294901760
        %v817 = vsub.f32 %v329, %v816
        %818 = vmatpush.msra.mxu0 %v817
        %v819 = vand.u32 %v325, 4294901760
        %v820 = vsub.f32 %v325, %v819
        %821 = vmatpush.msra.mxu0 %v820
        %v822 = vand.u32 %v321, 4294901760
        %v823 = vsub.f32 %v321, %v822
        %824 = vmatpush.msra.mxu0 %v823
        %v825 = vand.u32 %v317, 4294901760
        %v826 = vsub.f32 %v317, %v825
        %827 = vmatpush.msra.mxu0 %v826
        %v828 = vand.u32 %v313, 4294901760
        %v829 = vsub.f32 %v313, %v828
        %830 = vmatpush.msra.mxu0 %v829
        %v831 = vand.u32 %v309, 4294901760
        %v832 = vsub.f32 %v309, %v831
        %833 = vmatpush.msra.mxu0 %v832
        %v834 = vand.u32 %v305, 4294901760
        %v835 = vsub.f32 %v305, %v834
        %836 = vmatpush.msra.mxu0 %v835
        %v837 = vand.u32 %v301, 4294901760
        %v838 = vsub.f32 %v301, %v837
        %839 = vmatpush.msra.mxu0 %v838
        %v840 = vand.u32 %v297, 4294901760
        %v841 = vsub.f32 %v297, %v840
        %842 = vmatpush.msra.mxu0 %v841
        %v843 = vand.u32 %v293, 4294901760
        %v844 = vsub.f32 %v293, %v843
        %845 = vmatpush.msra.mxu0 %v844
        %v846 = vand.u32 %v289, 4294901760
        %v847 = vsub.f32 %v289, %v846
        %848 = vmatpush.msra.mxu0 %v847
        %v849 = vand.u32 %v285, 4294901760
        %v850 = vsub.f32 %v285, %v849
        %851 = vmatpush.msra.mxu0 %v850
        %v852 = vand.u32 %v281, 4294901760
        %v853 = vsub.f32 %v281, %v852
        %854 = vmatpush.msra.mxu0 %v853
        %v855 = vand.u32 %v277, 4294901760
        %v856 = vsub.f32 %v277, %v855
        %857 = vmatpush.msra.mxu0 %v856
        %v858 = vand.u32 %v273, 4294901760
        %v859 = vsub.f32 %v273, %v858
        %860 = vmatpush.msra.mxu0 %v859
        %v861 = vand.u32 %v269, 4294901760
        %v862 = vsub.f32 %v269, %v861
        %863 = vmatpush.msra.mxu0 %v862
        %v864 = vand.u32 %v204, 4294901760
        %v865 = vsub.f32 %v204, %v864
        %866 = vmatmul.f32.gmra.mxu0 %v865
        %v867 = vpop.f32.mrf.mxu0
        %v868 = vadd.f32 %v814, %v867
        %869 = vdwg.mxu0
        %v870 = vand.u32 %v329, 4294901760
        %871 = vmatpush.msra.mxu0 %v870
        %v872 = vand.u32 %v325, 4294901760
        %873 = vmatpush.msra.mxu0 %v872
        %v874 = vand.u32 %v321, 4294901760
        %875 = vmatpush.msra.mxu0 %v874
        %v876 = vand.u32 %v317, 4294901760
        %877 = vmatpush.msra.mxu0 %v876
        %v878 = vand.u32 %v313, 4294901760
        %879 = vmatpush.msra.mxu0 %v878
        %v880 = vand.u32 %v309, 4294901760
        %881 = vmatpush.msra.mxu0 %v880
        %v882 = vand.u32 %v305, 4294901760
        %883 = vmatpush.msra.mxu0 %v882
        %v884 = vand.u32 %v301, 4294901760
        %885 = vmatpush.msra.mxu0 %v884
        %v886 = vand.u32 %v297, 4294901760
        %887 = vmatpush.msra.mxu0 %v886
        %v888 = vand.u32 %v293, 4294901760
        %889 = vmatpush.msra.mxu0 %v888
        %v890 = vand.u32 %v289, 4294901760
        %891 = vmatpush.msra.mxu0 %v890
        %v892 = vand.u32 %v285, 4294901760
        %893 = vmatpush.msra.mxu0 %v892
        %v894 = vand.u32 %v281, 4294901760
        %895 = vmatpush.msra.mxu0 %v894
        %v896 = vand.u32 %v277, 4294901760
        %897 = vmatpush.msra.mxu0 %v896
        %v898 = vand.u32 %v273, 4294901760
        %899 = vmatpush.msra.mxu0 %v898
        %v900 = vand.u32 %v269, 4294901760
        %901 = vmatpush.msra.mxu0 %v900
        %v902 = vand.u32 %v204, 4294901760
        %v903 = vsub.f32 %v204, %v902
        %v904 = vand.u32 %v903, 4294901760
        %905 = vmatmul.f32.gmra.mxu0 %v904
        %v906 = vpop.f32.mrf.mxu0
        %v907 = vadd.f32 %v868, %v906
        %908 = vdwg.mxu0
        %v909 = vand.u32 %v329, 4294901760
        %v910 = vsub.f32 %v329, %v909
        %v911 = vand.u32 %v910, 4294901760
        %912 = vmatpush.msra.mxu0 %v911
        %v913 = vand.u32 %v325, 4294901760
        %v914 = vsub.f32 %v325, %v913
        %v915 = vand.u32 %v914, 4294901760
        %916 = vmatpush.msra.mxu0 %v915
        %v917 = vand.u32 %v321, 4294901760
        %v918 = vsub.f32 %v321, %v917
        %v919 = vand.u32 %v918, 4294901760
        %920 = vmatpush.msra.mxu0 %v919
        %v921 = vand.u32 %v317, 4294901760
        %v922 = vsub.f32 %v317, %v921
        %v923 = vand.u32 %v922, 4294901760
        %924 = vmatpush.msra.mxu0 %v923
        %v925 = vand.u32 %v313, 4294901760
        %v926 = vsub.f32 %v313, %v925
        %v927 = vand.u32 %v926, 4294901760
        %928 = vmatpush.msra.mxu0 %v927
        %v929 = vand.u32 %v309, 4294901760
        %v930 = vsub.f32 %v309, %v929
        %v931 = vand.u32 %v930, 4294901760
        %932 = vmatpush.msra.mxu0 %v931
        %v933 = vand.u32 %v305, 4294901760
        %v934 = vsub.f32 %v305, %v933
        %v935 = vand.u32 %v934, 4294901760
        %936 = vmatpush.msra.mxu0 %v935
        %v937 = vand.u32 %v301, 4294901760
        %v938 = vsub.f32 %v301, %v937
        %v939 = vand.u32 %v938, 4294901760
        %940 = vmatpush.msra.mxu0 %v939
        %v941 = vand.u32 %v297, 4294901760
        %v942 = vsub.f32 %v297, %v941
        %v943 = vand.u32 %v942, 4294901760
        %944 = vmatpush.msra.mxu0 %v943
        %v945 = vand.u32 %v293, 4294901760
        %v946 = vsub.f32 %v293, %v945
        %v947 = vand.u32 %v946, 4294901760
        %948 = vmatpush.msra.mxu0 %v947
        %v949 = vand.u32 %v289, 4294901760
        %v950 = vsub.f32 %v289, %v949
        %v951 = vand.u32 %v950, 4294901760
        %952 = vmatpush.msra.mxu0 %v951
        %v953 = vand.u32 %v285, 4294901760
        %v954 = vsub.f32 %v285, %v953
        %v955 = vand.u32 %v954, 4294901760
        %956 = vmatpush.msra.mxu0 %v955
        %v957 = vand.u32 %v281, 4294901760
        %v958 = vsub.f32 %v281, %v957
        %v959 = vand.u32 %v958, 4294901760
        %960 = vmatpush.msra.mxu0 %v959
        %v961 = vand.u32 %v277, 4294901760
        %v962 = vsub.f32 %v277, %v961
        %v963 = vand.u32 %v962, 4294901760
        %964 = vmatpush.msra.mxu0 %v963
        %v965 = vand.u32 %v273, 4294901760
        %v966 = vsub.f32 %v273, %v965
        %v967 = vand.u32 %v966, 4294901760
        %968 = vmatpush.msra.mxu0 %v967
        %v969 = vand.u32 %v269, 4294901760
        %v970 = vsub.f32 %v269, %v969
        %v971 = vand.u32 %v970, 4294901760
        %972 = vmatpush.msra.mxu0 %v971
        %v973 = vand.u32 %v204, 4294901760
        %974 = vmatmul.f32.gmra.mxu0 %v973
        %v975 = vpop.f32.mrf.mxu0
        %v976 = vadd.f32 %v907, %v975
        %977 = vdwg.mxu0
        %v978 = vand.u32 %v329, 4294901760
        %979 = vmatpush.msra.mxu0 %v978
        %v980 = vand.u32 %v325, 4294901760
        %981 = vmatpush.msra.mxu0 %v980
        %v982 = vand.u32 %v321, 4294901760
        %983 = vmatpush.msra.mxu0 %v982
        %v984 = vand.u32 %v317, 4294901760
        %985 = vmatpush.msra.mxu0 %v984
        %v986 = vand.u32 %v313, 4294901760
        %987 = vmatpush.msra.mxu0 %v986
        %v988 = vand.u32 %v309, 4294901760
        %989 = vmatpush.msra.mxu0 %v988
        %v990 = vand.u32 %v305, 4294901760
        %991 = vmatpush.msra.mxu0 %v990
        %v992 = vand.u32 %v301, 4294901760
        %993 = vmatpush.msra.mxu0 %v992
        %v994 = vand.u32 %v297, 4294901760
        %995 = vmatpush.msra.mxu0 %v994
        %v996 = vand.u32 %v293, 4294901760
        %997 = vmatpush.msra.mxu0 %v996
        %v998 = vand.u32 %v289, 4294901760
        %999 = vmatpush.msra.mxu0 %v998
        %v1000 = vand.u32 %v285, 4294901760
        %1001 = vmatpush.msra.mxu0 %v1000
        %v1002 = vand.u32 %v281, 4294901760
        %1003 = vmatpush.msra.mxu0 %v1002
        %v1004 = vand.u32 %v277, 4294901760
        %1005 = vmatpush.msra.mxu0 %v1004
        %v1006 = vand.u32 %v273, 4294901760
        %1007 = vmatpush.msra.mxu0 %v1006
        %v1008 = vand.u32 %v269, 4294901760
        %1009 = vmatpush.msra.mxu0 %v1008
        %v1010 = vand.u32 %v204, 4294901760
        %1011 = vmatmul.f32.gmra.mxu0 %v1010
        %v1012 = vpop.f32.mrf.mxu0
        %v1013 = vadd.f32 %v976, %v1012
        %1014 = vdwg.mxu0
        %v1015 = vand.u32 %v266, 4294901760
        %1016 = vmatpush.msra.mxu0 %v1015
        %v1017 = vand.u32 %v262, 4294901760
        %1018 = vmatpush.msra.mxu0 %v1017
        %v1019 = vand.u32 %v258, 4294901760
        %1020 = vmatpush.msra.mxu0 %v1019
        %v1021 = vand.u32 %v254, 4294901760
        %1022 = vmatpush.msra.mxu0 %v1021
        %v1023 = vand.u32 %v250, 4294901760
        %1024 = vmatpush.msra.mxu0 %v1023
        %v1025 = vand.u32 %v246, 4294901760
        %1026 = vmatpush.msra.mxu0 %v1025
        %v1027 = vand.u32 %v242, 4294901760
        %1028 = vmatpush.msra.mxu0 %v1027
        %v1029 = vand.u32 %v238, 4294901760
        %1030 = vmatpush.msra.mxu0 %v1029
        %v1031 = vand.u32 %v234, 4294901760
        %1032 = vmatpush.msra.mxu0 %v1031
        %v1033 = vand.u32 %v230, 4294901760
        %1034 = vmatpush.msra.mxu0 %v1033
        %v1035 = vand.u32 %v226, 4294901760
        %1036 = vmatpush.msra.mxu0 %v1035
        %v1037 = vand.u32 %v222, 4294901760
        %1038 = vmatpush.msra.mxu0 %v1037
        %v1039 = vand.u32 %v218, 4294901760
        %1040 = vmatpush.msra.mxu0 %v1039
        %v1041 = vand.u32 %v214, 4294901760
        %1042 = vmatpush.msra.mxu0 %v1041
        %v1043 = vand.u32 %v210, 4294901760
        %1044 = vmatpush.msra.mxu0 %v1043
        %v1045 = vand.u32 %v206, 4294901760
        %1046 = vmatpush.msra.mxu0 %v1045
        %v1047 = vand.u32 %v203, 4294901760
        %v1048 = vsub.f32 %v203, %v1047
        %v1049 = vand.u32 %v1048, 4294901760
        %v1050 = vsub.f32 %v1048, %v1049
        %v1051 = vand.u32 %v1050, 4294901760
        %1052 = vmatmul.f32.gmra.mxu0 %v1051
        %v1053 = vpop.f32.mrf.mxu0
        %v1054 = vadd.f32 0.0, %v1053
        %1055 = vdwg.mxu0
        %v1056 = vand.u32 %v266, 4294901760
        %v1057 = vsub.f32 %v266, %v1056
        %v1058 = vand.u32 %v1057, 4294901760
        %v1059 = vsub.f32 %v1057, %v1058
        %v1060 = vand.u32 %v1059, 4294901760
        %1061 = vmatpush.msra.mxu0 %v1060
        %v1062 = vand.u32 %v262, 4294901760
        %v1063 = vsub.f32 %v262, %v1062
        %v1064 = vand.u32 %v1063, 4294901760
        %v1065 = vsub.f32 %v1063, %v1064
        %v1066 = vand.u32 %v1065, 4294901760
        %1067 = vmatpush.msra.mxu0 %v1066
        %v1068 = vand.u32 %v258, 4294901760
        %v1069 = vsub.f32 %v258, %v1068
        %v1070 = vand.u32 %v1069, 4294901760
        %v1071 = vsub.f32 %v1069, %v1070
        %v1072 = vand.u32 %v1071, 4294901760
        %1073 = vmatpush.msra.mxu0 %v1072
        %v1074 = vand.u32 %v254, 4294901760
        %v1075 = vsub.f32 %v254, %v1074
        %v1076 = vand.u32 %v1075, 4294901760
        %v1077 = vsub.f32 %v1075, %v1076
        %v1078 = vand.u32 %v1077, 4294901760
        %1079 = vmatpush.msra.mxu0 %v1078
        %v1080 = vand.u32 %v250, 4294901760
        %v1081 = vsub.f32 %v250, %v1080
        %v1082 = vand.u32 %v1081, 4294901760
        %v1083 = vsub.f32 %v1081, %v1082
        %v1084 = vand.u32 %v1083, 4294901760
        %1085 = vmatpush.msra.mxu0 %v1084
        %v1086 = vand.u32 %v246, 4294901760
        %v1087 = vsub.f32 %v246, %v1086
        %v1088 = vand.u32 %v1087, 4294901760
        %v1089 = vsub.f32 %v1087, %v1088
        %v1090 = vand.u32 %v1089, 4294901760
        %1091 = vmatpush.msra.mxu0 %v1090
        %v1092 = vand.u32 %v242, 4294901760
        %v1093 = vsub.f32 %v242, %v1092
        %v1094 = vand.u32 %v1093, 4294901760
        %v1095 = vsub.f32 %v1093, %v1094
        %v1096 = vand.u32 %v1095, 4294901760
        %1097 = vmatpush.msra.mxu0 %v1096
        %v1098 = vand.u32 %v238, 4294901760
        %v1099 = vsub.f32 %v238, %v1098
        %v1100 = vand.u32 %v1099, 4294901760
        %v1101 = vsub.f32 %v1099, %v1100
        %v1102 = vand.u32 %v1101, 4294901760
        %1103 = vmatpush.msra.mxu0 %v1102
        %v1104 = vand.u32 %v234, 4294901760
        %v1105 = vsub.f32 %v234, %v1104
        %v1106 = vand.u32 %v1105, 4294901760
        %v1107 = vsub.f32 %v1105, %v1106
        %v1108 = vand.u32 %v1107, 4294901760
        %1109 = vmatpush.msra.mxu0 %v1108
        %v1110 = vand.u32 %v230, 4294901760
        %v1111 = vsub.f32 %v230, %v1110
        %v1112 = vand.u32 %v1111, 4294901760
        %v1113 = vsub.f32 %v1111, %v1112
        %v1114 = vand.u32 %v1113, 4294901760
        %1115 = vmatpush.msra.mxu0 %v1114
        %v1116 = vand.u32 %v226, 4294901760
        %v1117 = vsub.f32 %v226, %v1116
        %v1118 = vand.u32 %v1117, 4294901760
        %v1119 = vsub.f32 %v1117, %v1118
        %v1120 = vand.u32 %v1119, 4294901760
        %1121 = vmatpush.msra.mxu0 %v1120
        %v1122 = vand.u32 %v222, 4294901760
        %v1123 = vsub.f32 %v222, %v1122
        %v1124 = vand.u32 %v1123, 4294901760
        %v1125 = vsub.f32 %v1123, %v1124
        %v1126 = vand.u32 %v1125, 4294901760
        %1127 = vmatpush.msra.mxu0 %v1126
        %v1128 = vand.u32 %v218, 4294901760
        %v1129 = vsub.f32 %v218, %v1128
        %v1130 = vand.u32 %v1129, 4294901760
        %v1131 = vsub.f32 %v1129, %v1130
        %v1132 = vand.u32 %v1131, 4294901760
        %1133 = vmatpush.msra.mxu0 %v1132
        %v1134 = vand.u32 %v214, 4294901760
        %v1135 = vsub.f32 %v214, %v1134
        %v1136 = vand.u32 %v1135, 4294901760
        %v1137 = vsub.f32 %v1135, %v1136
        %v1138 = vand.u32 %v1137, 4294901760
        %1139 = vmatpush.msra.mxu0 %v1138
        %v1140 = vand.u32 %v210, 4294901760
        %v1141 = vsub.f32 %v210, %v1140
        %v1142 = vand.u32 %v1141, 4294901760
        %v1143 = vsub.f32 %v1141, %v1142
        %v1144 = vand.u32 %v1143, 4294901760
        %1145 = vmatpush.msra.mxu0 %v1144
        %v1146 = vand.u32 %v206, 4294901760
        %v1147 = vsub.f32 %v206, %v1146
        %v1148 = vand.u32 %v1147, 4294901760
        %v1149 = vsub.f32 %v1147, %v1148
        %v1150 = vand.u32 %v1149, 4294901760
        %1151 = vmatpush.msra.mxu0 %v1150
        %v1152 = vand.u32 %v203, 4294901760
        %1153 = vmatmul.f32.gmra.mxu0 %v1152
        %v1154 = vpop.f32.mrf.mxu0
        %v1155 = vadd.f32 %v1054, %v1154
        %1156 = vdwg.mxu0
        %v1157 = vand.u32 %v266, 4294901760
        %v1158 = vsub.f32 %v266, %v1157
        %1159 = vmatpush.msra.mxu0 %v1158
        %v1160 = vand.u32 %v262, 4294901760
        %v1161 = vsub.f32 %v262, %v1160
        %1162 = vmatpush.msra.mxu0 %v1161
        %v1163 = vand.u32 %v258, 4294901760
        %v1164 = vsub.f32 %v258, %v1163
        %1165 = vmatpush.msra.mxu0 %v1164
        %v1166 = vand.u32 %v254, 4294901760
        %v1167 = vsub.f32 %v254, %v1166
        %1168 = vmatpush.msra.mxu0 %v1167
        %v1169 = vand.u32 %v250, 4294901760
        %v1170 = vsub.f32 %v250, %v1169
        %1171 = vmatpush.msra.mxu0 %v1170
        %v1172 = vand.u32 %v246, 4294901760
        %v1173 = vsub.f32 %v246, %v1172
        %1174 = vmatpush.msra.mxu0 %v1173
        %v1175 = vand.u32 %v242, 4294901760
        %v1176 = vsub.f32 %v242, %v1175
        %1177 = vmatpush.msra.mxu0 %v1176
        %v1178 = vand.u32 %v238, 4294901760
        %v1179 = vsub.f32 %v238, %v1178
        %1180 = vmatpush.msra.mxu0 %v1179
        %v1181 = vand.u32 %v234, 4294901760
        %v1182 = vsub.f32 %v234, %v1181
        %1183 = vmatpush.msra.mxu0 %v1182
        %v1184 = vand.u32 %v230, 4294901760
        %v1185 = vsub.f32 %v230, %v1184
        %1186 = vmatpush.msra.mxu0 %v1185
        %v1187 = vand.u32 %v226, 4294901760
        %v1188 = vsub.f32 %v226, %v1187
        %1189 = vmatpush.msra.mxu0 %v1188
        %v1190 = vand.u32 %v222, 4294901760
        %v1191 = vsub.f32 %v222, %v1190
        %1192 = vmatpush.msra.mxu0 %v1191
        %v1193 = vand.u32 %v218, 4294901760
        %v1194 = vsub.f32 %v218, %v1193
        %1195 = vmatpush.msra.mxu0 %v1194
        %v1196 = vand.u32 %v214, 4294901760
        %v1197 = vsub.f32 %v214, %v1196
        %1198 = vmatpush.msra.mxu0 %v1197
        %v1199 = vand.u32 %v210, 4294901760
        %v1200 = vsub.f32 %v210, %v1199
        %1201 = vmatpush.msra.mxu0 %v1200
        %v1202 = vand.u32 %v206, 4294901760
        %v1203 = vsub.f32 %v206, %v1202
        %1204 = vmatpush.msra.mxu0 %v1203
        %v1205 = vand.u32 %v203, 4294901760
        %v1206 = vsub.f32 %v203, %v1205
        %1207 = vmatmul.f32.gmra.mxu0 %v1206
        %v1208 = vpop.f32.mrf.mxu0
        %v1209 = vadd.f32 %v1155, %v1208
        %1210 = vdwg.mxu0
        %v1211 = vand.u32 %v266, 4294901760
        %1212 = vmatpush.msra.mxu0 %v1211
        %v1213 = vand.u32 %v262, 4294901760
        %1214 = vmatpush.msra.mxu0 %v1213
        %v1215 = vand.u32 %v258, 4294901760
        %1216 = vmatpush.msra.mxu0 %v1215
        %v1217 = vand.u32 %v254, 4294901760
        %1218 = vmatpush.msra.mxu0 %v1217
        %v1219 = vand.u32 %v250, 4294901760
        %1220 = vmatpush.msra.mxu0 %v1219
        %v1221 = vand.u32 %v246, 4294901760
        %1222 = vmatpush.msra.mxu0 %v1221
        %v1223 = vand.u32 %v242, 4294901760
        %1224 = vmatpush.msra.mxu0 %v1223
        %v1225 = vand.u32 %v238, 4294901760
        %1226 = vmatpush.msra.mxu0 %v1225
        %v1227 = vand.u32 %v234, 4294901760
        %1228 = vmatpush.msra.mxu0 %v1227
        %v1229 = vand.u32 %v230, 4294901760
        %1230 = vmatpush.msra.mxu0 %v1229
        %v1231 = vand.u32 %v226, 4294901760
        %1232 = vmatpush.msra.mxu0 %v1231
        %v1233 = vand.u32 %v222, 4294901760
        %1234 = vmatpush.msra.mxu0 %v1233
        %v1235 = vand.u32 %v218, 4294901760
        %1236 = vmatpush.msra.mxu0 %v1235
        %v1237 = vand.u32 %v214, 4294901760
        %1238 = vmatpush.msra.mxu0 %v1237
        %v1239 = vand.u32 %v210, 4294901760
        %1240 = vmatpush.msra.mxu0 %v1239
        %v1241 = vand.u32 %v206, 4294901760
        %1242 = vmatpush.msra.mxu0 %v1241
        %v1243 = vand.u32 %v203, 4294901760
        %v1244 = vsub.f32 %v203, %v1243
        %v1245 = vand.u32 %v1244, 4294901760
        %1246 = vmatmul.f32.gmra.mxu0 %v1245
        %v1247 = vpop.f32.mrf.mxu0
        %v1248 = vadd.f32 %v1209, %v1247
        %1249 = vdwg.mxu0
        %v1250 = vand.u32 %v266, 4294901760
        %v1251 = vsub.f32 %v266, %v1250
        %v1252 = vand.u32 %v1251, 4294901760
        %1253 = vmatpush.msra.mxu0 %v1252
        %v1254 = vand.u32 %v262, 4294901760
        %v1255 = vsub.f32 %v262, %v1254
        %v1256 = vand.u32 %v1255, 4294901760
        %1257 = vmatpush.msra.mxu0 %v1256
        %v1258 = vand.u32 %v258, 4294901760
        %v1259 = vsub.f32 %v258, %v1258
        %v1260 = vand.u32 %v1259, 4294901760
        %1261 = vmatpush.msra.mxu0 %v1260
        %v1262 = vand.u32 %v254, 4294901760
        %v1263 = vsub.f32 %v254, %v1262
        %v1264 = vand.u32 %v1263, 4294901760
        %1265 = vmatpush.msra.mxu0 %v1264
        %v1266 = vand.u32 %v250, 4294901760
        %v1267 = vsub.f32 %v250, %v1266
        %v1268 = vand.u32 %v1267, 4294901760
        %1269 = vmatpush.msra.mxu0 %v1268
        %v1270 = vand.u32 %v246, 4294901760
        %v1271 = vsub.f32 %v246, %v1270
        %v1272 = vand.u32 %v1271, 4294901760
        %1273 = vmatpush.msra.mxu0 %v1272
        %v1274 = vand.u32 %v242, 4294901760
        %v1275 = vsub.f32 %v242, %v1274
        %v1276 = vand.u32 %v1275, 4294901760
        %1277 = vmatpush.msra.mxu0 %v1276
        %v1278 = vand.u32 %v238, 4294901760
        %v1279 = vsub.f32 %v238, %v1278
        %v1280 = vand.u32 %v1279, 4294901760
        %1281 = vmatpush.msra.mxu0 %v1280
        %v1282 = vand.u32 %v234, 4294901760
        %v1283 = vsub.f32 %v234, %v1282
        %v1284 = vand.u32 %v1283, 4294901760
        %1285 = vmatpush.msra.mxu0 %v1284
        %v1286 = vand.u32 %v230, 4294901760
        %v1287 = vsub.f32 %v230, %v1286
        %v1288 = vand.u32 %v1287, 4294901760
        %1289 = vmatpush.msra.mxu0 %v1288
        %v1290 = vand.u32 %v226, 4294901760
        %v1291 = vsub.f32 %v226, %v1290
        %v1292 = vand.u32 %v1291, 4294901760
        %1293 = vmatpush.msra.mxu0 %v1292
        %v1294 = vand.u32 %v222, 4294901760
        %v1295 = vsub.f32 %v222, %v1294
        %v1296 = vand.u32 %v1295, 4294901760
        %1297 = vmatpush.msra.mxu0 %v1296
        %v1298 = vand.u32 %v218, 4294901760
        %v1299 = vsub.f32 %v218, %v1298
        %v1300 = vand.u32 %v1299, 4294901760
        %1301 = vmatpush.msra.mxu0 %v1300
        %v1302 = vand.u32 %v214, 4294901760
        %v1303 = vsub.f32 %v214, %v1302
        %v1304 = vand.u32 %v1303, 4294901760
        %1305 = vmatpush.msra.mxu0 %v1304
        %v1306 = vand.u32 %v210, 4294901760
        %v1307 = vsub.f32 %v210, %v1306
        %v1308 = vand.u32 %v1307, 4294901760
        %1309 = vmatpush.msra.mxu0 %v1308
        %v1310 = vand.u32 %v206, 4294901760
        %v1311 = vsub.f32 %v206, %v1310
        %v1312 = vand.u32 %v1311, 4294901760
        %1313 = vmatpush.msra.mxu0 %v1312
        %v1314 = vand.u32 %v203, 4294901760
        %1315 = vmatmul.f32.gmra.mxu0 %v1314
        %v1316 = vpop.f32.mrf.mxu0
        %v1317 = vadd.f32 %v1248, %v1316
        %1318 = vdwg.mxu0
        %v1319 = vand.u32 %v266, 4294901760
        %1320 = vmatpush.msra.mxu0 %v1319
        %v1321 = vand.u32 %v262, 4294901760
        %1322 = vmatpush.msra.mxu0 %v1321
        %v1323 = vand.u32 %v258, 4294901760
        %1324 = vmatpush.msra.mxu0 %v1323
        %v1325 = vand.u32 %v254, 4294901760
        %1326 = vmatpush.msra.mxu0 %v1325
        %v1327 = vand.u32 %v250, 4294901760
        %1328 = vmatpush.msra.mxu0 %v1327
        %v1329 = vand.u32 %v246, 4294901760
        %1330 = vmatpush.msra.mxu0 %v1329
        %v1331 = vand.u32 %v242, 4294901760
        %1332 = vmatpush.msra.mxu0 %v1331
        %v1333 = vand.u32 %v238, 4294901760
        %1334 = vmatpush.msra.mxu0 %v1333
        %v1335 = vand.u32 %v234, 4294901760
        %1336 = vmatpush.msra.mxu0 %v1335
        %v1337 = vand.u32 %v230, 4294901760
        %1338 = vmatpush.msra.mxu0 %v1337
        %v1339 = vand.u32 %v226, 4294901760
        %1340 = vmatpush.msra.mxu0 %v1339
        %v1341 = vand.u32 %v222, 4294901760
        %1342 = vmatpush.msra.mxu0 %v1341
        %v1343 = vand.u32 %v218, 4294901760
        %1344 = vmatpush.msra.mxu0 %v1343
        %v1345 = vand.u32 %v214, 4294901760
        %1346 = vmatpush.msra.mxu0 %v1345
        %v1347 = vand.u32 %v210, 4294901760
        %1348 = vmatpush.msra.mxu0 %v1347
        %v1349 = vand.u32 %v206, 4294901760
        %1350 = vmatpush.msra.mxu0 %v1349
        %v1351 = vand.u32 %v203, 4294901760
        %1352 = vmatmul.f32.gmra.mxu0 %v1351
        %v1353 = vpop.f32.mrf.mxu0
        %v1354 = vadd.f32 %v1317, %v1353
        %1355 = vdwg.mxu0
        %v1356 = vand.u32 %v330, 4294901760
        %1357 = vmatpush.msra.mxu0 %v1356
        %v1358 = vand.u32 %v326, 4294901760
        %1359 = vmatpush.msra.mxu0 %v1358
        %v1360 = vand.u32 %v322, 4294901760
        %1361 = vmatpush.msra.mxu0 %v1360
        %v1362 = vand.u32 %v318, 4294901760
        %1363 = vmatpush.msra.mxu0 %v1362
        %v1364 = vand.u32 %v314, 4294901760
        %1365 = vmatpush.msra.mxu0 %v1364
        %v1366 = vand.u32 %v310, 4294901760
        %1367 = vmatpush.msra.mxu0 %v1366
        %v1368 = vand.u32 %v306, 4294901760
        %1369 = vmatpush.msra.mxu0 %v1368
        %v1370 = vand.u32 %v302, 4294901760
        %1371 = vmatpush.msra.mxu0 %v1370
        %v1372 = vand.u32 %v298, 4294901760
        %1373 = vmatpush.msra.mxu0 %v1372
        %v1374 = vand.u32 %v294, 4294901760
        %1375 = vmatpush.msra.mxu0 %v1374
        %v1376 = vand.u32 %v290, 4294901760
        %1377 = vmatpush.msra.mxu0 %v1376
        %v1378 = vand.u32 %v286, 4294901760
        %1379 = vmatpush.msra.mxu0 %v1378
        %v1380 = vand.u32 %v282, 4294901760
        %1381 = vmatpush.msra.mxu0 %v1380
        %v1382 = vand.u32 %v278, 4294901760
        %1383 = vmatpush.msra.mxu0 %v1382
        %v1384 = vand.u32 %v274, 4294901760
        %1385 = vmatpush.msra.mxu0 %v1384
        %v1386 = vand.u32 %v270, 4294901760
        %1387 = vmatpush.msra.mxu0 %v1386
        %v1388 = vand.u32 %v204, 4294901760
        %v1389 = vsub.f32 %v204, %v1388
        %v1390 = vand.u32 %v1389, 4294901760
        %v1391 = vsub.f32 %v1389, %v1390
        %v1392 = vand.u32 %v1391, 4294901760
        %1393 = vmatmul.f32.gmra.mxu0 %v1392
        %v1394 = vpop.f32.mrf.mxu0
        %v1395 = vadd.f32 %v1354, %v1394
        %1396 = vdwg.mxu0
        %v1397 = vand.u32 %v330, 4294901760
        %v1398 = vsub.f32 %v330, %v1397
        %v1399 = vand.u32 %v1398, 4294901760
        %v1400 = vsub.f32 %v1398, %v1399
        %v1401 = vand.u32 %v1400, 4294901760
        %1402 = vmatpush.msra.mxu0 %v1401
        %v1403 = vand.u32 %v326, 4294901760
        %v1404 = vsub.f32 %v326, %v1403
        %v1405 = vand.u32 %v1404, 4294901760
        %v1406 = vsub.f32 %v1404, %v1405
        %v1407 = vand.u32 %v1406, 4294901760
        %1408 = vmatpush.msra.mxu0 %v1407
        %v1409 = vand.u32 %v322, 4294901760
        %v1410 = vsub.f32 %v322, %v1409
        %v1411 = vand.u32 %v1410, 4294901760
        %v1412 = vsub.f32 %v1410, %v1411
        %v1413 = vand.u32 %v1412, 4294901760
        %1414 = vmatpush.msra.mxu0 %v1413
        %v1415 = vand.u32 %v318, 4294901760
        %v1416 = vsub.f32 %v318, %v1415
        %v1417 = vand.u32 %v1416, 4294901760
        %v1418 = vsub.f32 %v1416, %v1417
        %v1419 = vand.u32 %v1418, 4294901760
        %1420 = vmatpush.msra.mxu0 %v1419
        %v1421 = vand.u32 %v314, 4294901760
        %v1422 = vsub.f32 %v314, %v1421
        %v1423 = vand.u32 %v1422, 4294901760
        %v1424 = vsub.f32 %v1422, %v1423
        %v1425 = vand.u32 %v1424, 4294901760
        %1426 = vmatpush.msra.mxu0 %v1425
        %v1427 = vand.u32 %v310, 4294901760
        %v1428 = vsub.f32 %v310, %v1427
        %v1429 = vand.u32 %v1428, 4294901760
        %v1430 = vsub.f32 %v1428, %v1429
        %v1431 = vand.u32 %v1430, 4294901760
        %1432 = vmatpush.msra.mxu0 %v1431
        %v1433 = vand.u32 %v306, 4294901760
        %v1434 = vsub.f32 %v306, %v1433
        %v1435 = vand.u32 %v1434, 4294901760
        %v1436 = vsub.f32 %v1434, %v1435
        %v1437 = vand.u32 %v1436, 4294901760
        %1438 = vmatpush.msra.mxu0 %v1437
        %v1439 = vand.u32 %v302, 4294901760
        %v1440 = vsub.f32 %v302, %v1439
        %v1441 = vand.u32 %v1440, 4294901760
        %v1442 = vsub.f32 %v1440, %v1441
        %v1443 = vand.u32 %v1442, 4294901760
        %1444 = vmatpush.msra.mxu0 %v1443
        %v1445 = vand.u32 %v298, 4294901760
        %v1446 = vsub.f32 %v298, %v1445
        %v1447 = vand.u32 %v1446, 4294901760
        %v1448 = vsub.f32 %v1446, %v1447
        %v1449 = vand.u32 %v1448, 4294901760
        %1450 = vmatpush.msra.mxu0 %v1449
        %v1451 = vand.u32 %v294, 4294901760
        %v1452 = vsub.f32 %v294, %v1451
        %v1453 = vand.u32 %v1452, 4294901760
        %v1454 = vsub.f32 %v1452, %v1453
        %v1455 = vand.u32 %v1454, 4294901760
        %1456 = vmatpush.msra.mxu0 %v1455
        %v1457 = vand.u32 %v290, 4294901760
        %v1458 = vsub.f32 %v290, %v1457
        %v1459 = vand.u32 %v1458, 4294901760
        %v1460 = vsub.f32 %v1458, %v1459
        %v1461 = vand.u32 %v1460, 4294901760
        %1462 = vmatpush.msra.mxu0 %v1461
        %v1463 = vand.u32 %v286, 4294901760
        %v1464 = vsub.f32 %v286, %v1463
        %v1465 = vand.u32 %v1464, 4294901760
        %v1466 = vsub.f32 %v1464, %v1465
        %v1467 = vand.u32 %v1466, 4294901760
        %1468 = vmatpush.msra.mxu0 %v1467
        %v1469 = vand.u32 %v282, 4294901760
        %v1470 = vsub.f32 %v282, %v1469
        %v1471 = vand.u32 %v1470, 4294901760
        %v1472 = vsub.f32 %v1470, %v1471
        %v1473 = vand.u32 %v1472, 4294901760
        %1474 = vmatpush.msra.mxu0 %v1473
        %v1475 = vand.u32 %v278, 4294901760
        %v1476 = vsub.f32 %v278, %v1475
        %v1477 = vand.u32 %v1476, 4294901760
        %v1478 = vsub.f32 %v1476, %v1477
        %v1479 = vand.u32 %v1478, 4294901760
        %1480 = vmatpush.msra.mxu0 %v1479
        %v1481 = vand.u32 %v274, 4294901760
        %v1482 = vsub.f32 %v274, %v1481
        %v1483 = vand.u32 %v1482, 4294901760
        %v1484 = vsub.f32 %v1482, %v1483
        %v1485 = vand.u32 %v1484, 4294901760
        %1486 = vmatpush.msra.mxu0 %v1485
        %v1487 = vand.u32 %v270, 4294901760
        %v1488 = vsub.f32 %v270, %v1487
        %v1489 = vand.u32 %v1488, 4294901760
        %v1490 = vsub.f32 %v1488, %v1489
        %v1491 = vand.u32 %v1490, 4294901760
        %1492 = vmatpush.msra.mxu0 %v1491
        %v1493 = vand.u32 %v204, 4294901760
        %1494 = vmatmul.f32.gmra.mxu0 %v1493
        %v1495 = vpop.f32.mrf.mxu0
        %v1496 = vadd.f32 %v1395, %v1495
        %1497 = vdwg.mxu0
        %v1498 = vand.u32 %v330, 4294901760
        %v1499 = vsub.f32 %v330, %v1498
        %1500 = vmatpush.msra.mxu0 %v1499
        %v1501 = vand.u32 %v326, 4294901760
        %v1502 = vsub.f32 %v326, %v1501
        %1503 = vmatpush.msra.mxu0 %v1502
        %v1504 = vand.u32 %v322, 4294901760
        %v1505 = vsub.f32 %v322, %v1504
        %1506 = vmatpush.msra.mxu0 %v1505
        %v1507 = vand.u32 %v318, 4294901760
        %v1508 = vsub.f32 %v318, %v1507
        %1509 = vmatpush.msra.mxu0 %v1508
        %v1510 = vand.u32 %v314, 4294901760
        %v1511 = vsub.f32 %v314, %v1510
        %1512 = vmatpush.msra.mxu0 %v1511
        %v1513 = vand.u32 %v310, 4294901760
        %v1514 = vsub.f32 %v310, %v1513
        %1515 = vmatpush.msra.mxu0 %v1514
        %v1516 = vand.u32 %v306, 4294901760
        %v1517 = vsub.f32 %v306, %v1516
        %1518 = vmatpush.msra.mxu0 %v1517
        %v1519 = vand.u32 %v302, 4294901760
        %v1520 = vsub.f32 %v302, %v1519
        %1521 = vmatpush.msra.mxu0 %v1520
        %v1522 = vand.u32 %v298, 4294901760
        %v1523 = vsub.f32 %v298, %v1522
        %1524 = vmatpush.msra.mxu0 %v1523
        %v1525 = vand.u32 %v294, 4294901760
        %v1526 = vsub.f32 %v294, %v1525
        %1527 = vmatpush.msra.mxu0 %v1526
        %v1528 = vand.u32 %v290, 4294901760
        %v1529 = vsub.f32 %v290, %v1528
        %1530 = vmatpush.msra.mxu0 %v1529
        %v1531 = vand.u32 %v286, 4294901760
        %v1532 = vsub.f32 %v286, %v1531
        %1533 = vmatpush.msra.mxu0 %v1532
        %v1534 = vand.u32 %v282, 4294901760
        %v1535 = vsub.f32 %v282, %v1534
        %1536 = vmatpush.msra.mxu0 %v1535
        %v1537 = vand.u32 %v278, 4294901760
        %v1538 = vsub.f32 %v278, %v1537
        %1539 = vmatpush.msra.mxu0 %v1538
        %v1540 = vand.u32 %v274, 4294901760
        %v1541 = vsub.f32 %v274, %v1540
        %1542 = vmatpush.msra.mxu0 %v1541
        %v1543 = vand.u32 %v270, 4294901760
        %v1544 = vsub.f32 %v270, %v1543
        %1545 = vmatpush.msra.mxu0 %v1544
        %v1546 = vand.u32 %v204, 4294901760
        %v1547 = vsub.f32 %v204, %v1546
        %1548 = vmatmul.f32.gmra.mxu0 %v1547
        %v1549 = vpop.f32.mrf.mxu0
        %v1550 = vadd.f32 %v1496, %v1549
        %1551 = vdwg.mxu0
        %v1552 = vand.u32 %v330, 4294901760
        %1553 = vmatpush.msra.mxu0 %v1552
        %v1554 = vand.u32 %v326, 4294901760
        %1555 = vmatpush.msra.mxu0 %v1554
        %v1556 = vand.u32 %v322, 4294901760
        %1557 = vmatpush.msra.mxu0 %v1556
        %v1558 = vand.u32 %v318, 4294901760
        %1559 = vmatpush.msra.mxu0 %v1558
        %v1560 = vand.u32 %v314, 4294901760
        %1561 = vmatpush.msra.mxu0 %v1560
        %v1562 = vand.u32 %v310, 4294901760
        %1563 = vmatpush.msra.mxu0 %v1562
        %v1564 = vand.u32 %v306, 4294901760
        %1565 = vmatpush.msra.mxu0 %v1564
        %v1566 = vand.u32 %v302, 4294901760
        %1567 = vmatpush.msra.mxu0 %v1566
        %v1568 = vand.u32 %v298, 4294901760
        %1569 = vmatpush.msra.mxu0 %v1568
        %v1570 = vand.u32 %v294, 4294901760
        %1571 = vmatpush.msra.mxu0 %v1570
        %v1572 = vand.u32 %v290, 4294901760
        %1573 = vmatpush.msra.mxu0 %v1572
        %v1574 = vand.u32 %v286, 4294901760
        %1575 = vmatpush.msra.mxu0 %v1574
        %v1576 = vand.u32 %v282, 4294901760
        %1577 = vmatpush.msra.mxu0 %v1576
        %v1578 = vand.u32 %v278, 4294901760
        %1579 = vmatpush.msra.mxu0 %v1578
        %v1580 = vand.u32 %v274, 4294901760
        %1581 = vmatpush.msra.mxu0 %v1580
        %v1582 = vand.u32 %v270, 4294901760
        %1583 = vmatpush.msra.mxu0 %v1582
        %v1584 = vand.u32 %v204, 4294901760
        %v1585 = vsub.f32 %v204, %v1584
        %v1586 = vand.u32 %v1585, 4294901760
        %1587 = vmatmul.f32.gmra.mxu0 %v1586
        %v1588 = vpop.f32.mrf.mxu0
        %v1589 = vadd.f32 %v1550, %v1588
        %1590 = vdwg.mxu0
        %v1591 = vand.u32 %v330, 4294901760
        %v1592 = vsub.f32 %v330, %v1591
        %v1593 = vand.u32 %v1592, 4294901760
        %1594 = vmatpush.msra.mxu0 %v1593
        %v1595 = vand.u32 %v326, 4294901760
        %v1596 = vsub.f32 %v326, %v1595
        %v1597 = vand.u32 %v1596, 4294901760
        %1598 = vmatpush.msra.mxu0 %v1597
        %v1599 = vand.u32 %v322, 4294901760
        %v1600 = vsub.f32 %v322, %v1599
        %v1601 = vand.u32 %v1600, 4294901760
        %1602 = vmatpush.msra.mxu0 %v1601
        %v1603 = vand.u32 %v318, 4294901760
        %v1604 = vsub.f32 %v318, %v1603
        %v1605 = vand.u32 %v1604, 4294901760
        %1606 = vmatpush.msra.mxu0 %v1605
        %v1607 = vand.u32 %v314, 4294901760
        %v1608 = vsub.f32 %v314, %v1607
        %v1609 = vand.u32 %v1608, 4294901760
        %1610 = vmatpush.msra.mxu0 %v1609
        %v1611 = vand.u32 %v310, 4294901760
        %v1612 = vsub.f32 %v310, %v1611
        %v1613 = vand.u32 %v1612, 4294901760
        %1614 = vmatpush.msra.mxu0 %v1613
        %v1615 = vand.u32 %v306, 4294901760
        %v1616 = vsub.f32 %v306, %v1615
        %v1617 = vand.u32 %v1616, 4294901760
        %1618 = vmatpush.msra.mxu0 %v1617
        %v1619 = vand.u32 %v302, 4294901760
        %v1620 = vsub.f32 %v302, %v1619
        %v1621 = vand.u32 %v1620, 4294901760
        %1622 = vmatpush.msra.mxu0 %v1621
        %v1623 = vand.u32 %v298, 4294901760
        %v1624 = vsub.f32 %v298, %v1623
        %v1625 = vand.u32 %v1624, 4294901760
        %1626 = vmatpush.msra.mxu0 %v1625
        %v1627 = vand.u32 %v294, 4294901760
        %v1628 = vsub.f32 %v294, %v1627
        %v1629 = vand.u32 %v1628, 4294901760
        %1630 = vmatpush.msra.mxu0 %v1629
        %v1631 = vand.u32 %v290, 4294901760
        %v1632 = vsub.f32 %v290, %v1631
        %v1633 = vand.u32 %v1632, 4294901760
        %1634 = vmatpush.msra.mxu0 %v1633
        %v1635 = vand.u32 %v286, 4294901760
        %v1636 = vsub.f32 %v286, %v1635
        %v1637 = vand.u32 %v1636, 4294901760
        %1638 = vmatpush.msra.mxu0 %v1637
        %v1639 = vand.u32 %v282, 4294901760
        %v1640 = vsub.f32 %v282, %v1639
        %v1641 = vand.u32 %v1640, 4294901760
        %1642 = vmatpush.msra.mxu0 %v1641
        %v1643 = vand.u32 %v278, 4294901760
        %v1644 = vsub.f32 %v278, %v1643
        %v1645 = vand.u32 %v1644, 4294901760
        %1646 = vmatpush.msra.mxu0 %v1645
        %v1647 = vand.u32 %v274, 4294901760
        %v1648 = vsub.f32 %v274, %v1647
        %v1649 = vand.u32 %v1648, 4294901760
        %1650 = vmatpush.msra.mxu0 %v1649
        %v1651 = vand.u32 %v270, 4294901760
        %v1652 = vsub.f32 %v270, %v1651
        %v1653 = vand.u32 %v1652, 4294901760
        %1654 = vmatpush.msra.mxu0 %v1653
        %v1655 = vand.u32 %v204, 4294901760
        %1656 = vmatmul.f32.gmra.mxu0 %v1655
        %v1657 = vpop.f32.mrf.mxu0
        %v1658 = vadd.f32 %v1589, %v1657
        %1659 = vdwg.mxu0
        %v1660 = vand.u32 %v330, 4294901760
        %1661 = vmatpush.msra.mxu0 %v1660
        %v1662 = vand.u32 %v326, 4294901760
        %1663 = vmatpush.msra.mxu0 %v1662
        %v1664 = vand.u32 %v322, 4294901760
        %1665 = vmatpush.msra.mxu0 %v1664
        %v1666 = vand.u32 %v318, 4294901760
        %1667 = vmatpush.msra.mxu0 %v1666
        %v1668 = vand.u32 %v314, 4294901760
        %1669 = vmatpush.msra.mxu0 %v1668
        %v1670 = vand.u32 %v310, 4294901760
        %1671 = vmatpush.msra.mxu0 %v1670
        %v1672 = vand.u32 %v306, 4294901760
        %1673 = vmatpush.msra.mxu0 %v1672
        %v1674 = vand.u32 %v302, 4294901760
        %1675 = vmatpush.msra.mxu0 %v1674
        %v1676 = vand.u32 %v298, 4294901760
        %1677 = vmatpush.msra.mxu0 %v1676
        %v1678 = vand.u32 %v294, 4294901760
        %1679 = vmatpush.msra.mxu0 %v1678
        %v1680 = vand.u32 %v290, 4294901760
        %1681 = vmatpush.msra.mxu0 %v1680
        %v1682 = vand.u32 %v286, 4294901760
        %1683 = vmatpush.msra.mxu0 %v1682
        %v1684 = vand.u32 %v282, 4294901760
        %1685 = vmatpush.msra.mxu0 %v1684
        %v1686 = vand.u32 %v278, 4294901760
        %1687 = vmatpush.msra.mxu0 %v1686
        %v1688 = vand.u32 %v274, 4294901760
        %1689 = vmatpush.msra.mxu0 %v1688
        %v1690 = vand.u32 %v270, 4294901760
        %1691 = vmatpush.msra.mxu0 %v1690
        %v1692 = vand.u32 %v204, 4294901760
        %1693 = vmatmul.f32.gmra.mxu0 %v1692
        %v1694 = vpop.f32.mrf.mxu0
        %v1695 = vadd.f32 %v1658, %v1694
        %1696 = vdwg.mxu0
        %v1697 = vand.u32 %v267, 4294901760
        %1698 = vmatpush.msra.mxu0 %v1697
        %v1699 = vand.u32 %v263, 4294901760
        %1700 = vmatpush.msra.mxu0 %v1699
        %v1701 = vand.u32 %v259, 4294901760
        %1702 = vmatpush.msra.mxu0 %v1701
        %v1703 = vand.u32 %v255, 4294901760
        %1704 = vmatpush.msra.mxu0 %v1703
        %v1705 = vand.u32 %v251, 4294901760
        %1706 = vmatpush.msra.mxu0 %v1705
        %v1707 = vand.u32 %v247, 4294901760
        %1708 = vmatpush.msra.mxu0 %v1707
        %v1709 = vand.u32 %v243, 4294901760
        %1710 = vmatpush.msra.mxu0 %v1709
        %v1711 = vand.u32 %v239, 4294901760
        %1712 = vmatpush.msra.mxu0 %v1711
        %v1713 = vand.u32 %v235, 4294901760
        %1714 = vmatpush.msra.mxu0 %v1713
        %v1715 = vand.u32 %v231, 4294901760
        %1716 = vmatpush.msra.mxu0 %v1715
        %v1717 = vand.u32 %v227, 4294901760
        %1718 = vmatpush.msra.mxu0 %v1717
        %v1719 = vand.u32 %v223, 4294901760
        %1720 = vmatpush.msra.mxu0 %v1719
        %v1721 = vand.u32 %v219, 4294901760
        %1722 = vmatpush.msra.mxu0 %v1721
        %v1723 = vand.u32 %v215, 4294901760
        %1724 = vmatpush.msra.mxu0 %v1723
        %v1725 = vand.u32 %v211, 4294901760
        %1726 = vmatpush.msra.mxu0 %v1725
        %v1727 = vand.u32 %v207, 4294901760
        %1728 = vmatpush.msra.mxu0 %v1727
        %v1729 = vand.u32 %v203, 4294901760
        %v1730 = vsub.f32 %v203, %v1729
        %v1731 = vand.u32 %v1730, 4294901760
        %v1732 = vsub.f32 %v1730, %v1731
        %v1733 = vand.u32 %v1732, 4294901760
        %1734 = vmatmul.f32.gmra.mxu0 %v1733
        %v1735 = vpop.f32.mrf.mxu0
        %v1736 = vadd.f32 0.0, %v1735
        %1737 = vdwg.mxu0
        %v1738 = vand.u32 %v267, 4294901760
        %v1739 = vsub.f32 %v267, %v1738
        %v1740 = vand.u32 %v1739, 4294901760
        %v1741 = vsub.f32 %v1739, %v1740
        %v1742 = vand.u32 %v1741, 4294901760
        %1743 = vmatpush.msra.mxu0 %v1742
        %v1744 = vand.u32 %v263, 4294901760
        %v1745 = vsub.f32 %v263, %v1744
        %v1746 = vand.u32 %v1745, 4294901760
        %v1747 = vsub.f32 %v1745, %v1746
        %v1748 = vand.u32 %v1747, 4294901760
        %1749 = vmatpush.msra.mxu0 %v1748
        %v1750 = vand.u32 %v259, 4294901760
        %v1751 = vsub.f32 %v259, %v1750
        %v1752 = vand.u32 %v1751, 4294901760
        %v1753 = vsub.f32 %v1751, %v1752
        %v1754 = vand.u32 %v1753, 4294901760
        %1755 = vmatpush.msra.mxu0 %v1754
        %v1756 = vand.u32 %v255, 4294901760
        %v1757 = vsub.f32 %v255, %v1756
        %v1758 = vand.u32 %v1757, 4294901760
        %v1759 = vsub.f32 %v1757, %v1758
        %v1760 = vand.u32 %v1759, 4294901760
        %1761 = vmatpush.msra.mxu0 %v1760
        %v1762 = vand.u32 %v251, 4294901760
        %v1763 = vsub.f32 %v251, %v1762
        %v1764 = vand.u32 %v1763, 4294901760
        %v1765 = vsub.f32 %v1763, %v1764
        %v1766 = vand.u32 %v1765, 4294901760
        %1767 = vmatpush.msra.mxu0 %v1766
        %v1768 = vand.u32 %v247, 4294901760
        %v1769 = vsub.f32 %v247, %v1768
        %v1770 = vand.u32 %v1769, 4294901760
        %v1771 = vsub.f32 %v1769, %v1770
        %v1772 = vand.u32 %v1771, 4294901760
        %1773 = vmatpush.msra.mxu0 %v1772
        %v1774 = vand.u32 %v243, 4294901760
        %v1775 = vsub.f32 %v243, %v1774
        %v1776 = vand.u32 %v1775, 4294901760
        %v1777 = vsub.f32 %v1775, %v1776
        %v1778 = vand.u32 %v1777, 4294901760
        %1779 = vmatpush.msra.mxu0 %v1778
        %v1780 = vand.u32 %v239, 4294901760
        %v1781 = vsub.f32 %v239, %v1780
        %v1782 = vand.u32 %v1781, 4294901760
        %v1783 = vsub.f32 %v1781, %v1782
        %v1784 = vand.u32 %v1783, 4294901760
        %1785 = vmatpush.msra.mxu0 %v1784
        %v1786 = vand.u32 %v235, 4294901760
        %v1787 = vsub.f32 %v235, %v1786
        %v1788 = vand.u32 %v1787, 4294901760
        %v1789 = vsub.f32 %v1787, %v1788
        %v1790 = vand.u32 %v1789, 4294901760
        %1791 = vmatpush.msra.mxu0 %v1790
        %v1792 = vand.u32 %v231, 4294901760
        %v1793 = vsub.f32 %v231, %v1792
        %v1794 = vand.u32 %v1793, 4294901760
        %v1795 = vsub.f32 %v1793, %v1794
        %v1796 = vand.u32 %v1795, 4294901760
        %1797 = vmatpush.msra.mxu0 %v1796
        %v1798 = vand.u32 %v227, 4294901760
        %v1799 = vsub.f32 %v227, %v1798
        %v1800 = vand.u32 %v1799, 4294901760
        %v1801 = vsub.f32 %v1799, %v1800
        %v1802 = vand.u32 %v1801, 4294901760
        %1803 = vmatpush.msra.mxu0 %v1802
        %v1804 = vand.u32 %v223, 4294901760
        %v1805 = vsub.f32 %v223, %v1804
        %v1806 = vand.u32 %v1805, 4294901760
        %v1807 = vsub.f32 %v1805, %v1806
        %v1808 = vand.u32 %v1807, 4294901760
        %1809 = vmatpush.msra.mxu0 %v1808
        %v1810 = vand.u32 %v219, 4294901760
        %v1811 = vsub.f32 %v219, %v1810
        %v1812 = vand.u32 %v1811, 4294901760
        %v1813 = vsub.f32 %v1811, %v1812
        %v1814 = vand.u32 %v1813, 4294901760
        %1815 = vmatpush.msra.mxu0 %v1814
        %v1816 = vand.u32 %v215, 4294901760
        %v1817 = vsub.f32 %v215, %v1816
        %v1818 = vand.u32 %v1817, 4294901760
        %v1819 = vsub.f32 %v1817, %v1818
        %v1820 = vand.u32 %v1819, 4294901760
        %1821 = vmatpush.msra.mxu0 %v1820
        %v1822 = vand.u32 %v211, 4294901760
        %v1823 = vsub.f32 %v211, %v1822
        %v1824 = vand.u32 %v1823, 4294901760
        %v1825 = vsub.f32 %v1823, %v1824
        %v1826 = vand.u32 %v1825, 4294901760
        %1827 = vmatpush.msra.mxu0 %v1826
        %v1828 = vand.u32 %v207, 4294901760
        %v1829 = vsub.f32 %v207, %v1828
        %v1830 = vand.u32 %v1829, 4294901760
        %v1831 = vsub.f32 %v1829, %v1830
        %v1832 = vand.u32 %v1831, 4294901760
        %1833 = vmatpush.msra.mxu0 %v1832
        %v1834 = vand.u32 %v203, 4294901760
        %1835 = vmatmul.f32.gmra.mxu0 %v1834
        %v1836 = vpop.f32.mrf.mxu0
        %v1837 = vadd.f32 %v1736, %v1836
        %1838 = vdwg.mxu0
        %v1839 = vand.u32 %v267, 4294901760
        %v1840 = vsub.f32 %v267, %v1839
        %1841 = vmatpush.msra.mxu0 %v1840
        %v1842 = vand.u32 %v263, 4294901760
        %v1843 = vsub.f32 %v263, %v1842
        %1844 = vmatpush.msra.mxu0 %v1843
        %v1845 = vand.u32 %v259, 4294901760
        %v1846 = vsub.f32 %v259, %v1845
        %1847 = vmatpush.msra.mxu0 %v1846
        %v1848 = vand.u32 %v255, 4294901760
        %v1849 = vsub.f32 %v255, %v1848
        %1850 = vmatpush.msra.mxu0 %v1849
        %v1851 = vand.u32 %v251, 4294901760
        %v1852 = vsub.f32 %v251, %v1851
        %1853 = vmatpush.msra.mxu0 %v1852
        %v1854 = vand.u32 %v247, 4294901760
        %v1855 = vsub.f32 %v247, %v1854
        %1856 = vmatpush.msra.mxu0 %v1855
        %v1857 = vand.u32 %v243, 4294901760
        %v1858 = vsub.f32 %v243, %v1857
        %1859 = vmatpush.msra.mxu0 %v1858
        %v1860 = vand.u32 %v239, 4294901760
        %v1861 = vsub.f32 %v239, %v1860
        %1862 = vmatpush.msra.mxu0 %v1861
        %v1863 = vand.u32 %v235, 4294901760
        %v1864 = vsub.f32 %v235, %v1863
        %1865 = vmatpush.msra.mxu0 %v1864
        %v1866 = vand.u32 %v231, 4294901760
        %v1867 = vsub.f32 %v231, %v1866
        %1868 = vmatpush.msra.mxu0 %v1867
        %v1869 = vand.u32 %v227, 4294901760
        %v1870 = vsub.f32 %v227, %v1869
        %1871 = vmatpush.msra.mxu0 %v1870
        %v1872 = vand.u32 %v223, 4294901760
        %v1873 = vsub.f32 %v223, %v1872
        %1874 = vmatpush.msra.mxu0 %v1873
        %v1875 = vand.u32 %v219, 4294901760
        %v1876 = vsub.f32 %v219, %v1875
        %1877 = vmatpush.msra.mxu0 %v1876
        %v1878 = vand.u32 %v215, 4294901760
        %v1879 = vsub.f32 %v215, %v1878
        %1880 = vmatpush.msra.mxu0 %v1879
        %v1881 = vand.u32 %v211, 4294901760
        %v1882 = vsub.f32 %v211, %v1881
        %1883 = vmatpush.msra.mxu0 %v1882
        %v1884 = vand.u32 %v207, 4294901760
        %v1885 = vsub.f32 %v207, %v1884
        %1886 = vmatpush.msra.mxu0 %v1885
        %v1887 = vand.u32 %v203, 4294901760
        %v1888 = vsub.f32 %v203, %v1887
        %1889 = vmatmul.f32.gmra.mxu0 %v1888
        %v1890 = vpop.f32.mrf.mxu0
        %v1891 = vadd.f32 %v1837, %v1890
        %1892 = vdwg.mxu0
        %v1893 = vand.u32 %v267, 4294901760
        %1894 = vmatpush.msra.mxu0 %v1893
        %v1895 = vand.u32 %v263, 4294901760
        %1896 = vmatpush.msra.mxu0 %v1895
        %v1897 = vand.u32 %v259, 4294901760
        %1898 = vmatpush.msra.mxu0 %v1897
        %v1899 = vand.u32 %v255, 4294901760
        %1900 = vmatpush.msra.mxu0 %v1899
        %v1901 = vand.u32 %v251, 4294901760
        %1902 = vmatpush.msra.mxu0 %v1901
        %v1903 = vand.u32 %v247, 4294901760
        %1904 = vmatpush.msra.mxu0 %v1903
        %v1905 = vand.u32 %v243, 4294901760
        %1906 = vmatpush.msra.mxu0 %v1905
        %v1907 = vand.u32 %v239, 4294901760
        %1908 = vmatpush.msra.mxu0 %v1907
        %v1909 = vand.u32 %v235, 4294901760
        %1910 = vmatpush.msra.mxu0 %v1909
        %v1911 = vand.u32 %v231, 4294901760
        %1912 = vmatpush.msra.mxu0 %v1911
        %v1913 = vand.u32 %v227, 4294901760
        %1914 = vmatpush.msra.mxu0 %v1913
        %v1915 = vand.u32 %v223, 4294901760
        %1916 = vmatpush.msra.mxu0 %v1915
        %v1917 = vand.u32 %v219, 4294901760
        %1918 = vmatpush.msra.mxu0 %v1917
        %v1919 = vand.u32 %v215, 4294901760
        %1920 = vmatpush.msra.mxu0 %v1919
        %v1921 = vand.u32 %v211, 4294901760
        %1922 = vmatpush.msra.mxu0 %v1921
        %v1923 = vand.u32 %v207, 4294901760
        %1924 = vmatpush.msra.mxu0 %v1923
        %v1925 = vand.u32 %v203, 4294901760
        %v1926 = vsub.f32 %v203, %v1925
        %v1927 = vand.u32 %v1926, 4294901760
        %1928 = vmatmul.f32.gmra.mxu0 %v1927
        %v1929 = vpop.f32.mrf.mxu0
        %v1930 = vadd.f32 %v1891, %v1929
        %1931 = vdwg.mxu0
        %v1932 = vand.u32 %v267, 4294901760
        %v1933 = vsub.f32 %v267, %v1932
        %v1934 = vand.u32 %v1933, 4294901760
        %1935 = vmatpush.msra.mxu0 %v1934
        %v1936 = vand.u32 %v263, 4294901760
        %v1937 = vsub.f32 %v263, %v1936
        %v1938 = vand.u32 %v1937, 4294901760
        %1939 = vmatpush.msra.mxu0 %v1938
        %v1940 = vand.u32 %v259, 4294901760
        %v1941 = vsub.f32 %v259, %v1940
        %v1942 = vand.u32 %v1941, 4294901760
        %1943 = vmatpush.msra.mxu0 %v1942
        %v1944 = vand.u32 %v255, 4294901760
        %v1945 = vsub.f32 %v255, %v1944
        %v1946 = vand.u32 %v1945, 4294901760
        %1947 = vmatpush.msra.mxu0 %v1946
        %v1948 = vand.u32 %v251, 4294901760
        %v1949 = vsub.f32 %v251, %v1948
        %v1950 = vand.u32 %v1949, 4294901760
        %1951 = vmatpush.msra.mxu0 %v1950
        %v1952 = vand.u32 %v247, 4294901760
        %v1953 = vsub.f32 %v247, %v1952
        %v1954 = vand.u32 %v1953, 4294901760
        %1955 = vmatpush.msra.mxu0 %v1954
        %v1956 = vand.u32 %v243, 4294901760
        %v1957 = vsub.f32 %v243, %v1956
        %v1958 = vand.u32 %v1957, 4294901760
        %1959 = vmatpush.msra.mxu0 %v1958
        %v1960 = vand.u32 %v239, 4294901760
        %v1961 = vsub.f32 %v239, %v1960
        %v1962 = vand.u32 %v1961, 4294901760
        %1963 = vmatpush.msra.mxu0 %v1962
        %v1964 = vand.u32 %v235, 4294901760
        %v1965 = vsub.f32 %v235, %v1964
        %v1966 = vand.u32 %v1965, 4294901760
        %1967 = vmatpush.msra.mxu0 %v1966
        %v1968 = vand.u32 %v231, 4294901760
        %v1969 = vsub.f32 %v231, %v1968
        %v1970 = vand.u32 %v1969, 4294901760
        %1971 = vmatpush.msra.mxu0 %v1970
        %v1972 = vand.u32 %v227, 4294901760
        %v1973 = vsub.f32 %v227, %v1972
        %v1974 = vand.u32 %v1973, 4294901760
        %1975 = vmatpush.msra.mxu0 %v1974
        %v1976 = vand.u32 %v223, 4294901760
        %v1977 = vsub.f32 %v223, %v1976
        %v1978 = vand.u32 %v1977, 4294901760
        %1979 = vmatpush.msra.mxu0 %v1978
        %v1980 = vand.u32 %v219, 4294901760
        %v1981 = vsub.f32 %v219, %v1980
        %v1982 = vand.u32 %v1981, 4294901760
        %1983 = vmatpush.msra.mxu0 %v1982
        %v1984 = vand.u32 %v215, 4294901760
        %v1985 = vsub.f32 %v215, %v1984
        %v1986 = vand.u32 %v1985, 4294901760
        %1987 = vmatpush.msra.mxu0 %v1986
        %v1988 = vand.u32 %v211, 4294901760
        %v1989 = vsub.f32 %v211, %v1988
        %v1990 = vand.u32 %v1989, 4294901760
        %1991 = vmatpush.msra.mxu0 %v1990
        %v1992 = vand.u32 %v207, 4294901760
        %v1993 = vsub.f32 %v207, %v1992
        %v1994 = vand.u32 %v1993, 4294901760
        %1995 = vmatpush.msra.mxu0 %v1994
        %v1996 = vand.u32 %v203, 4294901760
        %1997 = vmatmul.f32.gmra.mxu0 %v1996
        %v1998 = vpop.f32.mrf.mxu0
        %v1999 = vadd.f32 %v1930, %v1998
        %2000 = vdwg.mxu0
        %v2001 = vand.u32 %v267, 4294901760
        %2002 = vmatpush.msra.mxu0 %v2001
        %v2003 = vand.u32 %v263, 4294901760
        %2004 = vmatpush.msra.mxu0 %v2003
        %v2005 = vand.u32 %v259, 4294901760
        %2006 = vmatpush.msra.mxu0 %v2005
        %v2007 = vand.u32 %v255, 4294901760
        %2008 = vmatpush.msra.mxu0 %v2007
        %v2009 = vand.u32 %v251, 4294901760
        %2010 = vmatpush.msra.mxu0 %v2009
        %v2011 = vand.u32 %v247, 4294901760
        %2012 = vmatpush.msra.mxu0 %v2011
        %v2013 = vand.u32 %v243, 4294901760
        %2014 = vmatpush.msra.mxu0 %v2013
        %v2015 = vand.u32 %v239, 4294901760
        %2016 = vmatpush.msra.mxu0 %v2015
        %v2017 = vand.u32 %v235, 4294901760
        %2018 = vmatpush.msra.mxu0 %v2017
        %v2019 = vand.u32 %v231, 4294901760
        %2020 = vmatpush.msra.mxu0 %v2019
        %v2021 = vand.u32 %v227, 4294901760
        %2022 = vmatpush.msra.mxu0 %v2021
        %v2023 = vand.u32 %v223, 4294901760
        %2024 = vmatpush.msra.mxu0 %v2023
        %v2025 = vand.u32 %v219, 4294901760
        %2026 = vmatpush.msra.mxu0 %v2025
        %v2027 = vand.u32 %v215, 4294901760
        %2028 = vmatpush.msra.mxu0 %v2027
        %v2029 = vand.u32 %v211, 4294901760
        %2030 = vmatpush.msra.mxu0 %v2029
        %v2031 = vand.u32 %v207, 4294901760
        %2032 = vmatpush.msra.mxu0 %v2031
        %v2033 = vand.u32 %v203, 4294901760
        %2034 = vmatmul.f32.gmra.mxu0 %v2033
        %v2035 = vpop.f32.mrf.mxu0
        %v2036 = vadd.f32 %v1999, %v2035
        %2037 = vdwg.mxu0
        %v2038 = vand.u32 %v331, 4294901760
        %2039 = vmatpush.msra.mxu0 %v2038
        %v2040 = vand.u32 %v327, 4294901760
        %2041 = vmatpush.msra.mxu0 %v2040
        %v2042 = vand.u32 %v323, 4294901760
        %2043 = vmatpush.msra.mxu0 %v2042
        %v2044 = vand.u32 %v319, 4294901760
        %2045 = vmatpush.msra.mxu0 %v2044
        %v2046 = vand.u32 %v315, 4294901760
        %2047 = vmatpush.msra.mxu0 %v2046
        %v2048 = vand.u32 %v311, 4294901760
        %2049 = vmatpush.msra.mxu0 %v2048
        %v2050 = vand.u32 %v307, 4294901760
        %2051 = vmatpush.msra.mxu0 %v2050
        %v2052 = vand.u32 %v303, 4294901760
        %2053 = vmatpush.msra.mxu0 %v2052
        %v2054 = vand.u32 %v299, 4294901760
        %2055 = vmatpush.msra.mxu0 %v2054
        %v2056 = vand.u32 %v295, 4294901760
        %2057 = vmatpush.msra.mxu0 %v2056
        %v2058 = vand.u32 %v291, 4294901760
        %2059 = vmatpush.msra.mxu0 %v2058
        %v2060 = vand.u32 %v287, 4294901760
        %2061 = vmatpush.msra.mxu0 %v2060
        %v2062 = vand.u32 %v283, 4294901760
        %2063 = vmatpush.msra.mxu0 %v2062
        %v2064 = vand.u32 %v279, 4294901760
        %2065 = vmatpush.msra.mxu0 %v2064
        %v2066 = vand.u32 %v275, 4294901760
        %2067 = vmatpush.msra.mxu0 %v2066
        %v2068 = vand.u32 %v271, 4294901760
        %2069 = vmatpush.msra.mxu0 %v2068
        %v2070 = vand.u32 %v204, 4294901760
        %v2071 = vsub.f32 %v204, %v2070
        %v2072 = vand.u32 %v2071, 4294901760
        %v2073 = vsub.f32 %v2071, %v2072
        %v2074 = vand.u32 %v2073, 4294901760
        %2075 = vmatmul.f32.gmra.mxu0 %v2074
        %v2076 = vpop.f32.mrf.mxu0
        %v2077 = vadd.f32 %v2036, %v2076
        %2078 = vdwg.mxu0
        %v2079 = vand.u32 %v331, 4294901760
        %v2080 = vsub.f32 %v331, %v2079
        %v2081 = vand.u32 %v2080, 4294901760
        %v2082 = vsub.f32 %v2080, %v2081
        %v2083 = vand.u32 %v2082, 4294901760
        %2084 = vmatpush.msra.mxu0 %v2083
        %v2085 = vand.u32 %v327, 4294901760
        %v2086 = vsub.f32 %v327, %v2085
        %v2087 = vand.u32 %v2086, 4294901760
        %v2088 = vsub.f32 %v2086, %v2087
        %v2089 = vand.u32 %v2088, 4294901760
        %2090 = vmatpush.msra.mxu0 %v2089
        %v2091 = vand.u32 %v323, 4294901760
        %v2092 = vsub.f32 %v323, %v2091
        %v2093 = vand.u32 %v2092, 4294901760
        %v2094 = vsub.f32 %v2092, %v2093
        %v2095 = vand.u32 %v2094, 4294901760
        %2096 = vmatpush.msra.mxu0 %v2095
        %v2097 = vand.u32 %v319, 4294901760
        %v2098 = vsub.f32 %v319, %v2097
        %v2099 = vand.u32 %v2098, 4294901760
        %v2100 = vsub.f32 %v2098, %v2099
        %v2101 = vand.u32 %v2100, 4294901760
        %2102 = vmatpush.msra.mxu0 %v2101
        %v2103 = vand.u32 %v315, 4294901760
        %v2104 = vsub.f32 %v315, %v2103
        %v2105 = vand.u32 %v2104, 4294901760
        %v2106 = vsub.f32 %v2104, %v2105
        %v2107 = vand.u32 %v2106, 4294901760
        %2108 = vmatpush.msra.mxu0 %v2107
        %v2109 = vand.u32 %v311, 4294901760
        %v2110 = vsub.f32 %v311, %v2109
        %v2111 = vand.u32 %v2110, 4294901760
        %v2112 = vsub.f32 %v2110, %v2111
        %v2113 = vand.u32 %v2112, 4294901760
        %2114 = vmatpush.msra.mxu0 %v2113
        %v2115 = vand.u32 %v307, 4294901760
        %v2116 = vsub.f32 %v307, %v2115
        %v2117 = vand.u32 %v2116, 4294901760
        %v2118 = vsub.f32 %v2116, %v2117
        %v2119 = vand.u32 %v2118, 4294901760
        %2120 = vmatpush.msra.mxu0 %v2119
        %v2121 = vand.u32 %v303, 4294901760
        %v2122 = vsub.f32 %v303, %v2121
        %v2123 = vand.u32 %v2122, 4294901760
        %v2124 = vsub.f32 %v2122, %v2123
        %v2125 = vand.u32 %v2124, 4294901760
        %2126 = vmatpush.msra.mxu0 %v2125
        %v2127 = vand.u32 %v299, 4294901760
        %v2128 = vsub.f32 %v299, %v2127
        %v2129 = vand.u32 %v2128, 4294901760
        %v2130 = vsub.f32 %v2128, %v2129
        %v2131 = vand.u32 %v2130, 4294901760
        %2132 = vmatpush.msra.mxu0 %v2131
        %v2133 = vand.u32 %v295, 4294901760
        %v2134 = vsub.f32 %v295, %v2133
        %v2135 = vand.u32 %v2134, 4294901760
        %v2136 = vsub.f32 %v2134, %v2135
        %v2137 = vand.u32 %v2136, 4294901760
        %2138 = vmatpush.msra.mxu0 %v2137
        %v2139 = vand.u32 %v291, 4294901760
        %v2140 = vsub.f32 %v291, %v2139
        %v2141 = vand.u32 %v2140, 4294901760
        %v2142 = vsub.f32 %v2140, %v2141
        %v2143 = vand.u32 %v2142, 4294901760
        %2144 = vmatpush.msra.mxu0 %v2143
        %v2145 = vand.u32 %v287, 4294901760
        %v2146 = vsub.f32 %v287, %v2145
        %v2147 = vand.u32 %v2146, 4294901760
        %v2148 = vsub.f32 %v2146, %v2147
        %v2149 = vand.u32 %v2148, 4294901760
        %2150 = vmatpush.msra.mxu0 %v2149
        %v2151 = vand.u32 %v283, 4294901760
        %v2152 = vsub.f32 %v283, %v2151
        %v2153 = vand.u32 %v2152, 4294901760
        %v2154 = vsub.f32 %v2152, %v2153
        %v2155 = vand.u32 %v2154, 4294901760
        %2156 = vmatpush.msra.mxu0 %v2155
        %v2157 = vand.u32 %v279, 4294901760
        %v2158 = vsub.f32 %v279, %v2157
        %v2159 = vand.u32 %v2158, 4294901760
        %v2160 = vsub.f32 %v2158, %v2159
        %v2161 = vand.u32 %v2160, 4294901760
        %2162 = vmatpush.msra.mxu0 %v2161
        %v2163 = vand.u32 %v275, 4294901760
        %v2164 = vsub.f32 %v275, %v2163
        %v2165 = vand.u32 %v2164, 4294901760
        %v2166 = vsub.f32 %v2164, %v2165
        %v2167 = vand.u32 %v2166, 4294901760
        %2168 = vmatpush.msra.mxu0 %v2167
        %v2169 = vand.u32 %v271, 4294901760
        %v2170 = vsub.f32 %v271, %v2169
        %v2171 = vand.u32 %v2170, 4294901760
        %v2172 = vsub.f32 %v2170, %v2171
        %v2173 = vand.u32 %v2172, 4294901760
        %2174 = vmatpush.msra.mxu0 %v2173
        %v2175 = vand.u32 %v204, 4294901760
        %2176 = vmatmul.f32.gmra.mxu0 %v2175
        %v2177 = vpop.f32.mrf.mxu0
        %v2178 = vadd.f32 %v2077, %v2177
        %2179 = vdwg.mxu0
        %v2180 = vand.u32 %v331, 4294901760
        %v2181 = vsub.f32 %v331, %v2180
        %2182 = vmatpush.msra.mxu0 %v2181
        %v2183 = vand.u32 %v327, 4294901760
        %v2184 = vsub.f32 %v327, %v2183
        %2185 = vmatpush.msra.mxu0 %v2184
        %v2186 = vand.u32 %v323, 4294901760
        %v2187 = vsub.f32 %v323, %v2186
        %2188 = vmatpush.msra.mxu0 %v2187
        %v2189 = vand.u32 %v319, 4294901760
        %v2190 = vsub.f32 %v319, %v2189
        %2191 = vmatpush.msra.mxu0 %v2190
        %v2192 = vand.u32 %v315, 4294901760
        %v2193 = vsub.f32 %v315, %v2192
        %2194 = vmatpush.msra.mxu0 %v2193
        %v2195 = vand.u32 %v311, 4294901760
        %v2196 = vsub.f32 %v311, %v2195
        %2197 = vmatpush.msra.mxu0 %v2196
        %v2198 = vand.u32 %v307, 4294901760
        %v2199 = vsub.f32 %v307, %v2198
        %2200 = vmatpush.msra.mxu0 %v2199
        %v2201 = vand.u32 %v303, 4294901760
        %v2202 = vsub.f32 %v303, %v2201
        %2203 = vmatpush.msra.mxu0 %v2202
        %v2204 = vand.u32 %v299, 4294901760
        %v2205 = vsub.f32 %v299, %v2204
        %2206 = vmatpush.msra.mxu0 %v2205
        %v2207 = vand.u32 %v295, 4294901760
        %v2208 = vsub.f32 %v295, %v2207
        %2209 = vmatpush.msra.mxu0 %v2208
        %v2210 = vand.u32 %v291, 4294901760
        %v2211 = vsub.f32 %v291, %v2210
        %2212 = vmatpush.msra.mxu0 %v2211
        %v2213 = vand.u32 %v287, 4294901760
        %v2214 = vsub.f32 %v287, %v2213
        %2215 = vmatpush.msra.mxu0 %v2214
        %v2216 = vand.u32 %v283, 4294901760
        %v2217 = vsub.f32 %v283, %v2216
        %2218 = vmatpush.msra.mxu0 %v2217
        %v2219 = vand.u32 %v279, 4294901760
        %v2220 = vsub.f32 %v279, %v2219
        %2221 = vmatpush.msra.mxu0 %v2220
        %v2222 = vand.u32 %v275, 4294901760
        %v2223 = vsub.f32 %v275, %v2222
        %2224 = vmatpush.msra.mxu0 %v2223
        %v2225 = vand.u32 %v271, 4294901760
        %v2226 = vsub.f32 %v271, %v2225
        %2227 = vmatpush.msra.mxu0 %v2226
        %v2228 = vand.u32 %v204, 4294901760
        %v2229 = vsub.f32 %v204, %v2228
        %2230 = vmatmul.f32.gmra.mxu0 %v2229
        %v2231 = vpop.f32.mrf.mxu0
        %v2232 = vadd.f32 %v2178, %v2231
        %2233 = vdwg.mxu0
        %v2234 = vand.u32 %v331, 4294901760
        %2235 = vmatpush.msra.mxu0 %v2234
        %v2236 = vand.u32 %v327, 4294901760
        %2237 = vmatpush.msra.mxu0 %v2236
        %v2238 = vand.u32 %v323, 4294901760
        %2239 = vmatpush.msra.mxu0 %v2238
        %v2240 = vand.u32 %v319, 4294901760
        %2241 = vmatpush.msra.mxu0 %v2240
        %v2242 = vand.u32 %v315, 4294901760
        %2243 = vmatpush.msra.mxu0 %v2242
        %v2244 = vand.u32 %v311, 4294901760
        %2245 = vmatpush.msra.mxu0 %v2244
        %v2246 = vand.u32 %v307, 4294901760
        %2247 = vmatpush.msra.mxu0 %v2246
        %v2248 = vand.u32 %v303, 4294901760
        %2249 = vmatpush.msra.mxu0 %v2248
        %v2250 = vand.u32 %v299, 4294901760
        %2251 = vmatpush.msra.mxu0 %v2250
        %v2252 = vand.u32 %v295, 4294901760
        %2253 = vmatpush.msra.mxu0 %v2252
        %v2254 = vand.u32 %v291, 4294901760
        %2255 = vmatpush.msra.mxu0 %v2254
        %v2256 = vand.u32 %v287, 4294901760
        %2257 = vmatpush.msra.mxu0 %v2256
        %v2258 = vand.u32 %v283, 4294901760
        %2259 = vmatpush.msra.mxu0 %v2258
        %v2260 = vand.u32 %v279, 4294901760
        %2261 = vmatpush.msra.mxu0 %v2260
        %v2262 = vand.u32 %v275, 4294901760
        %2263 = vmatpush.msra.mxu0 %v2262
        %v2264 = vand.u32 %v271, 4294901760
        %2265 = vmatpush.msra.mxu0 %v2264
        %v2266 = vand.u32 %v204, 4294901760
        %v2267 = vsub.f32 %v204, %v2266
        %v2268 = vand.u32 %v2267, 4294901760
        %2269 = vmatmul.f32.gmra.mxu0 %v2268
        %v2270 = vpop.f32.mrf.mxu0
        %v2271 = vadd.f32 %v2232, %v2270
        %2272 = vdwg.mxu0
        %v2273 = vand.u32 %v331, 4294901760
        %v2274 = vsub.f32 %v331, %v2273
        %v2275 = vand.u32 %v2274, 4294901760
        %2276 = vmatpush.msra.mxu0 %v2275
        %v2277 = vand.u32 %v327, 4294901760
        %v2278 = vsub.f32 %v327, %v2277
        %v2279 = vand.u32 %v2278, 4294901760
        %2280 = vmatpush.msra.mxu0 %v2279
        %v2281 = vand.u32 %v323, 4294901760
        %v2282 = vsub.f32 %v323, %v2281
        %v2283 = vand.u32 %v2282, 4294901760
        %2284 = vmatpush.msra.mxu0 %v2283
        %v2285 = vand.u32 %v319, 4294901760
        %v2286 = vsub.f32 %v319, %v2285
        %v2287 = vand.u32 %v2286, 4294901760
        %2288 = vmatpush.msra.mxu0 %v2287
        %v2289 = vand.u32 %v315, 4294901760
        %v2290 = vsub.f32 %v315, %v2289
        %v2291 = vand.u32 %v2290, 4294901760
        %2292 = vmatpush.msra.mxu0 %v2291
        %v2293 = vand.u32 %v311, 4294901760
        %v2294 = vsub.f32 %v311, %v2293
        %v2295 = vand.u32 %v2294, 4294901760
        %2296 = vmatpush.msra.mxu0 %v2295
        %v2297 = vand.u32 %v307, 4294901760
        %v2298 = vsub.f32 %v307, %v2297
        %v2299 = vand.u32 %v2298, 4294901760
        %2300 = vmatpush.msra.mxu0 %v2299
        %v2301 = vand.u32 %v303, 4294901760
        %v2302 = vsub.f32 %v303, %v2301
        %v2303 = vand.u32 %v2302, 4294901760
        %2304 = vmatpush.msra.mxu0 %v2303
        %v2305 = vand.u32 %v299, 4294901760
        %v2306 = vsub.f32 %v299, %v2305
        %v2307 = vand.u32 %v2306, 4294901760
        %2308 = vmatpush.msra.mxu0 %v2307
        %v2309 = vand.u32 %v295, 4294901760
        %v2310 = vsub.f32 %v295, %v2309
        %v2311 = vand.u32 %v2310, 4294901760
        %2312 = vmatpush.msra.mxu0 %v2311
        %v2313 = vand.u32 %v291, 4294901760
        %v2314 = vsub.f32 %v291, %v2313
        %v2315 = vand.u32 %v2314, 4294901760
        %2316 = vmatpush.msra.mxu0 %v2315
        %v2317 = vand.u32 %v287, 4294901760
        %v2318 = vsub.f32 %v287, %v2317
        %v2319 = vand.u32 %v2318, 4294901760
        %2320 = vmatpush.msra.mxu0 %v2319
        %v2321 = vand.u32 %v283, 4294901760
        %v2322 = vsub.f32 %v283, %v2321
        %v2323 = vand.u32 %v2322, 4294901760
        %2324 = vmatpush.msra.mxu0 %v2323
        %v2325 = vand.u32 %v279, 4294901760
        %v2326 = vsub.f32 %v279, %v2325
        %v2327 = vand.u32 %v2326, 4294901760
        %2328 = vmatpush.msra.mxu0 %v2327
        %v2329 = vand.u32 %v275, 4294901760
        %v2330 = vsub.f32 %v275, %v2329
        %v2331 = vand.u32 %v2330, 4294901760
        %2332 = vmatpush.msra.mxu0 %v2331
        %v2333 = vand.u32 %v271, 4294901760
        %v2334 = vsub.f32 %v271, %v2333
        %v2335 = vand.u32 %v2334, 4294901760
        %2336 = vmatpush.msra.mxu0 %v2335
        %v2337 = vand.u32 %v204, 4294901760
        %2338 = vmatmul.f32.gmra.mxu0 %v2337
        %v2339 = vpop.f32.mrf.mxu0
        %v2340 = vadd.f32 %v2271, %v2339
        %2341 = vdwg.mxu0
        %v2342 = vand.u32 %v331, 4294901760
        %2343 = vmatpush.msra.mxu0 %v2342
        %v2344 = vand.u32 %v327, 4294901760
        %2345 = vmatpush.msra.mxu0 %v2344
        %v2346 = vand.u32 %v323, 4294901760
        %2347 = vmatpush.msra.mxu0 %v2346
        %v2348 = vand.u32 %v319, 4294901760
        %2349 = vmatpush.msra.mxu0 %v2348
        %v2350 = vand.u32 %v315, 4294901760
        %2351 = vmatpush.msra.mxu0 %v2350
        %v2352 = vand.u32 %v311, 4294901760
        %2353 = vmatpush.msra.mxu0 %v2352
        %v2354 = vand.u32 %v307, 4294901760
        %2355 = vmatpush.msra.mxu0 %v2354
        %v2356 = vand.u32 %v303, 4294901760
        %2357 = vmatpush.msra.mxu0 %v2356
        %v2358 = vand.u32 %v299, 4294901760
        %2359 = vmatpush.msra.mxu0 %v2358
        %v2360 = vand.u32 %v295, 4294901760
        %2361 = vmatpush.msra.mxu0 %v2360
        %v2362 = vand.u32 %v291, 4294901760
        %2363 = vmatpush.msra.mxu0 %v2362
        %v2364 = vand.u32 %v287, 4294901760
        %2365 = vmatpush.msra.mxu0 %v2364
        %v2366 = vand.u32 %v283, 4294901760
        %2367 = vmatpush.msra.mxu0 %v2366
        %v2368 = vand.u32 %v279, 4294901760
        %2369 = vmatpush.msra.mxu0 %v2368
        %v2370 = vand.u32 %v275, 4294901760
        %2371 = vmatpush.msra.mxu0 %v2370
        %v2372 = vand.u32 %v271, 4294901760
        %2373 = vmatpush.msra.mxu0 %v2372
        %v2374 = vand.u32 %v204, 4294901760
        %2375 = vmatmul.f32.gmra.mxu0 %v2374
        %v2376 = vpop.f32.mrf.mxu0
        %v2377 = vadd.f32 %v2340, %v2376
        %2378 = vdwg.mxu0
        %v2379 = vand.u32 %v268, 4294901760
        %2380 = vmatpush.msra.mxu0 %v2379
        %v2381 = vand.u32 %v264, 4294901760
        %2382 = vmatpush.msra.mxu0 %v2381
        %v2383 = vand.u32 %v260, 4294901760
        %2384 = vmatpush.msra.mxu0 %v2383
        %v2385 = vand.u32 %v256, 4294901760
        %2386 = vmatpush.msra.mxu0 %v2385
        %v2387 = vand.u32 %v252, 4294901760
        %2388 = vmatpush.msra.mxu0 %v2387
        %v2389 = vand.u32 %v248, 4294901760
        %2390 = vmatpush.msra.mxu0 %v2389
        %v2391 = vand.u32 %v244, 4294901760
        %2392 = vmatpush.msra.mxu0 %v2391
        %v2393 = vand.u32 %v240, 4294901760
        %2394 = vmatpush.msra.mxu0 %v2393
        %v2395 = vand.u32 %v236, 4294901760
        %2396 = vmatpush.msra.mxu0 %v2395
        %v2397 = vand.u32 %v232, 4294901760
        %2398 = vmatpush.msra.mxu0 %v2397
        %v2399 = vand.u32 %v228, 4294901760
        %2400 = vmatpush.msra.mxu0 %v2399
        %v2401 = vand.u32 %v224, 4294901760
        %2402 = vmatpush.msra.mxu0 %v2401
        %v2403 = vand.u32 %v220, 4294901760
        %2404 = vmatpush.msra.mxu0 %v2403
        %v2405 = vand.u32 %v216, 4294901760
        %2406 = vmatpush.msra.mxu0 %v2405
        %v2407 = vand.u32 %v212, 4294901760
        %2408 = vmatpush.msra.mxu0 %v2407
        %v2409 = vand.u32 %v208, 4294901760
        %2410 = vmatpush.msra.mxu0 %v2409
        %v2411 = vand.u32 %v203, 4294901760
        %v2412 = vsub.f32 %v203, %v2411
        %v2413 = vand.u32 %v2412, 4294901760
        %v2414 = vsub.f32 %v2412, %v2413
        %v2415 = vand.u32 %v2414, 4294901760
        %2416 = vmatmul.f32.gmra.mxu0 %v2415
        %v2417 = vpop.f32.mrf.mxu0
        %v2418 = vadd.f32 0.0, %v2417
        %2419 = vdwg.mxu0
        %v2420 = vand.u32 %v268, 4294901760
        %v2421 = vsub.f32 %v268, %v2420
        %v2422 = vand.u32 %v2421, 4294901760
        %v2423 = vsub.f32 %v2421, %v2422
        %v2424 = vand.u32 %v2423, 4294901760
        %2425 = vmatpush.msra.mxu0 %v2424
        %v2426 = vand.u32 %v264, 4294901760
        %v2427 = vsub.f32 %v264, %v2426
        %v2428 = vand.u32 %v2427, 4294901760
        %v2429 = vsub.f32 %v2427, %v2428
        %v2430 = vand.u32 %v2429, 4294901760
        %2431 = vmatpush.msra.mxu0 %v2430
        %v2432 = vand.u32 %v260, 4294901760
        %v2433 = vsub.f32 %v260, %v2432
        %v2434 = vand.u32 %v2433, 4294901760
        %v2435 = vsub.f32 %v2433, %v2434
        %v2436 = vand.u32 %v2435, 4294901760
        %2437 = vmatpush.msra.mxu0 %v2436
        %v2438 = vand.u32 %v256, 4294901760
        %v2439 = vsub.f32 %v256, %v2438
        %v2440 = vand.u32 %v2439, 4294901760
        %v2441 = vsub.f32 %v2439, %v2440
        %v2442 = vand.u32 %v2441, 4294901760
        %2443 = vmatpush.msra.mxu0 %v2442
        %v2444 = vand.u32 %v252, 4294901760
        %v2445 = vsub.f32 %v252, %v2444
        %v2446 = vand.u32 %v2445, 4294901760
        %v2447 = vsub.f32 %v2445, %v2446
        %v2448 = vand.u32 %v2447, 4294901760
        %2449 = vmatpush.msra.mxu0 %v2448
        %v2450 = vand.u32 %v248, 4294901760
        %v2451 = vsub.f32 %v248, %v2450
        %v2452 = vand.u32 %v2451, 4294901760
        %v2453 = vsub.f32 %v2451, %v2452
        %v2454 = vand.u32 %v2453, 4294901760
        %2455 = vmatpush.msra.mxu0 %v2454
        %v2456 = vand.u32 %v244, 4294901760
        %v2457 = vsub.f32 %v244, %v2456
        %v2458 = vand.u32 %v2457, 4294901760
        %v2459 = vsub.f32 %v2457, %v2458
        %v2460 = vand.u32 %v2459, 4294901760
        %2461 = vmatpush.msra.mxu0 %v2460
        %v2462 = vand.u32 %v240, 4294901760
        %v2463 = vsub.f32 %v240, %v2462
        %v2464 = vand.u32 %v2463, 4294901760
        %v2465 = vsub.f32 %v2463, %v2464
        %v2466 = vand.u32 %v2465, 4294901760
        %2467 = vmatpush.msra.mxu0 %v2466
        %v2468 = vand.u32 %v236, 4294901760
        %v2469 = vsub.f32 %v236, %v2468
        %v2470 = vand.u32 %v2469, 4294901760
        %v2471 = vsub.f32 %v2469, %v2470
        %v2472 = vand.u32 %v2471, 4294901760
        %2473 = vmatpush.msra.mxu0 %v2472
        %v2474 = vand.u32 %v232, 4294901760
        %v2475 = vsub.f32 %v232, %v2474
        %v2476 = vand.u32 %v2475, 4294901760
        %v2477 = vsub.f32 %v2475, %v2476
        %v2478 = vand.u32 %v2477, 4294901760
        %2479 = vmatpush.msra.mxu0 %v2478
        %v2480 = vand.u32 %v228, 4294901760
        %v2481 = vsub.f32 %v228, %v2480
        %v2482 = vand.u32 %v2481, 4294901760
        %v2483 = vsub.f32 %v2481, %v2482
        %v2484 = vand.u32 %v2483, 4294901760
        %2485 = vmatpush.msra.mxu0 %v2484
        %v2486 = vand.u32 %v224, 4294901760
        %v2487 = vsub.f32 %v224, %v2486
        %v2488 = vand.u32 %v2487, 4294901760
        %v2489 = vsub.f32 %v2487, %v2488
        %v2490 = vand.u32 %v2489, 4294901760
        %2491 = vmatpush.msra.mxu0 %v2490
        %v2492 = vand.u32 %v220, 4294901760
        %v2493 = vsub.f32 %v220, %v2492
        %v2494 = vand.u32 %v2493, 4294901760
        %v2495 = vsub.f32 %v2493, %v2494
        %v2496 = vand.u32 %v2495, 4294901760
        %2497 = vmatpush.msra.mxu0 %v2496
        %v2498 = vand.u32 %v216, 4294901760
        %v2499 = vsub.f32 %v216, %v2498
        %v2500 = vand.u32 %v2499, 4294901760
        %v2501 = vsub.f32 %v2499, %v2500
        %v2502 = vand.u32 %v2501, 4294901760
        %2503 = vmatpush.msra.mxu0 %v2502
        %v2504 = vand.u32 %v212, 4294901760
        %v2505 = vsub.f32 %v212, %v2504
        %v2506 = vand.u32 %v2505, 4294901760
        %v2507 = vsub.f32 %v2505, %v2506
        %v2508 = vand.u32 %v2507, 4294901760
        %2509 = vmatpush.msra.mxu0 %v2508
        %v2510 = vand.u32 %v208, 4294901760
        %v2511 = vsub.f32 %v208, %v2510
        %v2512 = vand.u32 %v2511, 4294901760
        %v2513 = vsub.f32 %v2511, %v2512
        %v2514 = vand.u32 %v2513, 4294901760
        %2515 = vmatpush.msra.mxu0 %v2514
        %v2516 = vand.u32 %v203, 4294901760
        %2517 = vmatmul.f32.gmra.mxu0 %v2516
        %v2518 = vpop.f32.mrf.mxu0
        %v2519 = vadd.f32 %v2418, %v2518
        %2520 = vdwg.mxu0
        %v2521 = vand.u32 %v268, 4294901760
        %v2522 = vsub.f32 %v268, %v2521
        %2523 = vmatpush.msra.mxu0 %v2522
        %v2524 = vand.u32 %v264, 4294901760
        %v2525 = vsub.f32 %v264, %v2524
        %2526 = vmatpush.msra.mxu0 %v2525
        %v2527 = vand.u32 %v260, 4294901760
        %v2528 = vsub.f32 %v260, %v2527
        %2529 = vmatpush.msra.mxu0 %v2528
        %v2530 = vand.u32 %v256, 4294901760
        %v2531 = vsub.f32 %v256, %v2530
        %2532 = vmatpush.msra.mxu0 %v2531
        %v2533 = vand.u32 %v252, 4294901760
        %v2534 = vsub.f32 %v252, %v2533
        %2535 = vmatpush.msra.mxu0 %v2534
        %v2536 = vand.u32 %v248, 4294901760
        %v2537 = vsub.f32 %v248, %v2536
        %2538 = vmatpush.msra.mxu0 %v2537
        %v2539 = vand.u32 %v244, 4294901760
        %v2540 = vsub.f32 %v244, %v2539
        %2541 = vmatpush.msra.mxu0 %v2540
        %v2542 = vand.u32 %v240, 4294901760
        %v2543 = vsub.f32 %v240, %v2542
        %2544 = vmatpush.msra.mxu0 %v2543
        %v2545 = vand.u32 %v236, 4294901760
        %v2546 = vsub.f32 %v236, %v2545
        %2547 = vmatpush.msra.mxu0 %v2546
        %v2548 = vand.u32 %v232, 4294901760
        %v2549 = vsub.f32 %v232, %v2548
        %2550 = vmatpush.msra.mxu0 %v2549
        %v2551 = vand.u32 %v228, 4294901760
        %v2552 = vsub.f32 %v228, %v2551
        %2553 = vmatpush.msra.mxu0 %v2552
        %v2554 = vand.u32 %v224, 4294901760
        %v2555 = vsub.f32 %v224, %v2554
        %2556 = vmatpush.msra.mxu0 %v2555
        %v2557 = vand.u32 %v220, 4294901760
        %v2558 = vsub.f32 %v220, %v2557
        %2559 = vmatpush.msra.mxu0 %v2558
        %v2560 = vand.u32 %v216, 4294901760
        %v2561 = vsub.f32 %v216, %v2560
        %2562 = vmatpush.msra.mxu0 %v2561
        %v2563 = vand.u32 %v212, 4294901760
        %v2564 = vsub.f32 %v212, %v2563
        %2565 = vmatpush.msra.mxu0 %v2564
        %v2566 = vand.u32 %v208, 4294901760
        %v2567 = vsub.f32 %v208, %v2566
        %2568 = vmatpush.msra.mxu0 %v2567
        %v2569 = vand.u32 %v203, 4294901760
        %v2570 = vsub.f32 %v203, %v2569
        %2571 = vmatmul.f32.gmra.mxu0 %v2570
        %v2572 = vpop.f32.mrf.mxu0
        %v2573 = vadd.f32 %v2519, %v2572
        %2574 = vdwg.mxu0
        %v2575 = vand.u32 %v268, 4294901760
        %2576 = vmatpush.msra.mxu0 %v2575
        %v2577 = vand.u32 %v264, 4294901760
        %2578 = vmatpush.msra.mxu0 %v2577
        %v2579 = vand.u32 %v260, 4294901760
        %2580 = vmatpush.msra.mxu0 %v2579
        %v2581 = vand.u32 %v256, 4294901760
        %2582 = vmatpush.msra.mxu0 %v2581
        %v2583 = vand.u32 %v252, 4294901760
        %2584 = vmatpush.msra.mxu0 %v2583
        %v2585 = vand.u32 %v248, 4294901760
        %2586 = vmatpush.msra.mxu0 %v2585
        %v2587 = vand.u32 %v244, 4294901760
        %2588 = vmatpush.msra.mxu0 %v2587
        %v2589 = vand.u32 %v240, 4294901760
        %2590 = vmatpush.msra.mxu0 %v2589
        %v2591 = vand.u32 %v236, 4294901760
        %2592 = vmatpush.msra.mxu0 %v2591
        %v2593 = vand.u32 %v232, 4294901760
        %2594 = vmatpush.msra.mxu0 %v2593
        %v2595 = vand.u32 %v228, 4294901760
        %2596 = vmatpush.msra.mxu0 %v2595
        %v2597 = vand.u32 %v224, 4294901760
        %2598 = vmatpush.msra.mxu0 %v2597
        %v2599 = vand.u32 %v220, 4294901760
        %2600 = vmatpush.msra.mxu0 %v2599
        %v2601 = vand.u32 %v216, 4294901760
        %2602 = vmatpush.msra.mxu0 %v2601
        %v2603 = vand.u32 %v212, 4294901760
        %2604 = vmatpush.msra.mxu0 %v2603
        %v2605 = vand.u32 %v208, 4294901760
        %2606 = vmatpush.msra.mxu0 %v2605
        %v2607 = vand.u32 %v203, 4294901760
        %v2608 = vsub.f32 %v203, %v2607
        %v2609 = vand.u32 %v2608, 4294901760
        %2610 = vmatmul.f32.gmra.mxu0 %v2609
        %v2611 = vpop.f32.mrf.mxu0
        %v2612 = vadd.f32 %v2573, %v2611
        %2613 = vdwg.mxu0
        %v2614 = vand.u32 %v268, 4294901760
        %v2615 = vsub.f32 %v268, %v2614
        %v2616 = vand.u32 %v2615, 4294901760
        %2617 = vmatpush.msra.mxu0 %v2616
        %v2618 = vand.u32 %v264, 4294901760
        %v2619 = vsub.f32 %v264, %v2618
        %v2620 = vand.u32 %v2619, 4294901760
        %2621 = vmatpush.msra.mxu0 %v2620
        %v2622 = vand.u32 %v260, 4294901760
        %v2623 = vsub.f32 %v260, %v2622
        %v2624 = vand.u32 %v2623, 4294901760
        %2625 = vmatpush.msra.mxu0 %v2624
        %v2626 = vand.u32 %v256, 4294901760
        %v2627 = vsub.f32 %v256, %v2626
        %v2628 = vand.u32 %v2627, 4294901760
        %2629 = vmatpush.msra.mxu0 %v2628
        %v2630 = vand.u32 %v252, 4294901760
        %v2631 = vsub.f32 %v252, %v2630
        %v2632 = vand.u32 %v2631, 4294901760
        %2633 = vmatpush.msra.mxu0 %v2632
        %v2634 = vand.u32 %v248, 4294901760
        %v2635 = vsub.f32 %v248, %v2634
        %v2636 = vand.u32 %v2635, 4294901760
        %2637 = vmatpush.msra.mxu0 %v2636
        %v2638 = vand.u32 %v244, 4294901760
        %v2639 = vsub.f32 %v244, %v2638
        %v2640 = vand.u32 %v2639, 4294901760
        %2641 = vmatpush.msra.mxu0 %v2640
        %v2642 = vand.u32 %v240, 4294901760
        %v2643 = vsub.f32 %v240, %v2642
        %v2644 = vand.u32 %v2643, 4294901760
        %2645 = vmatpush.msra.mxu0 %v2644
        %v2646 = vand.u32 %v236, 4294901760
        %v2647 = vsub.f32 %v236, %v2646
        %v2648 = vand.u32 %v2647, 4294901760
        %2649 = vmatpush.msra.mxu0 %v2648
        %v2650 = vand.u32 %v232, 4294901760
        %v2651 = vsub.f32 %v232, %v2650
        %v2652 = vand.u32 %v2651, 4294901760
        %2653 = vmatpush.msra.mxu0 %v2652
        %v2654 = vand.u32 %v228, 4294901760
        %v2655 = vsub.f32 %v228, %v2654
        %v2656 = vand.u32 %v2655, 4294901760
        %2657 = vmatpush.msra.mxu0 %v2656
        %v2658 = vand.u32 %v224, 4294901760
        %v2659 = vsub.f32 %v224, %v2658
        %v2660 = vand.u32 %v2659, 4294901760
        %2661 = vmatpush.msra.mxu0 %v2660
        %v2662 = vand.u32 %v220, 4294901760
        %v2663 = vsub.f32 %v220, %v2662
        %v2664 = vand.u32 %v2663, 4294901760
        %2665 = vmatpush.msra.mxu0 %v2664
        %v2666 = vand.u32 %v216, 4294901760
        %v2667 = vsub.f32 %v216, %v2666
        %v2668 = vand.u32 %v2667, 4294901760
        %2669 = vmatpush.msra.mxu0 %v2668
        %v2670 = vand.u32 %v212, 4294901760
        %v2671 = vsub.f32 %v212, %v2670
        %v2672 = vand.u32 %v2671, 4294901760
        %2673 = vmatpush.msra.mxu0 %v2672
        %v2674 = vand.u32 %v208, 4294901760
        %v2675 = vsub.f32 %v208, %v2674
        %v2676 = vand.u32 %v2675, 4294901760
        %2677 = vmatpush.msra.mxu0 %v2676
        %v2678 = vand.u32 %v203, 4294901760
        %2679 = vmatmul.f32.gmra.mxu0 %v2678
        %v2680 = vpop.f32.mrf.mxu0
        %v2681 = vadd.f32 %v2612, %v2680
        %2682 = vdwg.mxu0
        %v2683 = vand.u32 %v268, 4294901760
        %2684 = vmatpush.msra.mxu0 %v2683
        %v2685 = vand.u32 %v264, 4294901760
        %2686 = vmatpush.msra.mxu0 %v2685
        %v2687 = vand.u32 %v260, 4294901760
        %2688 = vmatpush.msra.mxu0 %v2687
        %v2689 = vand.u32 %v256, 4294901760
        %2690 = vmatpush.msra.mxu0 %v2689
        %v2691 = vand.u32 %v252, 4294901760
        %2692 = vmatpush.msra.mxu0 %v2691
        %v2693 = vand.u32 %v248, 4294901760
        %2694 = vmatpush.msra.mxu0 %v2693
        %v2695 = vand.u32 %v244, 4294901760
        %2696 = vmatpush.msra.mxu0 %v2695
        %v2697 = vand.u32 %v240, 4294901760
        %2698 = vmatpush.msra.mxu0 %v2697
        %v2699 = vand.u32 %v236, 4294901760
        %2700 = vmatpush.msra.mxu0 %v2699
        %v2701 = vand.u32 %v232, 4294901760
        %2702 = vmatpush.msra.mxu0 %v2701
        %v2703 = vand.u32 %v228, 4294901760
        %2704 = vmatpush.msra.mxu0 %v2703
        %v2705 = vand.u32 %v224, 4294901760
        %2706 = vmatpush.msra.mxu0 %v2705
        %v2707 = vand.u32 %v220, 4294901760
        %2708 = vmatpush.msra.mxu0 %v2707
        %v2709 = vand.u32 %v216, 4294901760
        %2710 = vmatpush.msra.mxu0 %v2709
        %v2711 = vand.u32 %v212, 4294901760
        %2712 = vmatpush.msra.mxu0 %v2711
        %v2713 = vand.u32 %v208, 4294901760
        %2714 = vmatpush.msra.mxu0 %v2713
        %v2715 = vand.u32 %v203, 4294901760
        %2716 = vmatmul.f32.gmra.mxu0 %v2715
        %v2717 = vpop.f32.mrf.mxu0
        %v2718 = vadd.f32 %v2681, %v2717
        %2719 = vdwg.mxu0
        %v2720 = vand.u32 %v332, 4294901760
        %2721 = vmatpush.msra.mxu0 %v2720
        %v2722 = vand.u32 %v328, 4294901760
        %2723 = vmatpush.msra.mxu0 %v2722
        %v2724 = vand.u32 %v324, 4294901760
        %2725 = vmatpush.msra.mxu0 %v2724
        %v2726 = vand.u32 %v320, 4294901760
        %2727 = vmatpush.msra.mxu0 %v2726
        %v2728 = vand.u32 %v316, 4294901760
        %2729 = vmatpush.msra.mxu0 %v2728
        %v2730 = vand.u32 %v312, 4294901760
        %2731 = vmatpush.msra.mxu0 %v2730
        %v2732 = vand.u32 %v308, 4294901760
        %2733 = vmatpush.msra.mxu0 %v2732
        %v2734 = vand.u32 %v304, 4294901760
        %2735 = vmatpush.msra.mxu0 %v2734
        %v2736 = vand.u32 %v300, 4294901760
        %2737 = vmatpush.msra.mxu0 %v2736
        %v2738 = vand.u32 %v296, 4294901760
        %2739 = vmatpush.msra.mxu0 %v2738
        %v2740 = vand.u32 %v292, 4294901760
        %2741 = vmatpush.msra.mxu0 %v2740
        %v2742 = vand.u32 %v288, 4294901760
        %2743 = vmatpush.msra.mxu0 %v2742
        %v2744 = vand.u32 %v284, 4294901760
        %2745 = vmatpush.msra.mxu0 %v2744
        %v2746 = vand.u32 %v280, 4294901760
        %2747 = vmatpush.msra.mxu0 %v2746
        %v2748 = vand.u32 %v276, 4294901760
        %2749 = vmatpush.msra.mxu0 %v2748
        %v2750 = vand.u32 %v272, 4294901760
        %2751 = vmatpush.msra.mxu0 %v2750
        %v2752 = vand.u32 %v204, 4294901760
        %v2753 = vsub.f32 %v204, %v2752
        %v2754 = vand.u32 %v2753, 4294901760
        %v2755 = vsub.f32 %v2753, %v2754
        %v2756 = vand.u32 %v2755, 4294901760
        %2757 = vmatmul.f32.gmra.mxu0 %v2756
        %v2758 = vpop.f32.mrf.mxu0
        %v2759 = vadd.f32 %v2718, %v2758
        %2760 = vdwg.mxu0
        %v2761 = vand.u32 %v332, 4294901760
        %v2762 = vsub.f32 %v332, %v2761
        %v2763 = vand.u32 %v2762, 4294901760
        %v2764 = vsub.f32 %v2762, %v2763
        %v2765 = vand.u32 %v2764, 4294901760
        %2766 = vmatpush.msra.mxu0 %v2765
        %v2767 = vand.u32 %v328, 4294901760
        %v2768 = vsub.f32 %v328, %v2767
        %v2769 = vand.u32 %v2768, 4294901760
        %v2770 = vsub.f32 %v2768, %v2769
        %v2771 = vand.u32 %v2770, 4294901760
        %2772 = vmatpush.msra.mxu0 %v2771
        %v2773 = vand.u32 %v324, 4294901760
        %v2774 = vsub.f32 %v324, %v2773
        %v2775 = vand.u32 %v2774, 4294901760
        %v2776 = vsub.f32 %v2774, %v2775
        %v2777 = vand.u32 %v2776, 4294901760
        %2778 = vmatpush.msra.mxu0 %v2777
        %v2779 = vand.u32 %v320, 4294901760
        %v2780 = vsub.f32 %v320, %v2779
        %v2781 = vand.u32 %v2780, 4294901760
        %v2782 = vsub.f32 %v2780, %v2781
        %v2783 = vand.u32 %v2782, 4294901760
        %2784 = vmatpush.msra.mxu0 %v2783
        %v2785 = vand.u32 %v316, 4294901760
        %v2786 = vsub.f32 %v316, %v2785
        %v2787 = vand.u32 %v2786, 4294901760
        %v2788 = vsub.f32 %v2786, %v2787
        %v2789 = vand.u32 %v2788, 4294901760
        %2790 = vmatpush.msra.mxu0 %v2789
        %v2791 = vand.u32 %v312, 4294901760
        %v2792 = vsub.f32 %v312, %v2791
        %v2793 = vand.u32 %v2792, 4294901760
        %v2794 = vsub.f32 %v2792, %v2793
        %v2795 = vand.u32 %v2794, 4294901760
        %2796 = vmatpush.msra.mxu0 %v2795
        %v2797 = vand.u32 %v308, 4294901760
        %v2798 = vsub.f32 %v308, %v2797
        %v2799 = vand.u32 %v2798, 4294901760
        %v2800 = vsub.f32 %v2798, %v2799
        %v2801 = vand.u32 %v2800, 4294901760
        %2802 = vmatpush.msra.mxu0 %v2801
        %v2803 = vand.u32 %v304, 4294901760
        %v2804 = vsub.f32 %v304, %v2803
        %v2805 = vand.u32 %v2804, 4294901760
        %v2806 = vsub.f32 %v2804, %v2805
        %v2807 = vand.u32 %v2806, 4294901760
        %2808 = vmatpush.msra.mxu0 %v2807
        %v2809 = vand.u32 %v300, 4294901760
        %v2810 = vsub.f32 %v300, %v2809
        %v2811 = vand.u32 %v2810, 4294901760
        %v2812 = vsub.f32 %v2810, %v2811
        %v2813 = vand.u32 %v2812, 4294901760
        %2814 = vmatpush.msra.mxu0 %v2813
        %v2815 = vand.u32 %v296, 4294901760
        %v2816 = vsub.f32 %v296, %v2815
        %v2817 = vand.u32 %v2816, 4294901760
        %v2818 = vsub.f32 %v2816, %v2817
        %v2819 = vand.u32 %v2818, 4294901760
        %2820 = vmatpush.msra.mxu0 %v2819
        %v2821 = vand.u32 %v292, 4294901760
        %v2822 = vsub.f32 %v292, %v2821
        %v2823 = vand.u32 %v2822, 4294901760
        %v2824 = vsub.f32 %v2822, %v2823
        %v2825 = vand.u32 %v2824, 4294901760
        %2826 = vmatpush.msra.mxu0 %v2825
        %v2827 = vand.u32 %v288, 4294901760
        %v2828 = vsub.f32 %v288, %v2827
        %v2829 = vand.u32 %v2828, 4294901760
        %v2830 = vsub.f32 %v2828, %v2829
        %v2831 = vand.u32 %v2830, 4294901760
        %2832 = vmatpush.msra.mxu0 %v2831
        %v2833 = vand.u32 %v284, 4294901760
        %v2834 = vsub.f32 %v284, %v2833
        %v2835 = vand.u32 %v2834, 4294901760
        %v2836 = vsub.f32 %v2834, %v2835
        %v2837 = vand.u32 %v2836, 4294901760
        %2838 = vmatpush.msra.mxu0 %v2837
        %v2839 = vand.u32 %v280, 4294901760
        %v2840 = vsub.f32 %v280, %v2839
        %v2841 = vand.u32 %v2840, 4294901760
        %v2842 = vsub.f32 %v2840, %v2841
        %v2843 = vand.u32 %v2842, 4294901760
        %2844 = vmatpush.msra.mxu0 %v2843
        %v2845 = vand.u32 %v276, 4294901760
        %v2846 = vsub.f32 %v276, %v2845
        %v2847 = vand.u32 %v2846, 4294901760
        %v2848 = vsub.f32 %v2846, %v2847
        %v2849 = vand.u32 %v2848, 4294901760
        %2850 = vmatpush.msra.mxu0 %v2849
        %v2851 = vand.u32 %v272, 4294901760
        %v2852 = vsub.f32 %v272, %v2851
        %v2853 = vand.u32 %v2852, 4294901760
        %v2854 = vsub.f32 %v2852, %v2853
        %v2855 = vand.u32 %v2854, 4294901760
        %2856 = vmatpush.msra.mxu0 %v2855
        %v2857 = vand.u32 %v204, 4294901760
        %2858 = vmatmul.f32.gmra.mxu0 %v2857
        %v2859 = vpop.f32.mrf.mxu0
        %v2860 = vadd.f32 %v2759, %v2859
        %2861 = vdwg.mxu0
        %v2862 = vand.u32 %v332, 4294901760
        %v2863 = vsub.f32 %v332, %v2862
        %2864 = vmatpush.msra.mxu0 %v2863
        %v2865 = vand.u32 %v328, 4294901760
        %v2866 = vsub.f32 %v328, %v2865
        %2867 = vmatpush.msra.mxu0 %v2866
        %v2868 = vand.u32 %v324, 4294901760
        %v2869 = vsub.f32 %v324, %v2868
        %2870 = vmatpush.msra.mxu0 %v2869
        %v2871 = vand.u32 %v320, 4294901760
        %v2872 = vsub.f32 %v320, %v2871
        %2873 = vmatpush.msra.mxu0 %v2872
        %v2874 = vand.u32 %v316, 4294901760
        %v2875 = vsub.f32 %v316, %v2874
        %2876 = vmatpush.msra.mxu0 %v2875
        %v2877 = vand.u32 %v312, 4294901760
        %v2878 = vsub.f32 %v312, %v2877
        %2879 = vmatpush.msra.mxu0 %v2878
        %v2880 = vand.u32 %v308, 4294901760
        %v2881 = vsub.f32 %v308, %v2880
        %2882 = vmatpush.msra.mxu0 %v2881
        %v2883 = vand.u32 %v304, 4294901760
        %v2884 = vsub.f32 %v304, %v2883
        %2885 = vmatpush.msra.mxu0 %v2884
        %v2886 = vand.u32 %v300, 4294901760
        %v2887 = vsub.f32 %v300, %v2886
        %2888 = vmatpush.msra.mxu0 %v2887
        %v2889 = vand.u32 %v296, 4294901760
        %v2890 = vsub.f32 %v296, %v2889
        %2891 = vmatpush.msra.mxu0 %v2890
        %v2892 = vand.u32 %v292, 4294901760
        %v2893 = vsub.f32 %v292, %v2892
        %2894 = vmatpush.msra.mxu0 %v2893
        %v2895 = vand.u32 %v288, 4294901760
        %v2896 = vsub.f32 %v288, %v2895
        %2897 = vmatpush.msra.mxu0 %v2896
        %v2898 = vand.u32 %v284, 4294901760
        %v2899 = vsub.f32 %v284, %v2898
        %2900 = vmatpush.msra.mxu0 %v2899
        %v2901 = vand.u32 %v280, 4294901760
        %v2902 = vsub.f32 %v280, %v2901
        %2903 = vmatpush.msra.mxu0 %v2902
        %v2904 = vand.u32 %v276, 4294901760
        %v2905 = vsub.f32 %v276, %v2904
        %2906 = vmatpush.msra.mxu0 %v2905
        %v2907 = vand.u32 %v272, 4294901760
        %v2908 = vsub.f32 %v272, %v2907
        %2909 = vmatpush.msra.mxu0 %v2908
        %v2910 = vand.u32 %v204, 4294901760
        %v2911 = vsub.f32 %v204, %v2910
        %2912 = vmatmul.f32.gmra.mxu0 %v2911
        %v2913 = vpop.f32.mrf.mxu0
        %v2914 = vadd.f32 %v2860, %v2913
        %2915 = vdwg.mxu0
        %v2916 = vand.u32 %v332, 4294901760
        %2917 = vmatpush.msra.mxu0 %v2916
        %v2918 = vand.u32 %v328, 4294901760
        %2919 = vmatpush.msra.mxu0 %v2918
        %v2920 = vand.u32 %v324, 4294901760
        %2921 = vmatpush.msra.mxu0 %v2920
        %v2922 = vand.u32 %v320, 4294901760
        %2923 = vmatpush.msra.mxu0 %v2922
        %v2924 = vand.u32 %v316, 4294901760
        %2925 = vmatpush.msra.mxu0 %v2924
        %v2926 = vand.u32 %v312, 4294901760
        %2927 = vmatpush.msra.mxu0 %v2926
        %v2928 = vand.u32 %v308, 4294901760
        %2929 = vmatpush.msra.mxu0 %v2928
        %v2930 = vand.u32 %v304, 4294901760
        %2931 = vmatpush.msra.mxu0 %v2930
        %v2932 = vand.u32 %v300, 4294901760
        %2933 = vmatpush.msra.mxu0 %v2932
        %v2934 = vand.u32 %v296, 4294901760
        %2935 = vmatpush.msra.mxu0 %v2934
        %v2936 = vand.u32 %v292, 4294901760
        %2937 = vmatpush.msra.mxu0 %v2936
        %v2938 = vand.u32 %v288, 4294901760
        %2939 = vmatpush.msra.mxu0 %v2938
        %v2940 = vand.u32 %v284, 4294901760
        %2941 = vmatpush.msra.mxu0 %v2940
        %v2942 = vand.u32 %v280, 4294901760
        %2943 = vmatpush.msra.mxu0 %v2942
        %v2944 = vand.u32 %v276, 4294901760
        %2945 = vmatpush.msra.mxu0 %v2944
        %v2946 = vand.u32 %v272, 4294901760
        %2947 = vmatpush.msra.mxu0 %v2946
        %v2948 = vand.u32 %v204, 4294901760
        %v2949 = vsub.f32 %v204, %v2948
        %v2950 = vand.u32 %v2949, 4294901760
        %2951 = vmatmul.f32.gmra.mxu0 %v2950
        %v2952 = vpop.f32.mrf.mxu0
        %v2953 = vadd.f32 %v2914, %v2952
        %2954 = vdwg.mxu0
        %v2955 = vand.u32 %v332, 4294901760
        %v2956 = vsub.f32 %v332, %v2955
        %v2957 = vand.u32 %v2956, 4294901760
        %2958 = vmatpush.msra.mxu0 %v2957
        %v2959 = vand.u32 %v328, 4294901760
        %v2960 = vsub.f32 %v328, %v2959
        %v2961 = vand.u32 %v2960, 4294901760
        %2962 = vmatpush.msra.mxu0 %v2961
        %v2963 = vand.u32 %v324, 4294901760
        %v2964 = vsub.f32 %v324, %v2963
        %v2965 = vand.u32 %v2964, 4294901760
        %2966 = vmatpush.msra.mxu0 %v2965
        %v2967 = vand.u32 %v320, 4294901760
        %v2968 = vsub.f32 %v320, %v2967
        %v2969 = vand.u32 %v2968, 4294901760
        %2970 = vmatpush.msra.mxu0 %v2969
        %v2971 = vand.u32 %v316, 4294901760
        %v2972 = vsub.f32 %v316, %v2971
        %v2973 = vand.u32 %v2972, 4294901760
        %2974 = vmatpush.msra.mxu0 %v2973
        %v2975 = vand.u32 %v312, 4294901760
        %v2976 = vsub.f32 %v312, %v2975
        %v2977 = vand.u32 %v2976, 4294901760
        %2978 = vmatpush.msra.mxu0 %v2977
        %v2979 = vand.u32 %v308, 4294901760
        %v2980 = vsub.f32 %v308, %v2979
        %v2981 = vand.u32 %v2980, 4294901760
        %2982 = vmatpush.msra.mxu0 %v2981
        %v2983 = vand.u32 %v304, 4294901760
        %v2984 = vsub.f32 %v304, %v2983
        %v2985 = vand.u32 %v2984, 4294901760
        %2986 = vmatpush.msra.mxu0 %v2985
        %v2987 = vand.u32 %v300, 4294901760
        %v2988 = vsub.f32 %v300, %v2987
        %v2989 = vand.u32 %v2988, 4294901760
        %2990 = vmatpush.msra.mxu0 %v2989
        %v2991 = vand.u32 %v296, 4294901760
        %v2992 = vsub.f32 %v296, %v2991
        %v2993 = vand.u32 %v2992, 4294901760
        %2994 = vmatpush.msra.mxu0 %v2993
        %v2995 = vand.u32 %v292, 4294901760
        %v2996 = vsub.f32 %v292, %v2995
        %v2997 = vand.u32 %v2996, 4294901760
        %2998 = vmatpush.msra.mxu0 %v2997
        %v2999 = vand.u32 %v288, 4294901760
        %v3000 = vsub.f32 %v288, %v2999
        %v3001 = vand.u32 %v3000, 4294901760
        %3002 = vmatpush.msra.mxu0 %v3001
        %v3003 = vand.u32 %v284, 4294901760
        %v3004 = vsub.f32 %v284, %v3003
        %v3005 = vand.u32 %v3004, 4294901760
        %3006 = vmatpush.msra.mxu0 %v3005
        %v3007 = vand.u32 %v280, 4294901760
        %v3008 = vsub.f32 %v280, %v3007
        %v3009 = vand.u32 %v3008, 4294901760
        %3010 = vmatpush.msra.mxu0 %v3009
        %v3011 = vand.u32 %v276, 4294901760
        %v3012 = vsub.f32 %v276, %v3011
        %v3013 = vand.u32 %v3012, 4294901760
        %3014 = vmatpush.msra.mxu0 %v3013
        %v3015 = vand.u32 %v272, 4294901760
        %v3016 = vsub.f32 %v272, %v3015
        %v3017 = vand.u32 %v3016, 4294901760
        %3018 = vmatpush.msra.mxu0 %v3017
        %v3019 = vand.u32 %v204, 4294901760
        %3020 = vmatmul.f32.gmra.mxu0 %v3019
        %v3021 = vpop.f32.mrf.mxu0
        %v3022 = vadd.f32 %v2953, %v3021
        %3023 = vdwg.mxu0
        %v3024 = vand.u32 %v332, 4294901760
        %3025 = vmatpush.msra.mxu0 %v3024
        %v3026 = vand.u32 %v328, 4294901760
        %3027 = vmatpush.msra.mxu0 %v3026
        %v3028 = vand.u32 %v324, 4294901760
        %3029 = vmatpush.msra.mxu0 %v3028
        %v3030 = vand.u32 %v320, 4294901760
        %3031 = vmatpush.msra.mxu0 %v3030
        %v3032 = vand.u32 %v316, 4294901760
        %3033 = vmatpush.msra.mxu0 %v3032
        %v3034 = vand.u32 %v312, 4294901760
        %3035 = vmatpush.msra.mxu0 %v3034
        %v3036 = vand.u32 %v308, 4294901760
        %3037 = vmatpush.msra.mxu0 %v3036
        %v3038 = vand.u32 %v304, 4294901760
        %3039 = vmatpush.msra.mxu0 %v3038
        %v3040 = vand.u32 %v300, 4294901760
        %3041 = vmatpush.msra.mxu0 %v3040
        %v3042 = vand.u32 %v296, 4294901760
        %3043 = vmatpush.msra.mxu0 %v3042
        %v3044 = vand.u32 %v292, 4294901760
        %3045 = vmatpush.msra.mxu0 %v3044
        %v3046 = vand.u32 %v288, 4294901760
        %3047 = vmatpush.msra.mxu0 %v3046
        %v3048 = vand.u32 %v284, 4294901760
        %3049 = vmatpush.msra.mxu0 %v3048
        %v3050 = vand.u32 %v280, 4294901760
        %3051 = vmatpush.msra.mxu0 %v3050
        %v3052 = vand.u32 %v276, 4294901760
        %3053 = vmatpush.msra.mxu0 %v3052
        %v3054 = vand.u32 %v272, 4294901760
        %3055 = vmatpush.msra.mxu0 %v3054
        %v3056 = vand.u32 %v204, 4294901760
        %3057 = vmatmul.f32.gmra.mxu0 %v3056
        %v3058 = vpop.f32.mrf.mxu0
        %v3059 = vadd.f32 %v3022, %v3058
        %3060 = vdwg.mxu0
        %3061 = vst [vmem:[%s200] sm:$0xff] %v1013
        %3062 = vst [vmem:[%s200 + $0x8] sm:$0xff] %v1695
        %3063 = vst [vmem:[%s200 + $0x10] sm:$0xff] %v2377
        %3064 = vst [vmem:[%s200 + $0x18] sm:$0xff] %v3059
        %s3065 = sand.u32 %s94, 1
        %s3066 = scalar_lea.sflag [#allocation4], %s3065
        %s3067 = sand.u32 %s94, 1
        %s3068 = smul.addr %s3067, 32
        %s3069 = scalar_lea.vmem [#allocation7], %s3068
        // Predicated region
        $region37: #{tpu_custom_call.1} parent=27 // pred_check
          %p3070 = pneg %p104
        $region38: #{tpu_custom_call.1} parent=27 // pred_check_branch
          %3072 = sbr.rel (%p3070) target = $region40
        $region39: #{tpu_custom_call.1} parent=27 // pred_region
          %s3073 = smul.u32 4, %s25
          %3075 = vsyncadd %s3066, 0
          %s3076 = smul.addr %s24, 8
          %s3077 = sadd.s32 %s3073, %s3076
          %s3078 = smul.addr %s3077, 8
          %s3079 = scalar_lea.hbm %s2, %s3078
          %s3081 = sshll.u32 %s3069, 4
          %s3082 = int_to_ptr.vmem [resolvable:$true] %s3081
          %s3083 = sshll.u32 %s3079, 4
          %s3084 = int_to_ptr.hbm [resolvable:$true] %s3083
          %3086 = dma.vmem_to_hbm [thread:$0]  %s3082, 512, %s3084, %s3066
        $region40: #{tpu_custom_call.1} parent=27 // pred_fallthru
          _
      $region28: #{tpu_custom_call.1} parent=5 // pred_fallthru
        _
      %p3087 = scmp.le.s32.totalorder 2, %s15
      // Predicated region
      $region41: #{tpu_custom_call.1} parent=5 // pred_check
        %p3088 = pneg %p3087
      $region42: #{tpu_custom_call.1} parent=5 // pred_check_branch
        %3090 = sbr.rel (%p3088) target = $region44
      $region43: #{tpu_custom_call.1} parent=5 // pred_region
        %s3091 = ssub.s32 %s15, 2
        // Predicated region
        $region45: #{tpu_custom_call.1} parent=43 // pred_check
          %p3092 = pneg %p110
        $region46: #{tpu_custom_call.1} parent=43 // pred_check_branch
          %3094 = sbr.rel (%p3092) target = $region48
        $region47: #{tpu_custom_call.1} parent=43 // pred_region
          %s3095 = sand.u32 %s95, 1
          %s3096 = scalar_lea.sflag [#allocation4], %s3095
          %s3097 = sand.u32 %s95, 1
          %s3098 = smul.addr %s3097, 32
          %s3099 = scalar_lea.vmem [#allocation7], %s3098
          %3101 = dma.done %s3096, 512
        $region48: #{tpu_custom_call.1} parent=43 // pred_fallthru
          _
      $region44: #{tpu_custom_call.1} parent=5 // pred_fallthru
        _
    $region6: #{tpu_custom_call.1} parent=1 // loop_footer
      %s19 = sadd.s32 1, %s15
    $region7: #{tpu_custom_call.1} parent=1 // loop_footer_branch
      %14 = sbr.rel target = $region3
    $region8: #{tpu_custom_call.1} parent=1 // loop_exit
      _
    %3102 = vsyncpa [#allocation3], 1
    %s3103 = scalar_lea.sflag [#allocation3], 1
    %3104 = vsyncpa %s3103, 1
    %3105 = vsyncpa [#allocation6], 1
    %s3106 = scalar_lea.sflag [#allocation6], 1
    %3107 = vsyncpa %s3106, 1
    %3108 = vsyncpa [#allocation4], 1
    %s3109 = scalar_lea.sflag [#allocation4], 1
    %3110 = vsyncpa %s3109, 1

// kernel: tpu_custom_call.1
$region0: #{tpu_custom_call.1}
  #allocation0 [shape = 'u32[]', space=smem, size = 0x4, offset = 0x4, fixed_abs, tag = 'smem constant byte address 0x4 - core index']
  #allocation1 [shape = 'u32[72,128]{1,0:T(1,128)}', space=vmem, size = 0x9000, scoped, tag = 'internal scratch']
  %s0 = inlined_call_operand.hbm [shape: f32[8,256], index: 0, kind: input, shape index: {}]
  %s1 = inlined_call_operand.hbm [shape: f32[256,1024], index: 1, kind: input, shape index: {}]
  %s2 = inlined_call_operand.hbm [shape: f32[8,1024], index: 2, kind: output, shape index: {}]
  %s3 = sld [smem:[#allocation0]]
  $region49: #{tpu_custom_call.1} parent=0
    _
  %s5 = ssub.s32 1, %s3
  %s6 = scalar_select 0, %s5, %s3
  $region1: #{tpu_custom_call.1} parent=0
    #allocation2 [shape = 'u8[8192]{0}', space=vmem, size = 0x2000, scoped, tag = 'input window, operand 0, single buffered']
    #allocation3 [shape = 's32[2]{0}', space=sflag, size = 0x8, scoped, tag = 'scoped memory for tpu_custom_call.1']
    #allocation4 [shape = 's32[2]{0}', space=sflag, size = 0x8, scoped, tag = 'scoped memory for tpu_custom_call.1']
    #allocation5 [shape = 'u8[1048576]{0}', space=vmem, size = 0x100000, scoped, tag = 'input window, operand 1']
    #allocation6 [shape = 's32[2]{0}', space=sflag, size = 0x8, scoped, tag = 'scoped memory for tpu_custom_call.1']
    #allocation7 [shape = 'u8[32768]{0}', space=vmem, size = 0x8000, scoped, tag = 'output window, operand 0']
    %7 = vsyncpa [#allocation3], 0
    %8 = vsyncpa [#allocation6], 0
    %s9 = scalar_lea.sflag [#allocation6], 1
    %10 = vsyncpa %s9, 0
    %11 = vsyncpa [#allocation4], 0
    %s12 = scalar_lea.sflag [#allocation4], 1
    %13 = vsyncpa %s12, 0
    loop: start=0, step=1, limit=4
    $region2: #{tpu_custom_call.1} parent=1 // loop_pre_header
      _
    $region3: #{tpu_custom_call.1} parent=1 // loop_header
      %s15 = sphi 0, %s19
      %p16 = scmp.ge.s32.totalorder %s15, 4
      %s22 = sphi 0, %s34
      %s23 = sphi 0, %s30
      %s24 = sphi 0, %s22
      %s25 = sphi 0, %s23
      %s26 = sphi 0, %s24
      %s27 = sphi 0, %s25
      %s37 = sphi 0, %s39
      %s40 = sphi 0, %s37
      %s41 = sphi 0, %s40
      %s57 = sphi 0, %s41
      %s63 = sphi 0, %s65
      %s66 = sphi 0, %s63
      %s67 = sphi 0, %s66
      %s83 = sphi 0, %s67
      %s91 = sphi 0, %s93
      %s94 = sphi 0, %s91
      %s95 = sphi 0, %s94
      %s111 = sphi 0, %s95
    $region4: #{tpu_custom_call.1} parent=1 // loop_header_branch
      %18 = sbr.rel (%p16) target = $region8
    $region5: #{tpu_custom_call.1} parent=1 // loop_body
      %s20 = ssub.s32 %s15, 1
      %s21 = ssub.s32 %s15, 2
      %s28 = sadd.s32 1, %s23
      %p29 = scmp.ge.s32.totalorder %s28, 2
      %s30 = scalar_select %p29, 0, %s28
      %s31 = sadd.s32 1, %s22
      %s32 = scalar_select %p29, %s31, %s22
      %p33 = scmp.ge.s32.totalorder %s32, 1
      %s34 = scalar_select %p33, 0, %s32
      %s35 = ssub.s32 %s22, %s34
      %p36 = scmp.eq.s32.totalorder %s35, 0
      %s38 = sadd.s32 %s37, 1
      %s39 = scalar_select %p36, %s37, %s38
      %p42 = pneg %p36
      %p43 = scmp.eq.s32.totalorder %s15, 1
      %p44 = por %p42, %p43
      %p45 = scmp.ne.s32.totalorder %s37, %s40
      %p46 = scmp.eq.s32.totalorder %s15, 0
      %p47 = por %p45, %p46
      %p48 = scmp.ne.s32.totalorder %s37, %s40
      %p49 = scmp.eq.s32.totalorder %s20, 1
      %p50 = por %p48, %p49
      %p51 = scmp.ne.s32.totalorder %s40, %s41
      %p52 = scmp.eq.s32.totalorder %s20, 0
      %p53 = por %p51, %p52
      %p54 = scmp.ne.s32.totalorder %s40, %s41
      %p55 = scmp.eq.s32.totalorder %s21, 1
      %p56 = por %p54, %p55
      %p58 = scmp.ne.s32.totalorder %s41, %s57
      %p59 = scmp.eq.s32.totalorder %s21, 0
      %p60 = por %p58, %p59
      %s61 = ssub.s32 %s23, %s30
      %p62 = scmp.eq.s32.totalorder %s61, 0
      %s64 = sadd.s32 %s63, 1
      %s65 = scalar_select %p62, %s63, %s64
      %p68 = pneg %p62
      %p69 = scmp.eq.s32.totalorder %s15, 1
      %p70 = por %p68, %p69
      %p71 = scmp.ne.s32.totalorder %s63, %s66
      %p72 = scmp.eq.s32.totalorder %s15, 0
      %p73 = por %p71, %p72
      %p74 = scmp.ne.s32.totalorder %s63, %s66
      %p75 = scmp.eq.s32.totalorder %s20, 1
      %p76 = por %p74, %p75
      %p77 = scmp.ne.s32.totalorder %s66, %s67
      %p78 = scmp.eq.s32.totalorder %s20, 0
      %p79 = por %p77, %p78
      %p80 = scmp.ne.s32.totalorder %s66, %s67
      %p81 = scmp.eq.s32.totalorder %s21, 1
      %p82 = por %p80, %p81
      %p84 = scmp.ne.s32.totalorder %s67, %s83
      %p85 = scmp.eq.s32.totalorder %s21, 0
      %p86 = por %p84, %p85
      %s87 = ssub.s32 %s22, %s34
      %s88 = ssub.s32 %s23, %s30
      %s89 = sor.u32 %s87, %s88
      %p90 = scmp.eq.s32.totalorder %s89, 0
      %s92 = sadd.s32 %s91, 1
      %s93 = scalar_select %p90, %s91, %s92
      %p96 = pneg %p90
      %p97 = scmp.eq.s32.totalorder %s15, 1
      %p98 = por %p96, %p97
      %p99 = scmp.ne.s32.totalorder %s91, %s94
      %p100 = scmp.eq.s32.totalorder %s15, 0
      %p101 = por %p99, %p100
      %p102 = scmp.ne.s32.totalorder %s91, %s94
      %p103 = scmp.eq.s32.totalorder %s20, 1
      %p104 = por %p102, %p103
      %p105 = scmp.ne.s32.totalorder %s94, %s95
      %p106 = scmp.eq.s32.totalorder %s20, 0
      %p107 = por %p105, %p106
      %p108 = scmp.ne.s32.totalorder %s94, %s95
      %p109 = scmp.eq.s32.totalorder %s21, 1
      %p110 = por %p108, %p109
      %p112 = scmp.ne.s32.totalorder %s95, %s111
      %p113 = scmp.eq.s32.totalorder %s21, 0
      %p114 = por %p112, %p113
      %p115 = scmp.le.s32.totalorder 1, %s15
      %p116 = scmp.lt.s32.totalorder %s15, 3
      %p117 = pnand %p115, %p116
      %p118 = pneg %p117
      // Predicated region
      $region9: #{tpu_custom_call.1} parent=5 // pred_check
        _
      $region10: #{tpu_custom_call.1} parent=5 // pred_check_branch
        %120 = sbr.rel (%p117) target = $region12
      $region11: #{tpu_custom_call.1} parent=5 // pred_region
        %s121 = ssub.s32 %s15, 1
        // Predicated region
        $region13: #{tpu_custom_call.1} parent=11 // pred_check
          %p122 = pneg %p53
        $region14: #{tpu_custom_call.1} parent=11 // pred_check_branch
          %124 = sbr.rel (%p122) target = $region16
        $region15: #{tpu_custom_call.1} parent=11 // pred_region
          %126 = vsyncadd [#allocation3], 0
          %s127 = smul.addr %s24, 2
          %s128 = smul.addr %s127, 8
          %s129 = scalar_lea.hbm %s0, %s128
          %s131 = sshll.u32 %s129, 4
          %s132 = int_to_ptr.hbm [resolvable:$true] %s131
          %s133 = sshll.u32 [#allocation2], 4
          %s134 = int_to_ptr.vmem [resolvable:$true] %s133
          %136 = dma.hbm_to_vmem [thread:$0]  %s132, 256, %s134, [#allocation3]
        $region16: #{tpu_custom_call.1} parent=11 // pred_fallthru
          _
      $region12: #{tpu_custom_call.1} parent=5 // pred_fallthru
        _
      %p137 = scmp.lt.s32.totalorder %s15, 2
      // Predicated region
      $region17: #{tpu_custom_call.1} parent=5 // pred_check
        %p138 = pneg %p137
      $region18: #{tpu_custom_call.1} parent=5 // pred_check_branch
        %140 = sbr.rel (%p138) target = $region20
      $region19: #{tpu_custom_call.1} parent=5 // pred_region
        // Predicated region
        $region21: #{tpu_custom_call.1} parent=19 // pred_check
          %p141 = pneg %p73
        $region22: #{tpu_custom_call.1} parent=19 // pred_check_branch
          %143 = sbr.rel (%p141) target = $region24
        $region23: #{tpu_custom_call.1} parent=19 // pred_region
          %s144 = sand.u32 %s63, 1
          %s145 = scalar_lea.sflag [#allocation6], %s144
          %s146 = sand.u32 %s63, 1
          %s147 = smul.addr %s146, 1024
          %s148 = scalar_lea.vmem [#allocation5], %s147
          %s149 = smul.u32 4, %s23
          %151 = vsyncadd %s145, 0
          %s152 = smul.addr %s149, 8
          %s153 = scalar_lea.hbm %s1, %s152
          %s154 = sshll.u32 %s153, 4
          %s155 = int_to_ptr.hbm [resolvable:$true] %s154
          %s156 = sshll.u32 %s148, 4
          %s157 = int_to_ptr.vmem [resolvable:$true] %s156
          %162 = dma.hbm_to_vmem [thread:$0]  %s155, 16384, %s157, %s145, 1024, 512, 32
        $region24: #{tpu_custom_call.1} parent=19 // pred_fallthru
          _
      $region20: #{tpu_custom_call.1} parent=5 // pred_fallthru
        _
      %p163 = scmp.le.s32.totalorder 1, %s15
      %p164 = scmp.lt.s32.totalorder %s15, 3
      %p165 = pnand %p163, %p164
      %p166 = pneg %p165
      // Predicated region
      $region25: #{tpu_custom_call.1} parent=5 // pred_check
        _
      $region26: #{tpu_custom_call.1} parent=5 // pred_check_branch
        %168 = sbr.rel (%p165) target = $region28
      $region27: #{tpu_custom_call.1} parent=5 // pred_region
        %s169 = ssub.s32 %s15, 1
        // Predicated region
        $region29: #{tpu_custom_call.1} parent=27 // pred_check
          %p170 = pneg %p53
        $region30: #{tpu_custom_call.1} parent=27 // pred_check_branch
          %172 = sbr.rel (%p170) target = $region32
        $region31: #{tpu_custom_call.1} parent=27 // pred_region
          %174 = dma.done [#allocation3], 256
        $region32: #{tpu_custom_call.1} parent=27 // pred_fallthru
          _
        %s175 = sand.u32 %s66, 1
        %s176 = scalar_lea.sflag [#allocation6], %s175
        %s177 = sand.u32 %s66, 1
        %s178 = smul.addr %s177, 1024
        %s179 = scalar_lea.vmem [#allocation5], %s178
        // Predicated region
        $region33: #{tpu_custom_call.1} parent=27 // pred_check
          %p180 = pneg %p79
        $region34: #{tpu_custom_call.1} parent=27 // pred_check_branch
          %182 = sbr.rel (%p180) target = $region36
        $region35: #{tpu_custom_call.1} parent=27 // pred_region
          %184 = dma.done %s176, 16384
        $region36: #{tpu_custom_call.1} parent=27 // pred_fallthru
          _
        %p185 = pneg %p53
        %p186 = pneg %p50
        %s187 = sand.u32 %s66, 1
        %s188 = scalar_lea.sflag [#allocation6], %s187
        %s189 = sand.u32 %s66, 1
        %s190 = smul.addr %s189, 1024
        %s191 = scalar_lea.vmem [#allocation5], %s190
        %p192 = pneg %p79
        %p193 = pneg %p76
        %p194 = pneg %p107
        %p195 = pneg %p104
        %s196 = sand.u32 %s94, 1
        %s197 = scalar_lea.sflag [#allocation4], %s196
        %s198 = sand.u32 %s94, 1
        %s199 = smul.addr %s198, 32
        %s200 = scalar_lea.vmem [#allocation7], %s199
        %s201 = smul.u32 4, %s25
        %s202 = smul.u32 4, %s25
        %v203 = vld [vmem:[#allocation2] sm:$0xff]
        %v204 = vld [vmem:[#allocation2 + $0x8] sm:$0xff]
        %v205 = vld [vmem:[%s179] sm:$0xff]
        %v206 = vld [vmem:[%s179 + $0x8] sm:$0xff]
        %v207 = vld [vmem:[%s179 + $0x10] sm:$0xff]
        %v208 = vld [vmem:[%s179 + $0x18] sm:$0xff]
        %v209 = vld [vmem:[%s179 + $0x20] sm:$0xff]
        %v210 = vld [vmem:[%s179 + $0x28] sm:$0xff]
        %v211 = vld [vmem:[%s179 + $0x30] sm:$0xff]
        %v212 = vld [vmem:[%s179 + $0x38] sm:$0xff]
        %v213 = vld [vmem:[%s179 + $0x40] sm:$0xff]
        %v214 = vld [vmem:[%s179 + $0x48] sm:$0xff]
        %v215 = vld [vmem:[%s179 + $0x50] sm:$0xff]
        %v216 = vld [vmem:[%s179 + $0x58] sm:$0xff]
        %v217 = vld [vmem:[%s179 + $0x60] sm:$0xff]
        %v218 = vld [vmem:[%s179 + $0x68] sm:$0xff]
        %v219 = vld [vmem:[%s179 + $0x70] sm:$0xff]
        %v220 = vld [vmem:[%s179 + $0x78] sm:$0xff]
        %v221 = vld [vmem:[%s179 + $0x80] sm:$0xff]
        %v222 = vld [vmem:[%s179 + $0x88] sm:$0xff]
        %v223 = vld [vmem:[%s179 + $0x90] sm:$0xff]
        %v224 = vld [vmem:[%s179 + $0x98] sm:$0xff]
        %v225 = vld [vmem:[%s179 + $0xa0] sm:$0xff]
        %v226 = vld [vmem:[%s179 + $0xa8] sm:$0xff]
        %v227 = vld [vmem:[%s179 + $0xb0] sm:$0xff]
        %v228 = vld [vmem:[%s179 + $0xb8] sm:$0xff]
        %v229 = vld [vmem:[%s179 + $0xc0] sm:$0xff]
        %v230 = vld [vmem:[%s179 + $0xc8] sm:$0xff]
        %v231 = vld [vmem:[%s179 + $0xd0] sm:$0xff]
        %v232 = vld [vmem:[%s179 + $0xd8] sm:$0xff]
        %v233 = vld [vmem:[%s179 + $0xe0] sm:$0xff]
        %v234 = vld [vmem:[%s179 + $0xe8] sm:$0xff]
        %v235 = vld [vmem:[%s179 + $0xf0] sm:$0xff]
        %v236 = vld [vmem:[%s179 + $0xf8] sm:$0xff]
        %v237 = vld [vmem:[%s179 + $0x100] sm:$0xff]
        %v238 = vld [vmem:[%s179 + $0x108] sm:$0xff]
        %v239 = vld [vmem:[%s179 + $0x110] sm:$0xff]
        %v240 = vld [vmem:[%s179 + $0x118] sm:$0xff]
        %v241 = vld [vmem:[%s179 + $0x120] sm:$0xff]
        %v242 = vld [vmem:[%s179 + $0x128] sm:$0xff]
        %v243 = vld [vmem:[%s179 + $0x130] sm:$0xff]
        %v244 = vld [vmem:[%s179 + $0x138] sm:$0xff]
        %v245 = vld [vmem:[%s179 + $0x140] sm:$0xff]
        %v246 = vld [vmem:[%s179 + $0x148] sm:$0xff]
        %v247 = vld [vmem:[%s179 + $0x150] sm:$0xff]
        %v248 = vld [vmem:[%s179 + $0x158] sm:$0xff]
        %v249 = vld [vmem:[%s179 + $0x160] sm:$0xff]
        %v250 = vld [vmem:[%s179 + $0x168] sm:$0xff]
        %v251 = vld [vmem:[%s179 + $0x170] sm:$0xff]
        %v252 = vld [vmem:[%s179 + $0x178] sm:$0xff]
        %v253 = vld [vmem:[%s179 + $0x180] sm:$0xff]
        %v254 = vld [vmem:[%s179 + $0x188] sm:$0xff]
        %v255 = vld [vmem:[%s179 + $0x190] sm:$0xff]
        %v256 = vld [vmem:[%s179 + $0x198] sm:$0xff]
        %v257 = vld [vmem:[%s179 + $0x1a0] sm:$0xff]
        %v258 = vld [vmem:[%s179 + $0x1a8] sm:$0xff]
        %v259 = vld [vmem:[%s179 + $0x1b0] sm:$0xff]
        %v260 = vld [vmem:[%s179 + $0x1b8] sm:$0xff]
        %v261 = vld [vmem:[%s179 + $0x1c0] sm:$0xff]
        %v262 = vld [vmem:[%s179 + $0x1c8] sm:$0xff]
        %v263 = vld [vmem:[%s179 + $0x1d0] sm:$0xff]
        %v264 = vld [vmem:[%s179 + $0x1d8] sm:$0xff]
        %v265 = vld [vmem:[%s179 + $0x1e0] sm:$0xff]
        %v266 = vld [vmem:[%s179 + $0x1e8] sm:$0xff]
        %v267 = vld [vmem:[%s179 + $0x1f0] sm:$0xff]
        %v268 = vld [vmem:[%s179 + $0x1f8] sm:$0xff]
        %v269 = vld [vmem:[%s179 + $0x200] sm:$0xff]
        %v270 = vld [vmem:[%s179 + $0x208] sm:$0xff]
        %v271 = vld [vmem:[%s179 + $0x210] sm:$0xff]
        %v272 = vld [vmem:[%s179 + $0x218] sm:$0xff]
        %v273 = vld [vmem:[%s179 + $0x220] sm:$0xff]
        %v274 = vld [vmem:[%s179 + $0x228] sm:$0xff]
        %v275 = vld [vmem:[%s179 + $0x230] sm:$0xff]
        %v276 = vld [vmem:[%s179 + $0x238] sm:$0xff]
        %v277 = vld [vmem:[%s179 + $0x240] sm:$0xff]
        %v278 = vld [vmem:[%s179 + $0x248] sm:$0xff]
        %v279 = vld [vmem:[%s179 + $0x250] sm:$0xff]
        %v280 = vld [vmem:[%s179 + $0x258] sm:$0xff]
        %v281 = vld [vmem:[%s179 + $0x260] sm:$0xff]
        %v282 = vld [vmem:[%s179 + $0x268] sm:$0xff]
        %v283 = vld [vmem:[%s179 + $0x270] sm:$0xff]
        %v284 = vld [vmem:[%s179 + $0x278] sm:$0xff]
        %v285 = vld [vmem:[%s179 + $0x280] sm:$0xff]
        %v286 = vld [vmem:[%s179 + $0x288] sm:$0xff]
        %v287 = vld [vmem:[%s179 + $0x290] sm:$0xff]
        %v288 = vld [vmem:[%s179 + $0x298] sm:$0xff]
        %v289 = vld [vmem:[%s179 + $0x2a0] sm:$0xff]
        %v290 = vld [vmem:[%s179 + $0x2a8] sm:$0xff]
        %v291 = vld [vmem:[%s179 + $0x2b0] sm:$0xff]
        %v292 = vld [vmem:[%s179 + $0x2b8] sm:$0xff]
        %v293 = vld [vmem:[%s179 + $0x2c0] sm:$0xff]
        %v294 = vld [vmem:[%s179 + $0x2c8] sm:$0xff]
        %v295 = vld [vmem:[%s179 + $0x2d0] sm:$0xff]
        %v296 = vld [vmem:[%s179 + $0x2d8] sm:$0xff]
        %v297 = vld [vmem:[%s179 + $0x2e0] sm:$0xff]
        %v298 = vld [vmem:[%s179 + $0x2e8] sm:$0xff]
        %v299 = vld [vmem:[%s179 + $0x2f0] sm:$0xff]
        %v300 = vld [vmem:[%s179 + $0x2f8] sm:$0xff]
        %v301 = vld [vmem:[%s179 + $0x300] sm:$0xff]
        %v302 = vld [vmem:[%s179 + $0x308] sm:$0xff]
        %v303 = vld [vmem:[%s179 + $0x310] sm:$0xff]
        %v304 = vld [vmem:[%s179 + $0x318] sm:$0xff]
        %v305 = vld [vmem:[%s179 + $0x320] sm:$0xff]
        %v306 = vld [vmem:[%s179 + $0x328] sm:$0xff]
        %v307 = vld [vmem:[%s179 + $0x330] sm:$0xff]
        %v308 = vld [vmem:[%s179 + $0x338] sm:$0xff]
        %v309 = vld [vmem:[%s179 + $0x340] sm:$0xff]
        %v310 = vld [vmem:[%s179 + $0x348] sm:$0xff]
        %v311 = vld [vmem:[%s179 + $0x350] sm:$0xff]
        %v312 = vld [vmem:[%s179 + $0x358] sm:$0xff]
        %v313 = vld [vmem:[%s179 + $0x360] sm:$0xff]
        %v314 = vld [vmem:[%s179 + $0x368] sm:$0xff]
        %v315 = vld [vmem:[%s179 + $0x370] sm:$0xff]
        %v316 = vld [vmem:[%s179 + $0x378] sm:$0xff]
        %v317 = vld [vmem:[%s179 + $0x380] sm:$0xff]
        %v318 = vld [vmem:[%s179 + $0x388] sm:$0xff]
        %v319 = vld [vmem:[%s179 + $0x390] sm:$0xff]
        %v320 = vld [vmem:[%s179 + $0x398] sm:$0xff]
        %v321 = vld [vmem:[%s179 + $0x3a0] sm:$0xff]
        %v322 = vld [vmem:[%s179 + $0x3a8] sm:$0xff]
        %v323 = vld [vmem:[%s179 + $0x3b0] sm:$0xff]
        %v324 = vld [vmem:[%s179 + $0x3b8] sm:$0xff]
        %v325 = vld [vmem:[%s179 + $0x3c0] sm:$0xff]
        %v326 = vld [vmem:[%s179 + $0x3c8] sm:$0xff]
        %v327 = vld [vmem:[%s179 + $0x3d0] sm:$0xff]
        %v328 = vld [vmem:[%s179 + $0x3d8] sm:$0xff]
        %v329 = vld [vmem:[%s179 + $0x3e0] sm:$0xff]
        %v330 = vld [vmem:[%s179 + $0x3e8] sm:$0xff]
        %v331 = vld [vmem:[%s179 + $0x3f0] sm:$0xff]
        %v332 = vld [vmem:[%s179 + $0x3f8] sm:$0xff]
        %333 = vmatpush.msra.mxu0 %v265
        %334 = vmatpush.msra.mxu0 %v261
        %335 = vmatpush.msra.mxu0 %v257
        %336 = vmatpush.msra.mxu0 %v253
        %337 = vmatpush.msra.mxu0 %v249
        %338 = vmatpush.msra.mxu0 %v245
        %339 = vmatpush.msra.mxu0 %v241
        %340 = vmatpush.msra.mxu0 %v237
        %341 = vmatpush.msra.mxu0 %v233
        %342 = vmatpush.msra.mxu0 %v229
        %343 = vmatpush.msra.mxu0 %v225
        %344 = vmatpush.msra.mxu0 %v221
        %345 = vmatpush.msra.mxu0 %v217
        %346 = vmatpush.msra.mxu0 %v213
        %347 = vmatpush.msra.mxu0 %v209
        %348 = vmatpush.msra.mxu0 %v205
        %349 = vmatmul.f32.gmra.mxu0 %v203
        %v350 = vpop.f32.mrf.mxu0
        %v351 = vadd.f32 0.0, %v350
        %352 = vdwg.mxu0
        %353 = vmatpush.msra.mxu0 %v329
        %354 = vmatpush.msra.mxu0 %v325
        %355 = vmatpush.msra.mxu0 %v321
        %356 = vmatpush.msra.mxu0 %v317
        %357 = vmatpush.msra.mxu0 %v313
        %358 = vmatpush.msra.mxu0 %v309
        %359 = vmatpush.msra.mxu0 %v305
        %360 = vmatpush.msra.mxu0 %v301
        %361 = vmatpush.msra.mxu0 %v297
        %362 = vmatpush.msra.mxu0 %v293
        %363 = vmatpush.msra.mxu0 %v289
        %364 = vmatpush.msra.mxu0 %v285
        %365 = vmatpush.msra.mxu0 %v281
        %366 = vmatpush.msra.mxu0 %v277
        %367 = vmatpush.msra.mxu0 %v273
        %368 = vmatpush.msra.mxu0 %v269
        %369 = vmatmul.f32.gmra.mxu0 %v204
        %v370 = vpop.f32.mrf.mxu0
        %v371 = vadd.f32 %v351, %v370
        %372 = vdwg.mxu0
        %373 = vmatpush.msra.mxu0 %v266
        %374 = vmatpush.msra.mxu0 %v262
        %375 = vmatpush.msra.mxu0 %v258
        %376 = vmatpush.msra.mxu0 %v254
        %377 = vmatpush.msra.mxu0 %v250
        %378 = vmatpush.msra.mxu0 %v246
        %379 = vmatpush.msra.mxu0 %v242
        %380 = vmatpush.msra.mxu0 %v238
        %381 = vmatpush.msra.mxu0 %v234
        %382 = vmatpush.msra.mxu0 %v230
        %383 = vmatpush.msra.mxu0 %v226
        %384 = vmatpush.msra.mxu0 %v222
        %385 = vmatpush.msra.mxu0 %v218
        %386 = vmatpush.msra.mxu0 %v214
        %387 = vmatpush.msra.mxu0 %v210
        %388 = vmatpush.msra.mxu0 %v206
        %389 = vmatmul.f32.gmra.mxu0 %v203
        %v390 = vpop.f32.mrf.mxu0
        %v391 = vadd.f32 0.0, %v390
        %392 = vdwg.mxu0
        %393 = vmatpush.msra.mxu0 %v330
        %394 = vmatpush.msra.mxu0 %v326
        %395 = vmatpush.msra.mxu0 %v322
        %396 = vmatpush.msra.mxu0 %v318
        %397 = vmatpush.msra.mxu0 %v314
        %398 = vmatpush.msra.mxu0 %v310
        %399 = vmatpush.msra.mxu0 %v306
        %400 = vmatpush.msra.mxu0 %v302
        %401 = vmatpush.msra.mxu0 %v298
        %402 = vmatpush.msra.mxu0 %v294
        %403 = vmatpush.msra.mxu0 %v290
        %404 = vmatpush.msra.mxu0 %v286
        %405 = vmatpush.msra.mxu0 %v282
        %406 = vmatpush.msra.mxu0 %v278
        %407 = vmatpush.msra.mxu0 %v274
        %408 = vmatpush.msra.mxu0 %v270
        %409 = vmatmul.f32.gmra.mxu0 %v204
        %v410 = vpop.f32.mrf.mxu0
        %v411 = vadd.f32 %v391, %v410
        %412 = vdwg.mxu0
        %413 = vmatpush.msra.mxu0 %v267
        %414 = vmatpush.msra.mxu0 %v263
        %415 = vmatpush.msra.mxu0 %v259
        %416 = vmatpush.msra.mxu0 %v255
        %417 = vmatpush.msra.mxu0 %v251
        %418 = vmatpush.msra.mxu0 %v247
        %419 = vmatpush.msra.mxu0 %v243
        %420 = vmatpush.msra.mxu0 %v239
        %421 = vmatpush.msra.mxu0 %v235
        %422 = vmatpush.msra.mxu0 %v231
        %423 = vmatpush.msra.mxu0 %v227
        %424 = vmatpush.msra.mxu0 %v223
        %425 = vmatpush.msra.mxu0 %v219
        %426 = vmatpush.msra.mxu0 %v215
        %427 = vmatpush.msra.mxu0 %v211
        %428 = vmatpush.msra.mxu0 %v207
        %429 = vmatmul.f32.gmra.mxu0 %v203
        %v430 = vpop.f32.mrf.mxu0
        %v431 = vadd.f32 0.0, %v430
        %432 = vdwg.mxu0
        %433 = vmatpush.msra.mxu0 %v331
        %434 = vmatpush.msra.mxu0 %v327
        %435 = vmatpush.msra.mxu0 %v323
        %436 = vmatpush.msra.mxu0 %v319
        %437 = vmatpush.msra.mxu0 %v315
        %438 = vmatpush.msra.mxu0 %v311
        %439 = vmatpush.msra.mxu0 %v307
        %440 = vmatpush.msra.mxu0 %v303
        %441 = vmatpush.msra.mxu0 %v299
        %442 = vmatpush.msra.mxu0 %v295
        %443 = vmatpush.msra.mxu0 %v291
        %444 = vmatpush.msra.mxu0 %v287
        %445 = vmatpush.msra.mxu0 %v283
        %446 = vmatpush.msra.mxu0 %v279
        %447 = vmatpush.msra.mxu0 %v275
        %448 = vmatpush.msra.mxu0 %v271
        %449 = vmatmul.f32.gmra.mxu0 %v204
        %v450 = vpop.f32.mrf.mxu0
        %v451 = vadd.f32 %v431, %v450
        %452 = vdwg.mxu0
        %453 = vmatpush.msra.mxu0 %v268
        %454 = vmatpush.msra.mxu0 %v264
        %455 = vmatpush.msra.mxu0 %v260
        %456 = vmatpush.msra.mxu0 %v256
        %457 = vmatpush.msra.mxu0 %v252
        %458 = vmatpush.msra.mxu0 %v248
        %459 = vmatpush.msra.mxu0 %v244
        %460 = vmatpush.msra.mxu0 %v240
        %461 = vmatpush.msra.mxu0 %v236
        %462 = vmatpush.msra.mxu0 %v232
        %463 = vmatpush.msra.mxu0 %v228
        %464 = vmatpush.msra.mxu0 %v224
        %465 = vmatpush.msra.mxu0 %v220
        %466 = vmatpush.msra.mxu0 %v216
        %467 = vmatpush.msra.mxu0 %v212
        %468 = vmatpush.msra.mxu0 %v208
        %469 = vmatmul.f32.gmra.mxu0 %v203
        %v470 = vpop.f32.mrf.mxu0
        %v471 = vadd.f32 0.0, %v470
        %472 = vdwg.mxu0
        %473 = vmatpush.msra.mxu0 %v332
        %474 = vmatpush.msra.mxu0 %v328
        %475 = vmatpush.msra.mxu0 %v324
        %476 = vmatpush.msra.mxu0 %v320
        %477 = vmatpush.msra.mxu0 %v316
        %478 = vmatpush.msra.mxu0 %v312
        %479 = vmatpush.msra.mxu0 %v308
        %480 = vmatpush.msra.mxu0 %v304
        %481 = vmatpush.msra.mxu0 %v300
        %482 = vmatpush.msra.mxu0 %v296
        %483 = vmatpush.msra.mxu0 %v292
        %484 = vmatpush.msra.mxu0 %v288
        %485 = vmatpush.msra.mxu0 %v284
        %486 = vmatpush.msra.mxu0 %v280
        %487 = vmatpush.msra.mxu0 %v276
        %488 = vmatpush.msra.mxu0 %v272
        %489 = vmatmul.f32.gmra.mxu0 %v204
        %v490 = vpop.f32.mrf.mxu0
        %v491 = vadd.f32 %v471, %v490
        %492 = vdwg.mxu0
        %493 = vst [vmem:[%s200] sm:$0xff] %v371
        %494 = vst [vmem:[%s200 + $0x8] sm:$0xff] %v411
        %495 = vst [vmem:[%s200 + $0x10] sm:$0xff] %v451
        %496 = vst [vmem:[%s200 + $0x18] sm:$0xff] %v491
        %s497 = sand.u32 %s94, 1
        %s498 = scalar_lea.sflag [#allocation4], %s497
        %s499 = sand.u32 %s94, 1
        %s500 = smul.addr %s499, 32
        %s501 = scalar_lea.vmem [#allocation7], %s500
        // Predicated region
        $region37: #{tpu_custom_call.1} parent=27 // pred_check
          %p502 = pneg %p104
        $region38: #{tpu_custom_call.1} parent=27 // pred_check_branch
          %504 = sbr.rel (%p502) target = $region40
        $region39: #{tpu_custom_call.1} parent=27 // pred_region
          %s505 = smul.u32 4, %s25
          %507 = vsyncadd %s498, 0
          %s508 = smul.addr %s24, 8
          %s509 = sadd.s32 %s505, %s508
          %s510 = smul.addr %s509, 8
          %s511 = scalar_lea.hbm %s2, %s510
          %s513 = sshll.u32 %s501, 4
          %s514 = int_to_ptr.vmem [resolvable:$true] %s513
          %s515 = sshll.u32 %s511, 4
          %s516 = int_to_ptr.hbm [resolvable:$true] %s515
          %518 = dma.vmem_to_hbm [thread:$0]  %s514, 512, %s516, %s498
        $region40: #{tpu_custom_call.1} parent=27 // pred_fallthru
          _
      $region28: #{tpu_custom_call.1} parent=5 // pred_fallthru
        _
      %p519 = scmp.le.s32.totalorder 2, %s15
      // Predicated region
      $region41: #{tpu_custom_call.1} parent=5 // pred_check
        %p520 = pneg %p519
      $region42: #{tpu_custom_call.1} parent=5 // pred_check_branch
        %522 = sbr.rel (%p520) target = $region44
      $region43: #{tpu_custom_call.1} parent=5 // pred_region
        %s523 = ssub.s32 %s15, 2
        // Predicated region
        $region45: #{tpu_custom_call.1} parent=43 // pred_check
          %p524 = pneg %p110
        $region46: #{tpu_custom_call.1} parent=43 // pred_check_branch
          %526 = sbr.rel (%p524) target = $region48
        $region47: #{tpu_custom_call.1} parent=43 // pred_region
          %s527 = sand.u32 %s95, 1
          %s528 = scalar_lea.sflag [#allocation4], %s527
          %s529 = sand.u32 %s95, 1
          %s530 = smul.addr %s529, 32
          %s531 = scalar_lea.vmem [#allocation7], %s530
          %533 = dma.done %s528, 512
        $region48: #{tpu_custom_call.1} parent=43 // pred_fallthru
          _
      $region44: #{tpu_custom_call.1} parent=5 // pred_fallthru
        _
    $region6: #{tpu_custom_call.1} parent=1 // loop_footer
      %s19 = sadd.s32 1, %s15
    $region7: #{tpu_custom_call.1} parent=1 // loop_footer_branch
      %14 = sbr.rel target = $region3
    $region8: #{tpu_custom_call.1} parent=1 // loop_exit
      _
    %534 = vsyncpa [#allocation3], 1
    %s535 = scalar_lea.sflag [#allocation3], 1
    %536 = vsyncpa %s535, 1
    %537 = vsyncpa [#allocation6], 1
    %s538 = scalar_lea.sflag [#allocation6], 1
    %539 = vsyncpa %s538, 1
    %540 = vsyncpa [#allocation4], 1
    %s541 = scalar_lea.sflag [#allocation4], 1
    %542 = vsyncpa %s541, 1

</llo_original>
